<compile_context>
chip_gen: v5e
topology: v5e:2x2
jax: 0.10.0
libtpu: 0.0.40
codegen_flags: <defaults>
</compile_context>

<pallas_src>
import functools

import jax
import jax.numpy as jnp
from jax.experimental import pallas as pl
from jax.experimental.pallas import tpu as pltpu


def _round_up(v, m):
    return ((v + m - 1) // m) * m


def _mlp_kernel(x_ref, w_in_ref, b_in_ref, wh_ref, bh_ref, w_out_ref, b_out_ref,
                o_ref, *, num_hidden, dim_x):
    """Fused MLP forward for one lane-dense tile of points (transposed layout).

    x_ref:     (dim_x, TM)      input coordinates tile (f32), points on lanes
    w_in_ref:  (F, dim_x)       first Linear weight, [out, in] layout (f32)
    b_in_ref:  (F, 1)           first Linear bias (f32)
    wh_ref:    (L-1, F, F)      stacked hidden weights, [out, in] (bf16 or f32)
    bh_ref:    (L-1, F, 1)      stacked hidden biases (epilogue dtype)
    w_out_ref: (dim_x, F)       output weight, [out, in] (bf16 or f32)
    b_out_ref: (dim_x, 1)       output bias (f32)
    o_ref:     (dim_x, TM)      output tile (lane-dense store)
    """
    x = x_ref[...].astype(jnp.float32)          # (dim_x, TM)
    w_in = w_in_ref[...].astype(jnp.float32)    # (F, dim_x)

    # First layer on the VPU: the K = dim_x contraction is tiny, so dim_x
    # outer-product FMAs are far cheaper than a nearly-empty MXU pass.
    h = w_in[:, 0:1] * x[0:1, :]                # (F, TM)
    for d in range(1, dim_x):
        h = h + w_in[:, d:d + 1] * x[d:d + 1, :]
    h = jnp.maximum(h + b_in_ref[...].astype(jnp.float32), 0.0)

    mxu_dtype = wh_ref.dtype
    epi_dtype = bh_ref.dtype
    h = h.astype(mxu_dtype)

    # Hidden layers: fully unrolled (num_hidden is a Python constant) so
    # weight indexing is static and the scheduler can overlap the next
    # layer's weight load / bias broadcast with the current MXU pass.
    for l in range(num_hidden):
        hh = jnp.dot(wh_ref[l], h, preferred_element_type=jnp.float32)  # (F, TM)
        h = jnp.maximum(hh.astype(epi_dtype) + bh_ref[l], 0).astype(mxu_dtype)

    # Output projection (no activation): (dim_x, F) @ (F, TM) -> (dim_x, TM),
    # already lane-dense for the store.
    out = jnp.dot(w_out_ref[...], h, preferred_element_type=jnp.float32)
    out = out + b_out_ref[...].astype(jnp.float32)
    o_ref[...] = out.astype(o_ref.dtype)


def _choose_tile_m(M, tile_m):
    # Lane-dense blocks require tile_m to be a multiple of 128.
    tile_m = max(128, _round_up(tile_m, 128))
    # Keep >= 2 (roughly balanced) grid steps so dimension_semantics
    # ("parallel",) can shard the grid across both TensorCores on v7x.
    half = max(128, _round_up(pl.cdiv(M, 2), 128))
    return min(tile_m, half)


def neural_prior_forward(x, params, *, tile_m=1024, use_bf16=True,
                         bf16_epilogue=True):
    """x: [B, N, dim_x] -> [B, N, dim_x]."""
    w_in, b_in, wh, bh, w_out, b_out = params
    B, N, dim_x = x.shape
    F = w_in.shape[1]
    L_hidden = wh.shape[0]
    assert L_hidden >= 1, "this kernel assumes layer_size >= 2"

    M = B * N
    tile_m = _choose_tile_m(M, tile_m)
    grid = (pl.cdiv(M, tile_m),)

    # Transposed ("PyTorch-native" [out, in]) weights and (dim_x, M) input so
    # all kernel loads/stores are lane-dense.  These XLA-side transposes are
    # tiny; in a training loop the weights would be kept pre-transposed.
    x2d_t = x.reshape(M, dim_x).T                    # (dim_x, M)
    mxu_dtype = jnp.bfloat16 if use_bf16 else jnp.float32
    epi_dtype = jnp.bfloat16 if (use_bf16 and bf16_epilogue) else jnp.float32

    w_in_t = w_in.T.astype(jnp.float32)              # (F, dim_x)
    b_in_t = b_in.T.astype(jnp.float32)              # (F, 1)
    wh_t = jnp.swapaxes(wh, 1, 2).astype(mxu_dtype)  # (L-1, F, F)
    bh_t = jnp.swapaxes(bh, 1, 2).astype(epi_dtype)  # (L-1, F, 1)
    w_out_t = w_out.T.astype(mxu_dtype)              # (dim_x, F)
    b_out_t = b_out.T.astype(jnp.float32)            # (dim_x, 1)

    kernel = functools.partial(_mlp_kernel, num_hidden=L_hidden, dim_x=dim_x)

    flops = 2 * M * F * (2 * dim_x + L_hidden * F)
    param_bytes = sum(int(p.size) * p.dtype.itemsize
                      for p in (w_in_t, b_in_t, wh_t, bh_t, w_out_t, b_out_t))
    cost = pl.CostEstimate(flops=flops, transcendentals=0,
                           bytes_accessed=2 * M * dim_x * 4 + param_bytes)

    out_t = pl.pallas_call(
        kernel,
        out_shape=jax.ShapeDtypeStruct((dim_x, M), x.dtype),
        grid_spec=pltpu.PrefetchScalarGridSpec(
            num_scalar_prefetch=0,
            grid=grid,
            in_specs=[
                pl.BlockSpec((dim_x, tile_m), lambda i: (0, i)),        # x^T tile
                # Constant-index weight/bias blocks: DMA'd once, then revisited.
                pl.BlockSpec((F, dim_x), lambda i: (0, 0)),             # w_in^T
                pl.BlockSpec((F, 1), lambda i: (0, 0)),                 # b_in^T
                pl.BlockSpec((L_hidden, F, F), lambda i: (0, 0, 0)),    # wh^T
                pl.BlockSpec((L_hidden, F, 1), lambda i: (0, 0, 0)),    # bh^T
                pl.BlockSpec((dim_x, F), lambda i: (0, 0)),             # w_out^T
                pl.BlockSpec((dim_x, 1), lambda i: (0, 0)),             # b_out^T
            ],
            out_specs=pl.BlockSpec((dim_x, tile_m), lambda i: (0, i)),  # lane-dense
        ),
        compiler_params=pltpu.CompilerParams(
            dimension_semantics=("parallel",)),
        cost_estimate=cost,
    )(x2d_t, w_in_t, b_in_t, wh_t, bh_t, w_out_t, b_out_t)

    return out_t.T.reshape(B, N, dim_x)


def init_params(key, dim_x=3, filter_size=128, layer_size=8, dtype=jnp.float32):
    """Deterministic synthetic init (shapes match the PyTorch module).

    Weights are stored as [in, out] so the reference forward is x @ W + b
    (equivalent to torch.nn.Linear with weight = W.T).
    """
    L_hidden = layer_size - 1
    keys = jax.random.split(key, 6)
    scale_in = 1.0 / jnp.sqrt(dim_x)
    scale_h = 1.0 / jnp.sqrt(filter_size)

    w_in = jax.random.uniform(keys[0], (dim_x, filter_size), dtype,
                              -scale_in, scale_in)
    b_in = jax.random.uniform(keys[1], (1, filter_size), dtype,
                              -scale_in, scale_in)
    wh = jax.random.uniform(keys[2], (L_hidden, filter_size, filter_size),
                            dtype, -scale_h, scale_h)
    bh = jax.random.uniform(keys[3], (L_hidden, 1, filter_size), dtype,
                            -scale_h, scale_h)
    w_out = jax.random.uniform(keys[4], (filter_size, dim_x), dtype,
                               -scale_h, scale_h)
    b_out = jax.random.uniform(keys[5], (1, dim_x), dtype, -scale_h, scale_h)
    return (w_in, b_in, wh, bh, w_out, b_out)


def reference_forward(x, params):
    """Pure-JAX reference of the PyTorch forward (f32)."""
    w_in, b_in, wh, bh, w_out, b_out = params
    h = jnp.maximum(x @ w_in + b_in[0], 0.0)
    for l in range(wh.shape[0]):
        h = jnp.maximum(h @ wh[l] + bh[l, 0], 0.0)
    return h @ w_out + b_out[0]


if __name__ == "__main__":
    key = jax.random.PRNGKey(0)
    k_param, k_x = jax.random.split(key)

    # Module defaults: dim_x=3, filter_size=128, layer_size=8.
    dim_x, filter_size, layer_size = 3, 128, 8
    params = init_params(k_param, dim_x, filter_size, layer_size)

    # Small point cloud; M = 1000 is not a multiple of the 128-lane tile, so
    # the partial-last-block (masked writeback) path is exercised, and the
    # 2-way tile cap keeps a 2-step "parallel" grid (both TCs busy on v7x).
    B, N = 2, 500
    x = jax.random.normal(k_x, (B, N, dim_x), jnp.float32)

    ref = reference_forward(x, params)

    # Bit-careful f32 path.
    out_f32 = jax.block_until_ready(
        neural_prior_forward(x, params, use_bf16=False))
    assert out_f32.shape == (B, N, dim_x)
    assert jnp.allclose(out_f32, ref, atol=1e-3, rtol=1e-3)

    # Fast path: bf16 MXU operands + bf16 epilogue, f32 accumulation.
    # (Error compounds over the 8 re-quantized layers, hence the 5e-2 tol.)
    out_bf16 = jax.block_until_ready(
        neural_prior_forward(x, params, use_bf16=True))
    assert out_bf16.shape == (B, N, dim_x)
    assert jnp.allclose(out_bf16, ref, atol=5e-2, rtol=5e-2)

    print("KERNEL_OK")
</pallas_src>

<mosaic_0001>
module attributes {stable_mosaic.version = 11 : i64} {
  func.func @_mlp_kernel(%arg0: i32, %arg1: memref<3x512xf32, #tpu.memory_space<vmem>>, %arg2: memref<128x3xf32, #tpu.memory_space<vmem>>, %arg3: memref<128x1xf32, #tpu.memory_space<vmem>>, %arg4: memref<7x128x128xf32, #tpu.memory_space<vmem>>, %arg5: memref<7x128x1xf32, #tpu.memory_space<vmem>>, %arg6: memref<3x128xf32, #tpu.memory_space<vmem>>, %arg7: memref<3x1xf32, #tpu.memory_space<vmem>>, %arg8: memref<3x512xf32, #tpu.memory_space<vmem>>) attributes {dimension_semantics = [#tpu.dimension_semantics<parallel>], iteration_bounds = array<i64: 2>, scalar_prefetch = 0 : i64, scratch_operands = 0 : i64, tpu.core_type = #tpu.core_type<tc>, window_params = [{transform_indices = @transform_0, window_bounds = array<i64: 3, 512>}, {pipeline_mode = #tpu.pipeline_mode<synchronous>, transform_indices = @transform_1, window_bounds = array<i64: 128, 3>}, {pipeline_mode = #tpu.pipeline_mode<synchronous>, transform_indices = @transform_2, window_bounds = array<i64: 128, 1>}, {pipeline_mode = #tpu.pipeline_mode<synchronous>, transform_indices = @transform_3, window_bounds = array<i64: 7, 128, 128>}, {pipeline_mode = #tpu.pipeline_mode<synchronous>, transform_indices = @transform_4, window_bounds = array<i64: 7, 128, 1>}, {pipeline_mode = #tpu.pipeline_mode<synchronous>, transform_indices = @transform_5, window_bounds = array<i64: 3, 128>}, {pipeline_mode = #tpu.pipeline_mode<synchronous>, transform_indices = @transform_6, window_bounds = array<i64: 3, 1>}, {transform_indices = @transform_7, window_bounds = array<i64: 3, 512>}]} {
    %c0 = arith.constant 0 : index
    %c0_0 = arith.constant 0 : index
    %0 = vector.load %arg1[%c0, %c0_0] : memref<3x512xf32, #tpu.memory_space<vmem>>, vector<3x512xf32>
    %c0_1 = arith.constant 0 : index
    %c0_2 = arith.constant 0 : index
    %1 = vector.load %arg2[%c0_1, %c0_2] : memref<128x3xf32, #tpu.memory_space<vmem>>, vector<128x3xf32>
    %2 = vector.extract_strided_slice %1 {offsets = [0, 0], sizes = [128, 1], strides = [1, 1]} : vector<128x3xf32> to vector<128x1xf32>
    %3 = vector.extract_strided_slice %0 {offsets = [0, 0], sizes = [1, 512], strides = [1, 1]} : vector<3x512xf32> to vector<1x512xf32>
    %4 = vector.broadcast %2 : vector<128x1xf32> to vector<128x512xf32>
    %5 = vector.broadcast %3 : vector<1x512xf32> to vector<128x512xf32>
    %6 = arith.mulf %4, %5 : vector<128x512xf32>
    %7 = vector.extract_strided_slice %1 {offsets = [0, 1], sizes = [128, 1], strides = [1, 1]} : vector<128x3xf32> to vector<128x1xf32>
    %8 = vector.extract_strided_slice %0 {offsets = [1, 0], sizes = [1, 512], strides = [1, 1]} : vector<3x512xf32> to vector<1x512xf32>
    %9 = vector.broadcast %7 : vector<128x1xf32> to vector<128x512xf32>
    %10 = vector.broadcast %8 : vector<1x512xf32> to vector<128x512xf32>
    %11 = arith.mulf %9, %10 : vector<128x512xf32>
    %12 = arith.addf %6, %11 : vector<128x512xf32>
    %13 = vector.extract_strided_slice %1 {offsets = [0, 2], sizes = [128, 1], strides = [1, 1]} : vector<128x3xf32> to vector<128x1xf32>
    %14 = vector.extract_strided_slice %0 {offsets = [2, 0], sizes = [1, 512], strides = [1, 1]} : vector<3x512xf32> to vector<1x512xf32>
    %15 = vector.broadcast %13 : vector<128x1xf32> to vector<128x512xf32>
    %16 = vector.broadcast %14 : vector<1x512xf32> to vector<128x512xf32>
    %17 = arith.mulf %15, %16 : vector<128x512xf32>
    %18 = arith.addf %12, %17 : vector<128x512xf32>
    %c0_3 = arith.constant 0 : index
    %c0_4 = arith.constant 0 : index
    %19 = vector.load %arg3[%c0_3, %c0_4] : memref<128x1xf32, #tpu.memory_space<vmem>>, vector<128x1xf32>
    %20 = vector.broadcast %19 : vector<128x1xf32> to vector<128x512xf32>
    %21 = arith.addf %18, %20 : vector<128x512xf32>
    %cst = arith.constant 0.000000e+00 : f32
    %22 = vector.broadcast %cst : f32 to vector<128x512xf32>
    %23 = arith.maximumf %21, %22 : vector<128x512xf32>
    %c0_5 = arith.constant 0 : index
    %c0_6 = arith.constant 0 : index
    %c0_7 = arith.constant 0 : index
    %24 = vector.load %arg4[%c0_5, %c0_6, %c0_7] : memref<7x128x128xf32, #tpu.memory_space<vmem>>, vector<1x128x128xf32>
    %25 = vector.shape_cast %24 : vector<1x128x128xf32> to vector<128x128xf32>
    %cst_8 = arith.constant dense<0.000000e+00> : vector<128x512xf32>
    %26 = tpu.matmul %25, %23, %cst_8 {dimension_numbers = #tpu.dot_dimension_numbers<[1], [0], [0], [1], [0, 0, 1, 1], [], []>} : vector<128x128xf32>, vector<128x512xf32>, vector<128x512xf32> -> vector<128x512xf32>
    %c0_9 = arith.constant 0 : index
    %c0_10 = arith.constant 0 : index
    %c0_11 = arith.constant 0 : index
    %27 = vector.load %arg5[%c0_9, %c0_10, %c0_11] : memref<7x128x1xf32, #tpu.memory_space<vmem>>, vector<1x128x1xf32>
    %28 = vector.shape_cast %27 : vector<1x128x1xf32> to vector<128x1xf32>
    %29 = vector.broadcast %28 : vector<128x1xf32> to vector<128x512xf32>
    %30 = arith.addf %26, %29 : vector<128x512xf32>
    %cst_12 = arith.constant 0.000000e+00 : f32
    %31 = vector.broadcast %cst_12 : f32 to vector<128x512xf32>
    %32 = arith.maximumf %30, %31 : vector<128x512xf32>
    %c1 = arith.constant 1 : index
    %c0_13 = arith.constant 0 : index
    %c0_14 = arith.constant 0 : index
    %33 = vector.load %arg4[%c1, %c0_13, %c0_14] : memref<7x128x128xf32, #tpu.memory_space<vmem>>, vector<1x128x128xf32>
    %34 = vector.shape_cast %33 : vector<1x128x128xf32> to vector<128x128xf32>
    %cst_15 = arith.constant dense<0.000000e+00> : vector<128x512xf32>
    %35 = tpu.matmul %34, %32, %cst_15 {dimension_numbers = #tpu.dot_dimension_numbers<[1], [0], [0], [1], [0, 0, 1, 1], [], []>} : vector<128x128xf32>, vector<128x512xf32>, vector<128x512xf32> -> vector<128x512xf32>
    %c1_16 = arith.constant 1 : index
    %c0_17 = arith.constant 0 : index
    %c0_18 = arith.constant 0 : index
    %36 = vector.load %arg5[%c1_16, %c0_17, %c0_18] : memref<7x128x1xf32, #tpu.memory_space<vmem>>, vector<1x128x1xf32>
    %37 = vector.shape_cast %36 : vector<1x128x1xf32> to vector<128x1xf32>
    %38 = vector.broadcast %37 : vector<128x1xf32> to vector<128x512xf32>
    %39 = arith.addf %35, %38 : vector<128x512xf32>
    %cst_19 = arith.constant 0.000000e+00 : f32
    %40 = vector.broadcast %cst_19 : f32 to vector<128x512xf32>
    %41 = arith.maximumf %39, %40 : vector<128x512xf32>
    %c2 = arith.constant 2 : index
    %c0_20 = arith.constant 0 : index
    %c0_21 = arith.constant 0 : index
    %42 = vector.load %arg4[%c2, %c0_20, %c0_21] : memref<7x128x128xf32, #tpu.memory_space<vmem>>, vector<1x128x128xf32>
    %43 = vector.shape_cast %42 : vector<1x128x128xf32> to vector<128x128xf32>
    %cst_22 = arith.constant dense<0.000000e+00> : vector<128x512xf32>
    %44 = tpu.matmul %43, %41, %cst_22 {dimension_numbers = #tpu.dot_dimension_numbers<[1], [0], [0], [1], [0, 0, 1, 1], [], []>} : vector<128x128xf32>, vector<128x512xf32>, vector<128x512xf32> -> vector<128x512xf32>
    %c2_23 = arith.constant 2 : index
    %c0_24 = arith.constant 0 : index
    %c0_25 = arith.constant 0 : index
    %45 = vector.load %arg5[%c2_23, %c0_24, %c0_25] : memref<7x128x1xf32, #tpu.memory_space<vmem>>, vector<1x128x1xf32>
    %46 = vector.shape_cast %45 : vector<1x128x1xf32> to vector<128x1xf32>
    %47 = vector.broadcast %46 : vector<128x1xf32> to vector<128x512xf32>
    %48 = arith.addf %44, %47 : vector<128x512xf32>
    %cst_26 = arith.constant 0.000000e+00 : f32
    %49 = vector.broadcast %cst_26 : f32 to vector<128x512xf32>
    %50 = arith.maximumf %48, %49 : vector<128x512xf32>
    %c3 = arith.constant 3 : index
    %c0_27 = arith.constant 0 : index
    %c0_28 = arith.constant 0 : index
    %51 = vector.load %arg4[%c3, %c0_27, %c0_28] : memref<7x128x128xf32, #tpu.memory_space<vmem>>, vector<1x128x128xf32>
    %52 = vector.shape_cast %51 : vector<1x128x128xf32> to vector<128x128xf32>
    %cst_29 = arith.constant dense<0.000000e+00> : vector<128x512xf32>
    %53 = tpu.matmul %52, %50, %cst_29 {dimension_numbers = #tpu.dot_dimension_numbers<[1], [0], [0], [1], [0, 0, 1, 1], [], []>} : vector<128x128xf32>, vector<128x512xf32>, vector<128x512xf32> -> vector<128x512xf32>
    %c3_30 = arith.constant 3 : index
    %c0_31 = arith.constant 0 : index
    %c0_32 = arith.constant 0 : index
    %54 = vector.load %arg5[%c3_30, %c0_31, %c0_32] : memref<7x128x1xf32, #tpu.memory_space<vmem>>, vector<1x128x1xf32>
    %55 = vector.shape_cast %54 : vector<1x128x1xf32> to vector<128x1xf32>
    %56 = vector.broadcast %55 : vector<128x1xf32> to vector<128x512xf32>
    %57 = arith.addf %53, %56 : vector<128x512xf32>
    %cst_33 = arith.constant 0.000000e+00 : f32
    %58 = vector.broadcast %cst_33 : f32 to vector<128x512xf32>
    %59 = arith.maximumf %57, %58 : vector<128x512xf32>
    %c4 = arith.constant 4 : index
    %c0_34 = arith.constant 0 : index
    %c0_35 = arith.constant 0 : index
    %60 = vector.load %arg4[%c4, %c0_34, %c0_35] : memref<7x128x128xf32, #tpu.memory_space<vmem>>, vector<1x128x128xf32>
    %61 = vector.shape_cast %60 : vector<1x128x128xf32> to vector<128x128xf32>
    %cst_36 = arith.constant dense<0.000000e+00> : vector<128x512xf32>
    %62 = tpu.matmul %61, %59, %cst_36 {dimension_numbers = #tpu.dot_dimension_numbers<[1], [0], [0], [1], [0, 0, 1, 1], [], []>} : vector<128x128xf32>, vector<128x512xf32>, vector<128x512xf32> -> vector<128x512xf32>
    %c4_37 = arith.constant 4 : index
    %c0_38 = arith.constant 0 : index
    %c0_39 = arith.constant 0 : index
    %63 = vector.load %arg5[%c4_37, %c0_38, %c0_39] : memref<7x128x1xf32, #tpu.memory_space<vmem>>, vector<1x128x1xf32>
    %64 = vector.shape_cast %63 : vector<1x128x1xf32> to vector<128x1xf32>
    %65 = vector.broadcast %64 : vector<128x1xf32> to vector<128x512xf32>
    %66 = arith.addf %62, %65 : vector<128x512xf32>
    %cst_40 = arith.constant 0.000000e+00 : f32
    %67 = vector.broadcast %cst_40 : f32 to vector<128x512xf32>
    %68 = arith.maximumf %66, %67 : vector<128x512xf32>
    %c5 = arith.constant 5 : index
    %c0_41 = arith.constant 0 : index
    %c0_42 = arith.constant 0 : index
    %69 = vector.load %arg4[%c5, %c0_41, %c0_42] : memref<7x128x128xf32, #tpu.memory_space<vmem>>, vector<1x128x128xf32>
    %70 = vector.shape_cast %69 : vector<1x128x128xf32> to vector<128x128xf32>
    %cst_43 = arith.constant dense<0.000000e+00> : vector<128x512xf32>
    %71 = tpu.matmul %70, %68, %cst_43 {dimension_numbers = #tpu.dot_dimension_numbers<[1], [0], [0], [1], [0, 0, 1, 1], [], []>} : vector<128x128xf32>, vector<128x512xf32>, vector<128x512xf32> -> vector<128x512xf32>
    %c5_44 = arith.constant 5 : index
    %c0_45 = arith.constant 0 : index
    %c0_46 = arith.constant 0 : index
    %72 = vector.load %arg5[%c5_44, %c0_45, %c0_46] : memref<7x128x1xf32, #tpu.memory_space<vmem>>, vector<1x128x1xf32>
    %73 = vector.shape_cast %72 : vector<1x128x1xf32> to vector<128x1xf32>
    %74 = vector.broadcast %73 : vector<128x1xf32> to vector<128x512xf32>
    %75 = arith.addf %71, %74 : vector<128x512xf32>
    %cst_47 = arith.constant 0.000000e+00 : f32
    %76 = vector.broadcast %cst_47 : f32 to vector<128x512xf32>
    %77 = arith.maximumf %75, %76 : vector<128x512xf32>
    %c6 = arith.constant 6 : index
    %c0_48 = arith.constant 0 : index
    %c0_49 = arith.constant 0 : index
    %78 = vector.load %arg4[%c6, %c0_48, %c0_49] : memref<7x128x128xf32, #tpu.memory_space<vmem>>, vector<1x128x128xf32>
    %79 = vector.shape_cast %78 : vector<1x128x128xf32> to vector<128x128xf32>
    %cst_50 = arith.constant dense<0.000000e+00> : vector<128x512xf32>
    %80 = tpu.matmul %79, %77, %cst_50 {dimension_numbers = #tpu.dot_dimension_numbers<[1], [0], [0], [1], [0, 0, 1, 1], [], []>} : vector<128x128xf32>, vector<128x512xf32>, vector<128x512xf32> -> vector<128x512xf32>
    %c6_51 = arith.constant 6 : index
    %c0_52 = arith.constant 0 : index
    %c0_53 = arith.constant 0 : index
    %81 = vector.load %arg5[%c6_51, %c0_52, %c0_53] : memref<7x128x1xf32, #tpu.memory_space<vmem>>, vector<1x128x1xf32>
    %82 = vector.shape_cast %81 : vector<1x128x1xf32> to vector<128x1xf32>
    %83 = vector.broadcast %82 : vector<128x1xf32> to vector<128x512xf32>
    %84 = arith.addf %80, %83 : vector<128x512xf32>
    %cst_54 = arith.constant 0.000000e+00 : f32
    %85 = vector.broadcast %cst_54 : f32 to vector<128x512xf32>
    %86 = arith.maximumf %84, %85 : vector<128x512xf32>
    %c0_55 = arith.constant 0 : index
    %c0_56 = arith.constant 0 : index
    %87 = vector.load %arg6[%c0_55, %c0_56] : memref<3x128xf32, #tpu.memory_space<vmem>>, vector<3x128xf32>
    %cst_57 = arith.constant dense<0.000000e+00> : vector<3x512xf32>
    %88 = tpu.matmul %87, %86, %cst_57 {dimension_numbers = #tpu.dot_dimension_numbers<[1], [0], [0], [1], [0, 0, 1, 1], [], []>} : vector<3x128xf32>, vector<128x512xf32>, vector<3x512xf32> -> vector<3x512xf32>
    %c0_58 = arith.constant 0 : index
    %c0_59 = arith.constant 0 : index
    %89 = vector.load %arg7[%c0_58, %c0_59] : memref<3x1xf32, #tpu.memory_space<vmem>>, vector<3x1xf32>
    %90 = vector.broadcast %89 : vector<3x1xf32> to vector<3x512xf32>
    %91 = arith.addf %88, %90 : vector<3x512xf32>
    %c0_60 = arith.constant 0 : index
    %c0_61 = arith.constant 0 : index
    %92 = vector.load %arg8[%c0_60, %c0_61] : memref<3x512xf32, #tpu.memory_space<vmem>>, vector<3x512xf32>
    tpu.vector_store %arg8[%c0_60, %c0_61], %91 {strides = array<i32>} : memref<3x512xf32, #tpu.memory_space<vmem>>, vector<3x512xf32>,
    return
  }
  func.func @transform_0(%arg0: i32) -> (i32, i32) {
    %c0_i32 = arith.constant 0 : i32
    %c0_i32_0 = arith.constant 0 : i32
    return %c0_i32, %arg0 : i32, i32
  }
  func.func @transform_1(%arg0: i32) -> (i32, i32) {
    %c0_i32 = arith.constant 0 : i32
    %c0_i32_0 = arith.constant 0 : i32
    %c0_i32_1 = arith.constant 0 : i32
    return %c0_i32, %c0_i32_0 : i32, i32
  }
  func.func @transform_2(%arg0: i32) -> (i32, i32) {
    %c0_i32 = arith.constant 0 : i32
    %c0_i32_0 = arith.constant 0 : i32
    %c0_i32_1 = arith.constant 0 : i32
    return %c0_i32, %c0_i32_0 : i32, i32
  }
  func.func @transform_3(%arg0: i32) -> (i32, i32, i32) {
    %c0_i32 = arith.constant 0 : i32
    %c0_i32_0 = arith.constant 0 : i32
    %c0_i32_1 = arith.constant 0 : i32
    %c0_i32_2 = arith.constant 0 : i32
    return %c0_i32, %c0_i32_0, %c0_i32_1 : i32, i32, i32
  }
  func.func @transform_4(%arg0: i32) -> (i32, i32, i32) {
    %c0_i32 = arith.constant 0 : i32
    %c0_i32_0 = arith.constant 0 : i32
    %c0_i32_1 = arith.constant 0 : i32
    %c0_i32_2 = arith.constant 0 : i32
    return %c0_i32, %c0_i32_0, %c0_i32_1 : i32, i32, i32
  }
  func.func @transform_5(%arg0: i32) -> (i32, i32) {
    %c0_i32 = arith.constant 0 : i32
    %c0_i32_0 = arith.constant 0 : i32
    %c0_i32_1 = arith.constant 0 : i32
    return %c0_i32, %c0_i32_0 : i32, i32
  }
  func.func @transform_6(%arg0: i32) -> (i32, i32) {
    %c0_i32 = arith.constant 0 : i32
    %c0_i32_0 = arith.constant 0 : i32
    %c0_i32_1 = arith.constant 0 : i32
    return %c0_i32, %c0_i32_0 : i32, i32
  }
  func.func @transform_7(%arg0: i32) -> (i32, i32) {
    %c0_i32 = arith.constant 0 : i32
    %c0_i32_0 = arith.constant 0 : i32
    return %c0_i32, %arg0 : i32, i32
  }
}

</mosaic_0001>

<llo_original>
// kernel: tpu_custom_call.1
$region0: #{tpu_custom_call.1}
  #allocation0 [shape = 'u32[]', space=smem, size = 0x4, offset = 0x4, fixed_abs, tag = 'smem constant byte address 0x4 - core index']
  #allocation1 [shape = 'u32[72,128]{1,0:T(1,128)}', space=vmem, size = 0x9000, scoped, tag = 'internal scratch']
  %s0 = inlined_call_operand.vmem [shape: f32[3,1000], index: 0, kind: input, shape index: {}]
  %s1 = inlined_call_operand.vmem [shape: f32[128,3], index: 1, kind: input, shape index: {}]
  %s2 = inlined_call_operand.vmem [shape: f32[128,1], index: 2, kind: input, shape index: {}]
  %s3 = inlined_call_operand.vmem [shape: f32[7,128,128], index: 3, kind: input, shape index: {}]
  %s4 = inlined_call_operand.vmem [shape: f32[7,128,1], index: 4, kind: input, shape index: {}]
  %s5 = inlined_call_operand.vmem [shape: f32[3,128], index: 5, kind: input, shape index: {}]
  %s6 = inlined_call_operand.vmem [shape: f32[3,1], index: 6, kind: input, shape index: {}]
  %s7 = inlined_call_operand.hbm [shape: f32[3,1000], index: 7, kind: output, shape index: {}]
  %s8 = sld [smem:[#allocation0]]
  $region61: #{tpu_custom_call.1} parent=0
    _
  %s10 = ssub.s32 1, %s8
  %s11 = scalar_select 0, %s10, %s8
  $region1: #{tpu_custom_call.1} parent=0
    #allocation2 [shape = 'u8[16384]{0}', space=vmem, size = 0x4000, scoped, tag = 'output window, operand 0']
    #allocation3 [shape = 's32[2]{0}', space=sflag, size = 0x8, scoped, tag = 'scoped memory for tpu_custom_call.1']
    %12 = vsyncpa [#allocation3], 0
    %s13 = scalar_lea.sflag [#allocation3], 1
    %14 = vsyncpa %s13, 0
    loop: start=0, step=1, limit=4
    $region2: #{tpu_custom_call.1} parent=1 // loop_pre_header
      _
    $region3: #{tpu_custom_call.1} parent=1 // loop_header
      %s16 = sphi 0, %s20
      %p17 = scmp.ge.s32.totalorder %s16, 4
      %s26 = sphi 0, %s28
      %s29 = sphi 0, %s26
      %s30 = sphi 0, %s29
      %s46 = sphi 0, %s30
      %s50 = sphi 0, %s50
      %s52 = sphi 0, %s50
      %s53 = sphi 0, %s52
      %s67 = sphi 0, %s53
      %s71 = sphi 0, %s71
      %s73 = sphi 0, %s71
      %s74 = sphi 0, %s73
      %s88 = sphi 0, %s74
      %s92 = sphi 0, %s92
      %s94 = sphi 0, %s92
      %s95 = sphi 0, %s94
      %s109 = sphi 0, %s95
      %s113 = sphi 0, %s113
      %s115 = sphi 0, %s113
      %s116 = sphi 0, %s115
      %s130 = sphi 0, %s116
      %s134 = sphi 0, %s134
      %s136 = sphi 0, %s134
      %s137 = sphi 0, %s136
      %s151 = sphi 0, %s137
      %s155 = sphi 0, %s155
      %s157 = sphi 0, %s155
      %s158 = sphi 0, %s157
      %s172 = sphi 0, %s158
      %s178 = sphi 0, %s180
      %s181 = sphi 0, %s178
      %s182 = sphi 0, %s181
      %s198 = sphi 0, %s182
    $region4: #{tpu_custom_call.1} parent=1 // loop_header_branch
      %19 = sbr.rel (%p17) target = $region8
    $region5: #{tpu_custom_call.1} parent=1 // loop_body
      %s21 = ssub.s32 %s16, 1
      %s22 = ssub.s32 %s16, 2
      %s23 = sadd.s32 %s16, 1
      %s24 = ssub.s32 %s16, %s23
      %p25 = scmp.eq.s32.totalorder %s24, 0
      %s27 = sadd.s32 %s26, 1
      %s28 = scalar_select %p25, %s26, %s27
      %p31 = pneg %p25
      %p32 = scmp.eq.s32.totalorder %s16, 1
      %p33 = por %p31, %p32
      %p34 = scmp.ne.s32.totalorder %s26, %s29
      %p35 = scmp.eq.s32.totalorder %s16, 0
      %p36 = por %p34, %p35
      %p37 = scmp.ne.s32.totalorder %s26, %s29
      %p38 = scmp.eq.s32.totalorder %s21, 1
      %p39 = por %p37, %p38
      %p40 = scmp.ne.s32.totalorder %s29, %s30
      %p41 = scmp.eq.s32.totalorder %s21, 0
      %p42 = por %p40, %p41
      %p43 = scmp.ne.s32.totalorder %s29, %s30
      %p44 = scmp.eq.s32.totalorder %s22, 1
      %p45 = por %p43, %p44
      %p47 = scmp.ne.s32.totalorder %s30, %s46
      %p48 = scmp.eq.s32.totalorder %s22, 0
      %p49 = por %p47, %p48
      %s51 = sadd.s32 %s50, 1
      %p54 = scmp.eq.s32.totalorder %s16, 1
      %p55 = scmp.ne.s32.totalorder %s50, %s52
      %p56 = scmp.eq.s32.totalorder %s16, 0
      %p57 = por %p55, %p56
      %p58 = scmp.ne.s32.totalorder %s50, %s52
      %p59 = scmp.eq.s32.totalorder %s21, 1
      %p60 = por %p58, %p59
      %p61 = scmp.ne.s32.totalorder %s52, %s53
      %p62 = scmp.eq.s32.totalorder %s21, 0
      %p63 = por %p61, %p62
      %p64 = scmp.ne.s32.totalorder %s52, %s53
      %p65 = scmp.eq.s32.totalorder %s22, 1
      %p66 = por %p64, %p65
      %p68 = scmp.ne.s32.totalorder %s53, %s67
      %p69 = scmp.eq.s32.totalorder %s22, 0
      %p70 = por %p68, %p69
      %s72 = sadd.s32 %s71, 1
      %p75 = scmp.eq.s32.totalorder %s16, 1
      %p76 = scmp.ne.s32.totalorder %s71, %s73
      %p77 = scmp.eq.s32.totalorder %s16, 0
      %p78 = por %p76, %p77
      %p79 = scmp.ne.s32.totalorder %s71, %s73
      %p80 = scmp.eq.s32.totalorder %s21, 1
      %p81 = por %p79, %p80
      %p82 = scmp.ne.s32.totalorder %s73, %s74
      %p83 = scmp.eq.s32.totalorder %s21, 0
      %p84 = por %p82, %p83
      %p85 = scmp.ne.s32.totalorder %s73, %s74
      %p86 = scmp.eq.s32.totalorder %s22, 1
      %p87 = por %p85, %p86
      %p89 = scmp.ne.s32.totalorder %s74, %s88
      %p90 = scmp.eq.s32.totalorder %s22, 0
      %p91 = por %p89, %p90
      %s93 = sadd.s32 %s92, 1
      %p96 = scmp.eq.s32.totalorder %s16, 1
      %p97 = scmp.ne.s32.totalorder %s92, %s94
      %p98 = scmp.eq.s32.totalorder %s16, 0
      %p99 = por %p97, %p98
      %p100 = scmp.ne.s32.totalorder %s92, %s94
      %p101 = scmp.eq.s32.totalorder %s21, 1
      %p102 = por %p100, %p101
      %p103 = scmp.ne.s32.totalorder %s94, %s95
      %p104 = scmp.eq.s32.totalorder %s21, 0
      %p105 = por %p103, %p104
      %p106 = scmp.ne.s32.totalorder %s94, %s95
      %p107 = scmp.eq.s32.totalorder %s22, 1
      %p108 = por %p106, %p107
      %p110 = scmp.ne.s32.totalorder %s95, %s109
      %p111 = scmp.eq.s32.totalorder %s22, 0
      %p112 = por %p110, %p111
      %s114 = sadd.s32 %s113, 1
      %p117 = scmp.eq.s32.totalorder %s16, 1
      %p118 = scmp.ne.s32.totalorder %s113, %s115
      %p119 = scmp.eq.s32.totalorder %s16, 0
      %p120 = por %p118, %p119
      %p121 = scmp.ne.s32.totalorder %s113, %s115
      %p122 = scmp.eq.s32.totalorder %s21, 1
      %p123 = por %p121, %p122
      %p124 = scmp.ne.s32.totalorder %s115, %s116
      %p125 = scmp.eq.s32.totalorder %s21, 0
      %p126 = por %p124, %p125
      %p127 = scmp.ne.s32.totalorder %s115, %s116
      %p128 = scmp.eq.s32.totalorder %s22, 1
      %p129 = por %p127, %p128
      %p131 = scmp.ne.s32.totalorder %s116, %s130
      %p132 = scmp.eq.s32.totalorder %s22, 0
      %p133 = por %p131, %p132
      %s135 = sadd.s32 %s134, 1
      %p138 = scmp.eq.s32.totalorder %s16, 1
      %p139 = scmp.ne.s32.totalorder %s134, %s136
      %p140 = scmp.eq.s32.totalorder %s16, 0
      %p141 = por %p139, %p140
      %p142 = scmp.ne.s32.totalorder %s134, %s136
      %p143 = scmp.eq.s32.totalorder %s21, 1
      %p144 = por %p142, %p143
      %p145 = scmp.ne.s32.totalorder %s136, %s137
      %p146 = scmp.eq.s32.totalorder %s21, 0
      %p147 = por %p145, %p146
      %p148 = scmp.ne.s32.totalorder %s136, %s137
      %p149 = scmp.eq.s32.totalorder %s22, 1
      %p150 = por %p148, %p149
      %p152 = scmp.ne.s32.totalorder %s137, %s151
      %p153 = scmp.eq.s32.totalorder %s22, 0
      %p154 = por %p152, %p153
      %s156 = sadd.s32 %s155, 1
      %p159 = scmp.eq.s32.totalorder %s16, 1
      %p160 = scmp.ne.s32.totalorder %s155, %s157
      %p161 = scmp.eq.s32.totalorder %s16, 0
      %p162 = por %p160, %p161
      %p163 = scmp.ne.s32.totalorder %s155, %s157
      %p164 = scmp.eq.s32.totalorder %s21, 1
      %p165 = por %p163, %p164
      %p166 = scmp.ne.s32.totalorder %s157, %s158
      %p167 = scmp.eq.s32.totalorder %s21, 0
      %p168 = por %p166, %p167
      %p169 = scmp.ne.s32.totalorder %s157, %s158
      %p170 = scmp.eq.s32.totalorder %s22, 1
      %p171 = por %p169, %p170
      %p173 = scmp.ne.s32.totalorder %s158, %s172
      %p174 = scmp.eq.s32.totalorder %s22, 0
      %p175 = por %p173, %p174
      %s176 = ssub.s32 %s16, %s23
      %p177 = scmp.eq.s32.totalorder %s176, 0
      %s179 = sadd.s32 %s178, 1
      %s180 = scalar_select %p177, %s178, %s179
      %p183 = pneg %p177
      %p184 = scmp.eq.s32.totalorder %s16, 1
      %p185 = por %p183, %p184
      %p186 = scmp.ne.s32.totalorder %s178, %s181
      %p187 = scmp.eq.s32.totalorder %s16, 0
      %p188 = por %p186, %p187
      %p189 = scmp.ne.s32.totalorder %s178, %s181
      %p190 = scmp.eq.s32.totalorder %s21, 1
      %p191 = por %p189, %p190
      %p192 = scmp.ne.s32.totalorder %s181, %s182
      %p193 = scmp.eq.s32.totalorder %s21, 0
      %p194 = por %p192, %p193
      %p195 = scmp.ne.s32.totalorder %s181, %s182
      %p196 = scmp.eq.s32.totalorder %s22, 1
      %p197 = por %p195, %p196
      %p199 = scmp.ne.s32.totalorder %s182, %s198
      %p200 = scmp.eq.s32.totalorder %s22, 0
      %p201 = por %p199, %p200
      %p202 = scmp.le.s32.totalorder 1, %s16
      %p203 = scmp.lt.s32.totalorder %s16, 3
      %p204 = pnand %p202, %p203
      %p205 = pneg %p204
      // Predicated region
      $region9: #{tpu_custom_call.1} parent=5 // pred_check
        _
      $region10: #{tpu_custom_call.1} parent=5 // pred_check_branch
        %207 = sbr.rel (%p204) target = $region12
      $region11: #{tpu_custom_call.1} parent=5 // pred_region
        %s208 = ssub.s32 %s16, 1
        // Predicated region
        $region13: #{tpu_custom_call.1} parent=11 // pred_check
          %p209 = pneg %p63
        $region14: #{tpu_custom_call.1} parent=11 // pred_check_branch
          %211 = sbr.rel (%p209) target = $region16
        $region15: #{tpu_custom_call.1} parent=11 // pred_region
          _
        $region16: #{tpu_custom_call.1} parent=11 // pred_fallthru
          _
        // Predicated region
        $region17: #{tpu_custom_call.1} parent=11 // pred_check
          %p212 = pneg %p84
        $region18: #{tpu_custom_call.1} parent=11 // pred_check_branch
          %214 = sbr.rel (%p212) target = $region20
        $region19: #{tpu_custom_call.1} parent=11 // pred_region
          _
        $region20: #{tpu_custom_call.1} parent=11 // pred_fallthru
          _
        // Predicated region
        $region21: #{tpu_custom_call.1} parent=11 // pred_check
          %p215 = pneg %p105
        $region22: #{tpu_custom_call.1} parent=11 // pred_check_branch
          %217 = sbr.rel (%p215) target = $region24
        $region23: #{tpu_custom_call.1} parent=11 // pred_region
          _
        $region24: #{tpu_custom_call.1} parent=11 // pred_fallthru
          _
        // Predicated region
        $region25: #{tpu_custom_call.1} parent=11 // pred_check
          %p218 = pneg %p126
        $region26: #{tpu_custom_call.1} parent=11 // pred_check_branch
          %220 = sbr.rel (%p218) target = $region28
        $region27: #{tpu_custom_call.1} parent=11 // pred_region
          _
        $region28: #{tpu_custom_call.1} parent=11 // pred_fallthru
          _
        // Predicated region
        $region29: #{tpu_custom_call.1} parent=11 // pred_check
          %p221 = pneg %p147
        $region30: #{tpu_custom_call.1} parent=11 // pred_check_branch
          %223 = sbr.rel (%p221) target = $region32
        $region31: #{tpu_custom_call.1} parent=11 // pred_region
          _
        $region32: #{tpu_custom_call.1} parent=11 // pred_fallthru
          _
        // Predicated region
        $region33: #{tpu_custom_call.1} parent=11 // pred_check
          %p224 = pneg %p168
        $region34: #{tpu_custom_call.1} parent=11 // pred_check_branch
          %226 = sbr.rel (%p224) target = $region36
        $region35: #{tpu_custom_call.1} parent=11 // pred_region
          _
        $region36: #{tpu_custom_call.1} parent=11 // pred_fallthru
          _
      $region12: #{tpu_custom_call.1} parent=5 // pred_fallthru
        _
      %p227 = scmp.lt.s32.totalorder %s16, 2
      // Predicated region
      $region37: #{tpu_custom_call.1} parent=5 // pred_check
        %p228 = pneg %p227
      $region38: #{tpu_custom_call.1} parent=5 // pred_check_branch
        %230 = sbr.rel (%p228) target = $region40
      $region39: #{tpu_custom_call.1} parent=5 // pred_region
        // Predicated region
        $region41: #{tpu_custom_call.1} parent=39 // pred_check
          %p231 = pneg %p36
        $region42: #{tpu_custom_call.1} parent=39 // pred_check_branch
          %233 = sbr.rel (%p231) target = $region44
        $region43: #{tpu_custom_call.1} parent=39 // pred_region
          %s234 = smul.u32 4, %s16
          %p235 = scmp.lt.s32.totalorder %s234, 7
          %s236 = scalar_select %p235, %s234, 7
          %s237 = smul.addr %s236, 4
          %s238 = scalar_lea.vmem %s0, %s237
          %s239 = smul.u32 4, %s16
        $region44: #{tpu_custom_call.1} parent=39 // pred_fallthru
          _
      $region40: #{tpu_custom_call.1} parent=5 // pred_fallthru
        _
      %p240 = scmp.le.s32.totalorder 1, %s16
      %p241 = scmp.lt.s32.totalorder %s16, 3
      %p242 = pnand %p240, %p241
      %p243 = pneg %p242
      // Predicated region
      $region45: #{tpu_custom_call.1} parent=5 // pred_check
        _
      $region46: #{tpu_custom_call.1} parent=5 // pred_check_branch
        %245 = sbr.rel (%p242) target = $region48
      $region47: #{tpu_custom_call.1} parent=5 // pred_region
        %s246 = ssub.s32 %s16, 1
        %s247 = smul.u32 4, %s21
        %p248 = scmp.lt.s32.totalorder %s247, 7
        %s249 = scalar_select %p248, %s247, 7
        %s250 = smul.addr %s249, 4
        %s251 = scalar_lea.vmem %s0, %s250
        %p252 = pneg %p42
        %p253 = pneg %p39
        %p254 = pneg %p63
        %p255 = pneg %p60
        %p256 = pneg %p84
        %p257 = pneg %p81
        %p258 = pneg %p105
        %p259 = pneg %p102
        %p260 = pneg %p126
        %p261 = pneg %p123
        %p262 = pneg %p147
        %p263 = pneg %p144
        %p264 = pneg %p168
        %p265 = pneg %p165
        %p266 = pneg %p194
        %p267 = pneg %p191
        %s268 = sand.u32 %s181, 1
        %s269 = scalar_lea.sflag [#allocation3], %s268
        %s270 = sand.u32 %s181, 1
        %s271 = smul.addr %s270, 16
        %s272 = scalar_lea.vmem [#allocation2], %s271
        %s273 = smul.u32 4, %s21
        %p274 = scmp.lt.s32.totalorder %s273, 7
        %s275 = scalar_select %p274, %s273, 7
        %s276 = smul.addr %s275, 4
        %s277 = scalar_lea.vmem %s0, %s276
        %s278 = smul.u32 4, %s21
        %s279 = smul.u32 4, %s21
        %v280 = vld [vmem:[%s277] sm:$0x77]
        %v281 = vld [vmem:[%s277 + $0x8] sm:$0x77]
        %v282 = vld [vmem:[%s1] sm:$0xff]
        %v283 = vld [vmem:[%s1 + $0x8] sm:$0xff]
        %v284 = vld [vmem:[%s1 + $0x10] sm:$0xff]
        %v285 = vld [vmem:[%s1 + $0x18] sm:$0xff]
        %v286 = vld [vmem:[%s1 + $0x20] sm:$0xff]
        %v287 = vld [vmem:[%s1 + $0x28] sm:$0xff]
        %v288 = vld [vmem:[%s1 + $0x30] sm:$0xff]
        %v289 = vld [vmem:[%s1 + $0x38] sm:$0xff]
        %v290 = vld [vmem:[%s1 + $0x40] sm:$0xff]
        %v291 = vld [vmem:[%s1 + $0x48] sm:$0xff]
        %v292 = vld [vmem:[%s1 + $0x50] sm:$0xff]
        %v293 = vld [vmem:[%s1 + $0x58] sm:$0xff]
        %v294 = vld [vmem:[%s1 + $0x60] sm:$0xff]
        %v295 = vld [vmem:[%s1 + $0x68] sm:$0xff]
        %v296 = vld [vmem:[%s1 + $0x70] sm:$0xff]
        %v297 = vld [vmem:[%s1 + $0x78] sm:$0xff]
        %299 = vset.pattern.permute.xlu0 0
        %300 = vperm.xlu0 %299, %v282
        %v301 = vpop.permute.xlu0 %300
        %304 = vset.pattern.permute.xlu0 0
        %305 = vperm.xlu0 %304, %v283
        %v306 = vpop.permute.xlu0 %305
        %309 = vset.pattern.permute.xlu0 0
        %310 = vperm.xlu0 %309, %v284
        %v311 = vpop.permute.xlu0 %310
        %314 = vset.pattern.permute.xlu0 0
        %315 = vperm.xlu0 %314, %v285
        %v316 = vpop.permute.xlu0 %315
        %319 = vset.pattern.permute.xlu0 0
        %320 = vperm.xlu0 %319, %v286
        %v321 = vpop.permute.xlu0 %320
        %324 = vset.pattern.permute.xlu0 0
        %325 = vperm.xlu0 %324, %v287
        %v326 = vpop.permute.xlu0 %325
        %329 = vset.pattern.permute.xlu0 0
        %330 = vperm.xlu0 %329, %v288
        %v331 = vpop.permute.xlu0 %330
        %334 = vset.pattern.permute.xlu0 0
        %335 = vperm.xlu0 %334, %v289
        %v336 = vpop.permute.xlu0 %335
        %339 = vset.pattern.permute.xlu0 0
        %340 = vperm.xlu0 %339, %v290
        %v341 = vpop.permute.xlu0 %340
        %344 = vset.pattern.permute.xlu0 0
        %345 = vperm.xlu0 %344, %v291
        %v346 = vpop.permute.xlu0 %345
        %349 = vset.pattern.permute.xlu0 0
        %350 = vperm.xlu0 %349, %v292
        %v351 = vpop.permute.xlu0 %350
        %354 = vset.pattern.permute.xlu0 0
        %355 = vperm.xlu0 %354, %v293
        %v356 = vpop.permute.xlu0 %355
        %359 = vset.pattern.permute.xlu0 0
        %360 = vperm.xlu0 %359, %v294
        %v361 = vpop.permute.xlu0 %360
        %364 = vset.pattern.permute.xlu0 0
        %365 = vperm.xlu0 %364, %v295
        %v366 = vpop.permute.xlu0 %365
        %369 = vset.pattern.permute.xlu0 0
        %370 = vperm.xlu0 %369, %v296
        %v371 = vpop.permute.xlu0 %370
        %374 = vset.pattern.permute.xlu0 0
        %375 = vperm.xlu0 %374, %v297
        %v376 = vpop.permute.xlu0 %375
        %v380 = vperm.slane %v280, 0
        %v381 = vperm.slane %v280, 4
        %v382 = vperm.slane %v281, 0
        %v383 = vperm.slane %v281, 4
        %v388 = vperm.slane %v380, 0
        %v389 = vperm.slane %v381, 0
        %v390 = vperm.slane %v382, 0
        %v391 = vperm.slane %v383, 0
        %v392 = vmul.f32 %v301, %v388
        %v393 = vmul.f32 %v301, %v389
        %v394 = vmul.f32 %v301, %v390
        %v395 = vmul.f32 %v301, %v391
        %v396 = vmul.f32 %v306, %v388
        %v397 = vmul.f32 %v306, %v389
        %v398 = vmul.f32 %v306, %v390
        %v399 = vmul.f32 %v306, %v391
        %v400 = vmul.f32 %v311, %v388
        %v401 = vmul.f32 %v311, %v389
        %v402 = vmul.f32 %v311, %v390
        %v403 = vmul.f32 %v311, %v391
        %v404 = vmul.f32 %v316, %v388
        %v405 = vmul.f32 %v316, %v389
        %v406 = vmul.f32 %v316, %v390
        %v407 = vmul.f32 %v316, %v391
        %v408 = vmul.f32 %v321, %v388
        %v409 = vmul.f32 %v321, %v389
        %v410 = vmul.f32 %v321, %v390
        %v411 = vmul.f32 %v321, %v391
        %v412 = vmul.f32 %v326, %v388
        %v413 = vmul.f32 %v326, %v389
        %v414 = vmul.f32 %v326, %v390
        %v415 = vmul.f32 %v326, %v391
        %v416 = vmul.f32 %v331, %v388
        %v417 = vmul.f32 %v331, %v389
        %v418 = vmul.f32 %v331, %v390
        %v419 = vmul.f32 %v331, %v391
        %v420 = vmul.f32 %v336, %v388
        %v421 = vmul.f32 %v336, %v389
        %v422 = vmul.f32 %v336, %v390
        %v423 = vmul.f32 %v336, %v391
        %v424 = vmul.f32 %v341, %v388
        %v425 = vmul.f32 %v341, %v389
        %v426 = vmul.f32 %v341, %v390
        %v427 = vmul.f32 %v341, %v391
        %v428 = vmul.f32 %v346, %v388
        %v429 = vmul.f32 %v346, %v389
        %v430 = vmul.f32 %v346, %v390
        %v431 = vmul.f32 %v346, %v391
        %v432 = vmul.f32 %v351, %v388
        %v433 = vmul.f32 %v351, %v389
        %v434 = vmul.f32 %v351, %v390
        %v435 = vmul.f32 %v351, %v391
        %v436 = vmul.f32 %v356, %v388
        %v437 = vmul.f32 %v356, %v389
        %v438 = vmul.f32 %v356, %v390
        %v439 = vmul.f32 %v356, %v391
        %v440 = vmul.f32 %v361, %v388
        %v441 = vmul.f32 %v361, %v389
        %v442 = vmul.f32 %v361, %v390
        %v443 = vmul.f32 %v361, %v391
        %v444 = vmul.f32 %v366, %v388
        %v445 = vmul.f32 %v366, %v389
        %v446 = vmul.f32 %v366, %v390
        %v447 = vmul.f32 %v366, %v391
        %v448 = vmul.f32 %v371, %v388
        %v449 = vmul.f32 %v371, %v389
        %v450 = vmul.f32 %v371, %v390
        %v451 = vmul.f32 %v371, %v391
        %v452 = vmul.f32 %v376, %v388
        %v453 = vmul.f32 %v376, %v389
        %v454 = vmul.f32 %v376, %v390
        %v455 = vmul.f32 %v376, %v391
        %456 = vset.pattern.permute.xlu0 1
        %457 = vperm.xlu0 %456, %v282
        %v458 = vpop.permute.xlu0 %457
        %460 = vset.pattern.permute.xlu0 1
        %461 = vperm.xlu0 %460, %v283
        %v462 = vpop.permute.xlu0 %461
        %464 = vset.pattern.permute.xlu0 1
        %465 = vperm.xlu0 %464, %v284
        %v466 = vpop.permute.xlu0 %465
        %468 = vset.pattern.permute.xlu0 1
        %469 = vperm.xlu0 %468, %v285
        %v470 = vpop.permute.xlu0 %469
        %472 = vset.pattern.permute.xlu0 1
        %473 = vperm.xlu0 %472, %v286
        %v474 = vpop.permute.xlu0 %473
        %476 = vset.pattern.permute.xlu0 1
        %477 = vperm.xlu0 %476, %v287
        %v478 = vpop.permute.xlu0 %477
        %480 = vset.pattern.permute.xlu0 1
        %481 = vperm.xlu0 %480, %v288
        %v482 = vpop.permute.xlu0 %481
        %484 = vset.pattern.permute.xlu0 1
        %485 = vperm.xlu0 %484, %v289
        %v486 = vpop.permute.xlu0 %485
        %488 = vset.pattern.permute.xlu0 1
        %489 = vperm.xlu0 %488, %v290
        %v490 = vpop.permute.xlu0 %489
        %492 = vset.pattern.permute.xlu0 1
        %493 = vperm.xlu0 %492, %v291
        %v494 = vpop.permute.xlu0 %493
        %496 = vset.pattern.permute.xlu0 1
        %497 = vperm.xlu0 %496, %v292
        %v498 = vpop.permute.xlu0 %497
        %500 = vset.pattern.permute.xlu0 1
        %501 = vperm.xlu0 %500, %v293
        %v502 = vpop.permute.xlu0 %501
        %504 = vset.pattern.permute.xlu0 1
        %505 = vperm.xlu0 %504, %v294
        %v506 = vpop.permute.xlu0 %505
        %508 = vset.pattern.permute.xlu0 1
        %509 = vperm.xlu0 %508, %v295
        %v510 = vpop.permute.xlu0 %509
        %512 = vset.pattern.permute.xlu0 1
        %513 = vperm.xlu0 %512, %v296
        %v514 = vpop.permute.xlu0 %513
        %516 = vset.pattern.permute.xlu0 1
        %517 = vperm.xlu0 %516, %v297
        %v518 = vpop.permute.xlu0 %517
        %v520 = vperm.slane %v280, 1
        %v521 = vperm.slane %v280, 5
        %v522 = vperm.slane %v281, 1
        %v523 = vperm.slane %v281, 5
        %v528 = vperm.slane %v520, 1
        %v529 = vperm.slane %v521, 1
        %v530 = vperm.slane %v522, 1
        %v531 = vperm.slane %v523, 1
        %v532 = vmul.f32 %v458, %v528
        %v533 = vmul.f32 %v458, %v529
        %v534 = vmul.f32 %v458, %v530
        %v535 = vmul.f32 %v458, %v531
        %v536 = vmul.f32 %v462, %v528
        %v537 = vmul.f32 %v462, %v529
        %v538 = vmul.f32 %v462, %v530
        %v539 = vmul.f32 %v462, %v531
        %v540 = vmul.f32 %v466, %v528
        %v541 = vmul.f32 %v466, %v529
        %v542 = vmul.f32 %v466, %v530
        %v543 = vmul.f32 %v466, %v531
        %v544 = vmul.f32 %v470, %v528
        %v545 = vmul.f32 %v470, %v529
        %v546 = vmul.f32 %v470, %v530
        %v547 = vmul.f32 %v470, %v531
        %v548 = vmul.f32 %v474, %v528
        %v549 = vmul.f32 %v474, %v529
        %v550 = vmul.f32 %v474, %v530
        %v551 = vmul.f32 %v474, %v531
        %v552 = vmul.f32 %v478, %v528
        %v553 = vmul.f32 %v478, %v529
        %v554 = vmul.f32 %v478, %v530
        %v555 = vmul.f32 %v478, %v531
        %v556 = vmul.f32 %v482, %v528
        %v557 = vmul.f32 %v482, %v529
        %v558 = vmul.f32 %v482, %v530
        %v559 = vmul.f32 %v482, %v531
        %v560 = vmul.f32 %v486, %v528
        %v561 = vmul.f32 %v486, %v529
        %v562 = vmul.f32 %v486, %v530
        %v563 = vmul.f32 %v486, %v531
        %v564 = vmul.f32 %v490, %v528
        %v565 = vmul.f32 %v490, %v529
        %v566 = vmul.f32 %v490, %v530
        %v567 = vmul.f32 %v490, %v531
        %v568 = vmul.f32 %v494, %v528
        %v569 = vmul.f32 %v494, %v529
        %v570 = vmul.f32 %v494, %v530
        %v571 = vmul.f32 %v494, %v531
        %v572 = vmul.f32 %v498, %v528
        %v573 = vmul.f32 %v498, %v529
        %v574 = vmul.f32 %v498, %v530
        %v575 = vmul.f32 %v498, %v531
        %v576 = vmul.f32 %v502, %v528
        %v577 = vmul.f32 %v502, %v529
        %v578 = vmul.f32 %v502, %v530
        %v579 = vmul.f32 %v502, %v531
        %v580 = vmul.f32 %v506, %v528
        %v581 = vmul.f32 %v506, %v529
        %v582 = vmul.f32 %v506, %v530
        %v583 = vmul.f32 %v506, %v531
        %v584 = vmul.f32 %v510, %v528
        %v585 = vmul.f32 %v510, %v529
        %v586 = vmul.f32 %v510, %v530
        %v587 = vmul.f32 %v510, %v531
        %v588 = vmul.f32 %v514, %v528
        %v589 = vmul.f32 %v514, %v529
        %v590 = vmul.f32 %v514, %v530
        %v591 = vmul.f32 %v514, %v531
        %v592 = vmul.f32 %v518, %v528
        %v593 = vmul.f32 %v518, %v529
        %v594 = vmul.f32 %v518, %v530
        %v595 = vmul.f32 %v518, %v531
        %v596 = vadd.f32 %v392, %v532
        %v597 = vadd.f32 %v393, %v533
        %v598 = vadd.f32 %v394, %v534
        %v599 = vadd.f32 %v395, %v535
        %v600 = vadd.f32 %v396, %v536
        %v601 = vadd.f32 %v397, %v537
        %v602 = vadd.f32 %v398, %v538
        %v603 = vadd.f32 %v399, %v539
        %v604 = vadd.f32 %v400, %v540
        %v605 = vadd.f32 %v401, %v541
        %v606 = vadd.f32 %v402, %v542
        %v607 = vadd.f32 %v403, %v543
        %v608 = vadd.f32 %v404, %v544
        %v609 = vadd.f32 %v405, %v545
        %v610 = vadd.f32 %v406, %v546
        %v611 = vadd.f32 %v407, %v547
        %v612 = vadd.f32 %v408, %v548
        %v613 = vadd.f32 %v409, %v549
        %v614 = vadd.f32 %v410, %v550
        %v615 = vadd.f32 %v411, %v551
        %v616 = vadd.f32 %v412, %v552
        %v617 = vadd.f32 %v413, %v553
        %v618 = vadd.f32 %v414, %v554
        %v619 = vadd.f32 %v415, %v555
        %v620 = vadd.f32 %v416, %v556
        %v621 = vadd.f32 %v417, %v557
        %v622 = vadd.f32 %v418, %v558
        %v623 = vadd.f32 %v419, %v559
        %v624 = vadd.f32 %v420, %v560
        %v625 = vadd.f32 %v421, %v561
        %v626 = vadd.f32 %v422, %v562
        %v627 = vadd.f32 %v423, %v563
        %v628 = vadd.f32 %v424, %v564
        %v629 = vadd.f32 %v425, %v565
        %v630 = vadd.f32 %v426, %v566
        %v631 = vadd.f32 %v427, %v567
        %v632 = vadd.f32 %v428, %v568
        %v633 = vadd.f32 %v429, %v569
        %v634 = vadd.f32 %v430, %v570
        %v635 = vadd.f32 %v431, %v571
        %v636 = vadd.f32 %v432, %v572
        %v637 = vadd.f32 %v433, %v573
        %v638 = vadd.f32 %v434, %v574
        %v639 = vadd.f32 %v435, %v575
        %v640 = vadd.f32 %v436, %v576
        %v641 = vadd.f32 %v437, %v577
        %v642 = vadd.f32 %v438, %v578
        %v643 = vadd.f32 %v439, %v579
        %v644 = vadd.f32 %v440, %v580
        %v645 = vadd.f32 %v441, %v581
        %v646 = vadd.f32 %v442, %v582
        %v647 = vadd.f32 %v443, %v583
        %v648 = vadd.f32 %v444, %v584
        %v649 = vadd.f32 %v445, %v585
        %v650 = vadd.f32 %v446, %v586
        %v651 = vadd.f32 %v447, %v587
        %v652 = vadd.f32 %v448, %v588
        %v653 = vadd.f32 %v449, %v589
        %v654 = vadd.f32 %v450, %v590
        %v655 = vadd.f32 %v451, %v591
        %v656 = vadd.f32 %v452, %v592
        %v657 = vadd.f32 %v453, %v593
        %v658 = vadd.f32 %v454, %v594
        %v659 = vadd.f32 %v455, %v595
        %660 = vset.pattern.permute.xlu0 2
        %661 = vperm.xlu0 %660, %v282
        %v662 = vpop.permute.xlu0 %661
        %664 = vset.pattern.permute.xlu0 2
        %665 = vperm.xlu0 %664, %v283
        %v666 = vpop.permute.xlu0 %665
        %668 = vset.pattern.permute.xlu0 2
        %669 = vperm.xlu0 %668, %v284
        %v670 = vpop.permute.xlu0 %669
        %672 = vset.pattern.permute.xlu0 2
        %673 = vperm.xlu0 %672, %v285
        %v674 = vpop.permute.xlu0 %673
        %676 = vset.pattern.permute.xlu0 2
        %677 = vperm.xlu0 %676, %v286
        %v678 = vpop.permute.xlu0 %677
        %680 = vset.pattern.permute.xlu0 2
        %681 = vperm.xlu0 %680, %v287
        %v682 = vpop.permute.xlu0 %681
        %684 = vset.pattern.permute.xlu0 2
        %685 = vperm.xlu0 %684, %v288
        %v686 = vpop.permute.xlu0 %685
        %688 = vset.pattern.permute.xlu0 2
        %689 = vperm.xlu0 %688, %v289
        %v690 = vpop.permute.xlu0 %689
        %692 = vset.pattern.permute.xlu0 2
        %693 = vperm.xlu0 %692, %v290
        %v694 = vpop.permute.xlu0 %693
        %696 = vset.pattern.permute.xlu0 2
        %697 = vperm.xlu0 %696, %v291
        %v698 = vpop.permute.xlu0 %697
        %700 = vset.pattern.permute.xlu0 2
        %701 = vperm.xlu0 %700, %v292
        %v702 = vpop.permute.xlu0 %701
        %704 = vset.pattern.permute.xlu0 2
        %705 = vperm.xlu0 %704, %v293
        %v706 = vpop.permute.xlu0 %705
        %708 = vset.pattern.permute.xlu0 2
        %709 = vperm.xlu0 %708, %v294
        %v710 = vpop.permute.xlu0 %709
        %712 = vset.pattern.permute.xlu0 2
        %713 = vperm.xlu0 %712, %v295
        %v714 = vpop.permute.xlu0 %713
        %716 = vset.pattern.permute.xlu0 2
        %717 = vperm.xlu0 %716, %v296
        %v718 = vpop.permute.xlu0 %717
        %720 = vset.pattern.permute.xlu0 2
        %721 = vperm.xlu0 %720, %v297
        %v722 = vpop.permute.xlu0 %721
        %v724 = vperm.slane %v280, 2
        %v725 = vperm.slane %v280, 6
        %v726 = vperm.slane %v281, 2
        %v727 = vperm.slane %v281, 6
        %v732 = vperm.slane %v724, 2
        %v733 = vperm.slane %v725, 2
        %v734 = vperm.slane %v726, 2
        %v735 = vperm.slane %v727, 2
        %v736 = vmul.f32 %v662, %v732
        %v737 = vmul.f32 %v662, %v733
        %v738 = vmul.f32 %v662, %v734
        %v739 = vmul.f32 %v662, %v735
        %v740 = vmul.f32 %v666, %v732
        %v741 = vmul.f32 %v666, %v733
        %v742 = vmul.f32 %v666, %v734
        %v743 = vmul.f32 %v666, %v735
        %v744 = vmul.f32 %v670, %v732
        %v745 = vmul.f32 %v670, %v733
        %v746 = vmul.f32 %v670, %v734
        %v747 = vmul.f32 %v670, %v735
        %v748 = vmul.f32 %v674, %v732
        %v749 = vmul.f32 %v674, %v733
        %v750 = vmul.f32 %v674, %v734
        %v751 = vmul.f32 %v674, %v735
        %v752 = vmul.f32 %v678, %v732
        %v753 = vmul.f32 %v678, %v733
        %v754 = vmul.f32 %v678, %v734
        %v755 = vmul.f32 %v678, %v735
        %v756 = vmul.f32 %v682, %v732
        %v757 = vmul.f32 %v682, %v733
        %v758 = vmul.f32 %v682, %v734
        %v759 = vmul.f32 %v682, %v735
        %v760 = vmul.f32 %v686, %v732
        %v761 = vmul.f32 %v686, %v733
        %v762 = vmul.f32 %v686, %v734
        %v763 = vmul.f32 %v686, %v735
        %v764 = vmul.f32 %v690, %v732
        %v765 = vmul.f32 %v690, %v733
        %v766 = vmul.f32 %v690, %v734
        %v767 = vmul.f32 %v690, %v735
        %v768 = vmul.f32 %v694, %v732
        %v769 = vmul.f32 %v694, %v733
        %v770 = vmul.f32 %v694, %v734
        %v771 = vmul.f32 %v694, %v735
        %v772 = vmul.f32 %v698, %v732
        %v773 = vmul.f32 %v698, %v733
        %v774 = vmul.f32 %v698, %v734
        %v775 = vmul.f32 %v698, %v735
        %v776 = vmul.f32 %v702, %v732
        %v777 = vmul.f32 %v702, %v733
        %v778 = vmul.f32 %v702, %v734
        %v779 = vmul.f32 %v702, %v735
        %v780 = vmul.f32 %v706, %v732
        %v781 = vmul.f32 %v706, %v733
        %v782 = vmul.f32 %v706, %v734
        %v783 = vmul.f32 %v706, %v735
        %v784 = vmul.f32 %v710, %v732
        %v785 = vmul.f32 %v710, %v733
        %v786 = vmul.f32 %v710, %v734
        %v787 = vmul.f32 %v710, %v735
        %v788 = vmul.f32 %v714, %v732
        %v789 = vmul.f32 %v714, %v733
        %v790 = vmul.f32 %v714, %v734
        %v791 = vmul.f32 %v714, %v735
        %v792 = vmul.f32 %v718, %v732
        %v793 = vmul.f32 %v718, %v733
        %v794 = vmul.f32 %v718, %v734
        %v795 = vmul.f32 %v718, %v735
        %v796 = vmul.f32 %v722, %v732
        %v797 = vmul.f32 %v722, %v733
        %v798 = vmul.f32 %v722, %v734
        %v799 = vmul.f32 %v722, %v735
        %v800 = vadd.f32 %v596, %v736
        %v801 = vadd.f32 %v597, %v737
        %v802 = vadd.f32 %v598, %v738
        %v803 = vadd.f32 %v599, %v739
        %v804 = vadd.f32 %v600, %v740
        %v805 = vadd.f32 %v601, %v741
        %v806 = vadd.f32 %v602, %v742
        %v807 = vadd.f32 %v603, %v743
        %v808 = vadd.f32 %v604, %v744
        %v809 = vadd.f32 %v605, %v745
        %v810 = vadd.f32 %v606, %v746
        %v811 = vadd.f32 %v607, %v747
        %v812 = vadd.f32 %v608, %v748
        %v813 = vadd.f32 %v609, %v749
        %v814 = vadd.f32 %v610, %v750
        %v815 = vadd.f32 %v611, %v751
        %v816 = vadd.f32 %v612, %v752
        %v817 = vadd.f32 %v613, %v753
        %v818 = vadd.f32 %v614, %v754
        %v819 = vadd.f32 %v615, %v755
        %v820 = vadd.f32 %v616, %v756
        %v821 = vadd.f32 %v617, %v757
        %v822 = vadd.f32 %v618, %v758
        %v823 = vadd.f32 %v619, %v759
        %v824 = vadd.f32 %v620, %v760
        %v825 = vadd.f32 %v621, %v761
        %v826 = vadd.f32 %v622, %v762
        %v827 = vadd.f32 %v623, %v763
        %v828 = vadd.f32 %v624, %v764
        %v829 = vadd.f32 %v625, %v765
        %v830 = vadd.f32 %v626, %v766
        %v831 = vadd.f32 %v627, %v767
        %v832 = vadd.f32 %v628, %v768
        %v833 = vadd.f32 %v629, %v769
        %v834 = vadd.f32 %v630, %v770
        %v835 = vadd.f32 %v631, %v771
        %v836 = vadd.f32 %v632, %v772
        %v837 = vadd.f32 %v633, %v773
        %v838 = vadd.f32 %v634, %v774
        %v839 = vadd.f32 %v635, %v775
        %v840 = vadd.f32 %v636, %v776
        %v841 = vadd.f32 %v637, %v777
        %v842 = vadd.f32 %v638, %v778
        %v843 = vadd.f32 %v639, %v779
        %v844 = vadd.f32 %v640, %v780
        %v845 = vadd.f32 %v641, %v781
        %v846 = vadd.f32 %v642, %v782
        %v847 = vadd.f32 %v643, %v783
        %v848 = vadd.f32 %v644, %v784
        %v849 = vadd.f32 %v645, %v785
        %v850 = vadd.f32 %v646, %v786
        %v851 = vadd.f32 %v647, %v787
        %v852 = vadd.f32 %v648, %v788
        %v853 = vadd.f32 %v649, %v789
        %v854 = vadd.f32 %v650, %v790
        %v855 = vadd.f32 %v651, %v791
        %v856 = vadd.f32 %v652, %v792
        %v857 = vadd.f32 %v653, %v793
        %v858 = vadd.f32 %v654, %v794
        %v859 = vadd.f32 %v655, %v795
        %v860 = vadd.f32 %v656, %v796
        %v861 = vadd.f32 %v657, %v797
        %v862 = vadd.f32 %v658, %v798
        %v863 = vadd.f32 %v659, %v799
        %v864 = vld [vmem:[%s2] sm:$0xff]
        %v865 = vld [vmem:[%s2 + $0x8] sm:$0xff]
        %v866 = vld [vmem:[%s2 + $0x10] sm:$0xff]
        %v867 = vld [vmem:[%s2 + $0x18] sm:$0xff]
        %v868 = vld [vmem:[%s2 + $0x20] sm:$0xff]
        %v869 = vld [vmem:[%s2 + $0x28] sm:$0xff]
        %v870 = vld [vmem:[%s2 + $0x30] sm:$0xff]
        %v871 = vld [vmem:[%s2 + $0x38] sm:$0xff]
        %v872 = vld [vmem:[%s2 + $0x40] sm:$0xff]
        %v873 = vld [vmem:[%s2 + $0x48] sm:$0xff]
        %v874 = vld [vmem:[%s2 + $0x50] sm:$0xff]
        %v875 = vld [vmem:[%s2 + $0x58] sm:$0xff]
        %v876 = vld [vmem:[%s2 + $0x60] sm:$0xff]
        %v877 = vld [vmem:[%s2 + $0x68] sm:$0xff]
        %v878 = vld [vmem:[%s2 + $0x70] sm:$0xff]
        %v879 = vld [vmem:[%s2 + $0x78] sm:$0xff]
        %881 = vset.pattern.permute.xlu0 0
        %882 = vperm.xlu0 %881, %v864
        %v883 = vpop.permute.xlu0 %882
        %886 = vset.pattern.permute.xlu0 0
        %887 = vperm.xlu0 %886, %v865
        %v888 = vpop.permute.xlu0 %887
        %891 = vset.pattern.permute.xlu0 0
        %892 = vperm.xlu0 %891, %v866
        %v893 = vpop.permute.xlu0 %892
        %896 = vset.pattern.permute.xlu0 0
        %897 = vperm.xlu0 %896, %v867
        %v898 = vpop.permute.xlu0 %897
        %901 = vset.pattern.permute.xlu0 0
        %902 = vperm.xlu0 %901, %v868
        %v903 = vpop.permute.xlu0 %902
        %906 = vset.pattern.permute.xlu0 0
        %907 = vperm.xlu0 %906, %v869
        %v908 = vpop.permute.xlu0 %907
        %911 = vset.pattern.permute.xlu0 0
        %912 = vperm.xlu0 %911, %v870
        %v913 = vpop.permute.xlu0 %912
        %916 = vset.pattern.permute.xlu0 0
        %917 = vperm.xlu0 %916, %v871
        %v918 = vpop.permute.xlu0 %917
        %921 = vset.pattern.permute.xlu0 0
        %922 = vperm.xlu0 %921, %v872
        %v923 = vpop.permute.xlu0 %922
        %926 = vset.pattern.permute.xlu0 0
        %927 = vperm.xlu0 %926, %v873
        %v928 = vpop.permute.xlu0 %927
        %931 = vset.pattern.permute.xlu0 0
        %932 = vperm.xlu0 %931, %v874
        %v933 = vpop.permute.xlu0 %932
        %936 = vset.pattern.permute.xlu0 0
        %937 = vperm.xlu0 %936, %v875
        %v938 = vpop.permute.xlu0 %937
        %941 = vset.pattern.permute.xlu0 0
        %942 = vperm.xlu0 %941, %v876
        %v943 = vpop.permute.xlu0 %942
        %946 = vset.pattern.permute.xlu0 0
        %947 = vperm.xlu0 %946, %v877
        %v948 = vpop.permute.xlu0 %947
        %951 = vset.pattern.permute.xlu0 0
        %952 = vperm.xlu0 %951, %v878
        %v953 = vpop.permute.xlu0 %952
        %956 = vset.pattern.permute.xlu0 0
        %957 = vperm.xlu0 %956, %v879
        %v958 = vpop.permute.xlu0 %957
        %v960 = vadd.f32 %v800, %v883
        %v961 = vadd.f32 %v801, %v883
        %v962 = vadd.f32 %v802, %v883
        %v963 = vadd.f32 %v803, %v883
        %v964 = vadd.f32 %v804, %v888
        %v965 = vadd.f32 %v805, %v888
        %v966 = vadd.f32 %v806, %v888
        %v967 = vadd.f32 %v807, %v888
        %v968 = vadd.f32 %v808, %v893
        %v969 = vadd.f32 %v809, %v893
        %v970 = vadd.f32 %v810, %v893
        %v971 = vadd.f32 %v811, %v893
        %v972 = vadd.f32 %v812, %v898
        %v973 = vadd.f32 %v813, %v898
        %v974 = vadd.f32 %v814, %v898
        %v975 = vadd.f32 %v815, %v898
        %v976 = vadd.f32 %v816, %v903
        %v977 = vadd.f32 %v817, %v903
        %v978 = vadd.f32 %v818, %v903
        %v979 = vadd.f32 %v819, %v903
        %v980 = vadd.f32 %v820, %v908
        %v981 = vadd.f32 %v821, %v908
        %v982 = vadd.f32 %v822, %v908
        %v983 = vadd.f32 %v823, %v908
        %v984 = vadd.f32 %v824, %v913
        %v985 = vadd.f32 %v825, %v913
        %v986 = vadd.f32 %v826, %v913
        %v987 = vadd.f32 %v827, %v913
        %v988 = vadd.f32 %v828, %v918
        %v989 = vadd.f32 %v829, %v918
        %v990 = vadd.f32 %v830, %v918
        %v991 = vadd.f32 %v831, %v918
        %v992 = vadd.f32 %v832, %v923
        %v993 = vadd.f32 %v833, %v923
        %v994 = vadd.f32 %v834, %v923
        %v995 = vadd.f32 %v835, %v923
        %v996 = vadd.f32 %v836, %v928
        %v997 = vadd.f32 %v837, %v928
        %v998 = vadd.f32 %v838, %v928
        %v999 = vadd.f32 %v839, %v928
        %v1000 = vadd.f32 %v840, %v933
        %v1001 = vadd.f32 %v841, %v933
        %v1002 = vadd.f32 %v842, %v933
        %v1003 = vadd.f32 %v843, %v933
        %v1004 = vadd.f32 %v844, %v938
        %v1005 = vadd.f32 %v845, %v938
        %v1006 = vadd.f32 %v846, %v938
        %v1007 = vadd.f32 %v847, %v938
        %v1008 = vadd.f32 %v848, %v943
        %v1009 = vadd.f32 %v849, %v943
        %v1010 = vadd.f32 %v850, %v943
        %v1011 = vadd.f32 %v851, %v943
        %v1012 = vadd.f32 %v852, %v948
        %v1013 = vadd.f32 %v853, %v948
        %v1014 = vadd.f32 %v854, %v948
        %v1015 = vadd.f32 %v855, %v948
        %v1016 = vadd.f32 %v856, %v953
        %v1017 = vadd.f32 %v857, %v953
        %v1018 = vadd.f32 %v858, %v953
        %v1019 = vadd.f32 %v859, %v953
        %v1020 = vadd.f32 %v860, %v958
        %v1021 = vadd.f32 %v861, %v958
        %v1022 = vadd.f32 %v862, %v958
        %v1023 = vadd.f32 %v863, %v958
        %v1024 = vmax.f32 %v960, 0.0
        %v1025 = vmax.f32 %v961, 0.0
        %v1026 = vmax.f32 %v962, 0.0
        %v1027 = vmax.f32 %v963, 0.0
        %v1028 = vmax.f32 %v964, 0.0
        %v1029 = vmax.f32 %v965, 0.0
        %v1030 = vmax.f32 %v966, 0.0
        %v1031 = vmax.f32 %v967, 0.0
        %v1032 = vmax.f32 %v968, 0.0
        %v1033 = vmax.f32 %v969, 0.0
        %v1034 = vmax.f32 %v970, 0.0
        %v1035 = vmax.f32 %v971, 0.0
        %v1036 = vmax.f32 %v972, 0.0
        %v1037 = vmax.f32 %v973, 0.0
        %v1038 = vmax.f32 %v974, 0.0
        %v1039 = vmax.f32 %v975, 0.0
        %v1040 = vmax.f32 %v976, 0.0
        %v1041 = vmax.f32 %v977, 0.0
        %v1042 = vmax.f32 %v978, 0.0
        %v1043 = vmax.f32 %v979, 0.0
        %v1044 = vmax.f32 %v980, 0.0
        %v1045 = vmax.f32 %v981, 0.0
        %v1046 = vmax.f32 %v982, 0.0
        %v1047 = vmax.f32 %v983, 0.0
        %v1048 = vmax.f32 %v984, 0.0
        %v1049 = vmax.f32 %v985, 0.0
        %v1050 = vmax.f32 %v986, 0.0
        %v1051 = vmax.f32 %v987, 0.0
        %v1052 = vmax.f32 %v988, 0.0
        %v1053 = vmax.f32 %v989, 0.0
        %v1054 = vmax.f32 %v990, 0.0
        %v1055 = vmax.f32 %v991, 0.0
        %v1056 = vmax.f32 %v992, 0.0
        %v1057 = vmax.f32 %v993, 0.0
        %v1058 = vmax.f32 %v994, 0.0
        %v1059 = vmax.f32 %v995, 0.0
        %v1060 = vmax.f32 %v996, 0.0
        %v1061 = vmax.f32 %v997, 0.0
        %v1062 = vmax.f32 %v998, 0.0
        %v1063 = vmax.f32 %v999, 0.0
        %v1064 = vmax.f32 %v1000, 0.0
        %v1065 = vmax.f32 %v1001, 0.0
        %v1066 = vmax.f32 %v1002, 0.0
        %v1067 = vmax.f32 %v1003, 0.0
        %v1068 = vmax.f32 %v1004, 0.0
        %v1069 = vmax.f32 %v1005, 0.0
        %v1070 = vmax.f32 %v1006, 0.0
        %v1071 = vmax.f32 %v1007, 0.0
        %v1072 = vmax.f32 %v1008, 0.0
        %v1073 = vmax.f32 %v1009, 0.0
        %v1074 = vmax.f32 %v1010, 0.0
        %v1075 = vmax.f32 %v1011, 0.0
        %v1076 = vmax.f32 %v1012, 0.0
        %v1077 = vmax.f32 %v1013, 0.0
        %v1078 = vmax.f32 %v1014, 0.0
        %v1079 = vmax.f32 %v1015, 0.0
        %v1080 = vmax.f32 %v1016, 0.0
        %v1081 = vmax.f32 %v1017, 0.0
        %v1082 = vmax.f32 %v1018, 0.0
        %v1083 = vmax.f32 %v1019, 0.0
        %v1084 = vmax.f32 %v1020, 0.0
        %v1085 = vmax.f32 %v1021, 0.0
        %v1086 = vmax.f32 %v1022, 0.0
        %v1087 = vmax.f32 %v1023, 0.0
        %v1088 = vld [vmem:[%s3] sm:$0xff]
        %v1089 = vld [vmem:[%s3 + $0x8] sm:$0xff]
        %v1090 = vld [vmem:[%s3 + $0x10] sm:$0xff]
        %v1091 = vld [vmem:[%s3 + $0x18] sm:$0xff]
        %v1092 = vld [vmem:[%s3 + $0x20] sm:$0xff]
        %v1093 = vld [vmem:[%s3 + $0x28] sm:$0xff]
        %v1094 = vld [vmem:[%s3 + $0x30] sm:$0xff]
        %v1095 = vld [vmem:[%s3 + $0x38] sm:$0xff]
        %v1096 = vld [vmem:[%s3 + $0x40] sm:$0xff]
        %v1097 = vld [vmem:[%s3 + $0x48] sm:$0xff]
        %v1098 = vld [vmem:[%s3 + $0x50] sm:$0xff]
        %v1099 = vld [vmem:[%s3 + $0x58] sm:$0xff]
        %v1100 = vld [vmem:[%s3 + $0x60] sm:$0xff]
        %v1101 = vld [vmem:[%s3 + $0x68] sm:$0xff]
        %v1102 = vld [vmem:[%s3 + $0x70] sm:$0xff]
        %v1103 = vld [vmem:[%s3 + $0x78] sm:$0xff]
        %v1104 = vld [vmem:[%s4] sm:$0xff]
        %v1105 = vld [vmem:[%s4 + $0x8] sm:$0xff]
        %v1106 = vld [vmem:[%s4 + $0x10] sm:$0xff]
        %v1107 = vld [vmem:[%s4 + $0x18] sm:$0xff]
        %v1108 = vld [vmem:[%s4 + $0x20] sm:$0xff]
        %v1109 = vld [vmem:[%s4 + $0x28] sm:$0xff]
        %v1110 = vld [vmem:[%s4 + $0x30] sm:$0xff]
        %v1111 = vld [vmem:[%s4 + $0x38] sm:$0xff]
        %v1112 = vld [vmem:[%s4 + $0x40] sm:$0xff]
        %v1113 = vld [vmem:[%s4 + $0x48] sm:$0xff]
        %v1114 = vld [vmem:[%s4 + $0x50] sm:$0xff]
        %v1115 = vld [vmem:[%s4 + $0x58] sm:$0xff]
        %v1116 = vld [vmem:[%s4 + $0x60] sm:$0xff]
        %v1117 = vld [vmem:[%s4 + $0x68] sm:$0xff]
        %v1118 = vld [vmem:[%s4 + $0x70] sm:$0xff]
        %v1119 = vld [vmem:[%s4 + $0x78] sm:$0xff]
        %1121 = vset.pattern.permute.xlu0 0
        %1122 = vperm.xlu0 %1121, %v1104
        %v1123 = vpop.permute.xlu0 %1122
        %1126 = vset.pattern.permute.xlu0 0
        %1127 = vperm.xlu0 %1126, %v1105
        %v1128 = vpop.permute.xlu0 %1127
        %1131 = vset.pattern.permute.xlu0 0
        %1132 = vperm.xlu0 %1131, %v1106
        %v1133 = vpop.permute.xlu0 %1132
        %1136 = vset.pattern.permute.xlu0 0
        %1137 = vperm.xlu0 %1136, %v1107
        %v1138 = vpop.permute.xlu0 %1137
        %1141 = vset.pattern.permute.xlu0 0
        %1142 = vperm.xlu0 %1141, %v1108
        %v1143 = vpop.permute.xlu0 %1142
        %1146 = vset.pattern.permute.xlu0 0
        %1147 = vperm.xlu0 %1146, %v1109
        %v1148 = vpop.permute.xlu0 %1147
        %1151 = vset.pattern.permute.xlu0 0
        %1152 = vperm.xlu0 %1151, %v1110
        %v1153 = vpop.permute.xlu0 %1152
        %1156 = vset.pattern.permute.xlu0 0
        %1157 = vperm.xlu0 %1156, %v1111
        %v1158 = vpop.permute.xlu0 %1157
        %1161 = vset.pattern.permute.xlu0 0
        %1162 = vperm.xlu0 %1161, %v1112
        %v1163 = vpop.permute.xlu0 %1162
        %1166 = vset.pattern.permute.xlu0 0
        %1167 = vperm.xlu0 %1166, %v1113
        %v1168 = vpop.permute.xlu0 %1167
        %1171 = vset.pattern.permute.xlu0 0
        %1172 = vperm.xlu0 %1171, %v1114
        %v1173 = vpop.permute.xlu0 %1172
        %1176 = vset.pattern.permute.xlu0 0
        %1177 = vperm.xlu0 %1176, %v1115
        %v1178 = vpop.permute.xlu0 %1177
        %1181 = vset.pattern.permute.xlu0 0
        %1182 = vperm.xlu0 %1181, %v1116
        %v1183 = vpop.permute.xlu0 %1182
        %1186 = vset.pattern.permute.xlu0 0
        %1187 = vperm.xlu0 %1186, %v1117
        %v1188 = vpop.permute.xlu0 %1187
        %1191 = vset.pattern.permute.xlu0 0
        %1192 = vperm.xlu0 %1191, %v1118
        %v1193 = vpop.permute.xlu0 %1192
        %1196 = vset.pattern.permute.xlu0 0
        %1197 = vperm.xlu0 %1196, %v1119
        %v1198 = vpop.permute.xlu0 %1197
        %1200 = vmatpush.msra.mxu0 %v1084
        %1201 = vmatpush.msra.mxu0 %v1080
        %1202 = vmatpush.msra.mxu0 %v1076
        %1203 = vmatpush.msra.mxu0 %v1072
        %1204 = vmatpush.msra.mxu0 %v1068
        %1205 = vmatpush.msra.mxu0 %v1064
        %1206 = vmatpush.msra.mxu0 %v1060
        %1207 = vmatpush.msra.mxu0 %v1056
        %1208 = vmatpush.msra.mxu0 %v1052
        %1209 = vmatpush.msra.mxu0 %v1048
        %1210 = vmatpush.msra.mxu0 %v1044
        %1211 = vmatpush.msra.mxu0 %v1040
        %1212 = vmatpush.msra.mxu0 %v1036
        %1213 = vmatpush.msra.mxu0 %v1032
        %1214 = vmatpush.msra.mxu0 %v1028
        %1215 = vmatpush.msra.mxu0 %v1024
        %1216 = vmatmul.f32.gmra.mxu0 %v1088
        %v1217 = vpop.f32.mrf.mxu0
        %v1218 = vadd.f32 %v1123, %v1217
        %1219 = vmatmul.f32.gmra.mxu0 %v1089
        %v1220 = vpop.f32.mrf.mxu0
        %v1221 = vadd.f32 %v1128, %v1220
        %1222 = vmatmul.f32.gmra.mxu0 %v1090
        %v1223 = vpop.f32.mrf.mxu0
        %v1224 = vadd.f32 %v1133, %v1223
        %1225 = vmatmul.f32.gmra.mxu0 %v1091
        %v1226 = vpop.f32.mrf.mxu0
        %v1227 = vadd.f32 %v1138, %v1226
        %1228 = vmatmul.f32.gmra.mxu0 %v1092
        %v1229 = vpop.f32.mrf.mxu0
        %v1230 = vadd.f32 %v1143, %v1229
        %1231 = vmatmul.f32.gmra.mxu0 %v1093
        %v1232 = vpop.f32.mrf.mxu0
        %v1233 = vadd.f32 %v1148, %v1232
        %1234 = vmatmul.f32.gmra.mxu0 %v1094
        %v1235 = vpop.f32.mrf.mxu0
        %v1236 = vadd.f32 %v1153, %v1235
        %1237 = vmatmul.f32.gmra.mxu0 %v1095
        %v1238 = vpop.f32.mrf.mxu0
        %v1239 = vadd.f32 %v1158, %v1238
        %1240 = vmatmul.f32.gmra.mxu0 %v1096
        %v1241 = vpop.f32.mrf.mxu0
        %v1242 = vadd.f32 %v1163, %v1241
        %1243 = vmatmul.f32.gmra.mxu0 %v1097
        %v1244 = vpop.f32.mrf.mxu0
        %v1245 = vadd.f32 %v1168, %v1244
        %1246 = vmatmul.f32.gmra.mxu0 %v1098
        %v1247 = vpop.f32.mrf.mxu0
        %v1248 = vadd.f32 %v1173, %v1247
        %1249 = vmatmul.f32.gmra.mxu0 %v1099
        %v1250 = vpop.f32.mrf.mxu0
        %v1251 = vadd.f32 %v1178, %v1250
        %1252 = vmatmul.f32.gmra.mxu0 %v1100
        %v1253 = vpop.f32.mrf.mxu0
        %v1254 = vadd.f32 %v1183, %v1253
        %1255 = vmatmul.f32.gmra.mxu0 %v1101
        %v1256 = vpop.f32.mrf.mxu0
        %v1257 = vadd.f32 %v1188, %v1256
        %1258 = vmatmul.f32.gmra.mxu0 %v1102
        %v1259 = vpop.f32.mrf.mxu0
        %v1260 = vadd.f32 %v1193, %v1259
        %1261 = vmatmul.f32.gmra.mxu0 %v1103
        %v1262 = vpop.f32.mrf.mxu0
        %v1263 = vadd.f32 %v1198, %v1262
        %1264 = vdwg.mxu0
        %1265 = vmatpush.msra.mxu0 %v1085
        %1266 = vmatpush.msra.mxu0 %v1081
        %1267 = vmatpush.msra.mxu0 %v1077
        %1268 = vmatpush.msra.mxu0 %v1073
        %1269 = vmatpush.msra.mxu0 %v1069
        %1270 = vmatpush.msra.mxu0 %v1065
        %1271 = vmatpush.msra.mxu0 %v1061
        %1272 = vmatpush.msra.mxu0 %v1057
        %1273 = vmatpush.msra.mxu0 %v1053
        %1274 = vmatpush.msra.mxu0 %v1049
        %1275 = vmatpush.msra.mxu0 %v1045
        %1276 = vmatpush.msra.mxu0 %v1041
        %1277 = vmatpush.msra.mxu0 %v1037
        %1278 = vmatpush.msra.mxu0 %v1033
        %1279 = vmatpush.msra.mxu0 %v1029
        %1280 = vmatpush.msra.mxu0 %v1025
        %1281 = vmatmul.f32.gmra.mxu0 %v1088
        %v1282 = vpop.f32.mrf.mxu0
        %v1283 = vadd.f32 %v1123, %v1282
        %1284 = vmatmul.f32.gmra.mxu0 %v1089
        %v1285 = vpop.f32.mrf.mxu0
        %v1286 = vadd.f32 %v1128, %v1285
        %1287 = vmatmul.f32.gmra.mxu0 %v1090
        %v1288 = vpop.f32.mrf.mxu0
        %v1289 = vadd.f32 %v1133, %v1288
        %1290 = vmatmul.f32.gmra.mxu0 %v1091
        %v1291 = vpop.f32.mrf.mxu0
        %v1292 = vadd.f32 %v1138, %v1291
        %1293 = vmatmul.f32.gmra.mxu0 %v1092
        %v1294 = vpop.f32.mrf.mxu0
        %v1295 = vadd.f32 %v1143, %v1294
        %1296 = vmatmul.f32.gmra.mxu0 %v1093
        %v1297 = vpop.f32.mrf.mxu0
        %v1298 = vadd.f32 %v1148, %v1297
        %1299 = vmatmul.f32.gmra.mxu0 %v1094
        %v1300 = vpop.f32.mrf.mxu0
        %v1301 = vadd.f32 %v1153, %v1300
        %1302 = vmatmul.f32.gmra.mxu0 %v1095
        %v1303 = vpop.f32.mrf.mxu0
        %v1304 = vadd.f32 %v1158, %v1303
        %1305 = vmatmul.f32.gmra.mxu0 %v1096
        %v1306 = vpop.f32.mrf.mxu0
        %v1307 = vadd.f32 %v1163, %v1306
        %1308 = vmatmul.f32.gmra.mxu0 %v1097
        %v1309 = vpop.f32.mrf.mxu0
        %v1310 = vadd.f32 %v1168, %v1309
        %1311 = vmatmul.f32.gmra.mxu0 %v1098
        %v1312 = vpop.f32.mrf.mxu0
        %v1313 = vadd.f32 %v1173, %v1312
        %1314 = vmatmul.f32.gmra.mxu0 %v1099
        %v1315 = vpop.f32.mrf.mxu0
        %v1316 = vadd.f32 %v1178, %v1315
        %1317 = vmatmul.f32.gmra.mxu0 %v1100
        %v1318 = vpop.f32.mrf.mxu0
        %v1319 = vadd.f32 %v1183, %v1318
        %1320 = vmatmul.f32.gmra.mxu0 %v1101
        %v1321 = vpop.f32.mrf.mxu0
        %v1322 = vadd.f32 %v1188, %v1321
        %1323 = vmatmul.f32.gmra.mxu0 %v1102
        %v1324 = vpop.f32.mrf.mxu0
        %v1325 = vadd.f32 %v1193, %v1324
        %1326 = vmatmul.f32.gmra.mxu0 %v1103
        %v1327 = vpop.f32.mrf.mxu0
        %v1328 = vadd.f32 %v1198, %v1327
        %1329 = vdwg.mxu0
        %1330 = vmatpush.msra.mxu0 %v1086
        %1331 = vmatpush.msra.mxu0 %v1082
        %1332 = vmatpush.msra.mxu0 %v1078
        %1333 = vmatpush.msra.mxu0 %v1074
        %1334 = vmatpush.msra.mxu0 %v1070
        %1335 = vmatpush.msra.mxu0 %v1066
        %1336 = vmatpush.msra.mxu0 %v1062
        %1337 = vmatpush.msra.mxu0 %v1058
        %1338 = vmatpush.msra.mxu0 %v1054
        %1339 = vmatpush.msra.mxu0 %v1050
        %1340 = vmatpush.msra.mxu0 %v1046
        %1341 = vmatpush.msra.mxu0 %v1042
        %1342 = vmatpush.msra.mxu0 %v1038
        %1343 = vmatpush.msra.mxu0 %v1034
        %1344 = vmatpush.msra.mxu0 %v1030
        %1345 = vmatpush.msra.mxu0 %v1026
        %1346 = vmatmul.f32.gmra.mxu0 %v1088
        %v1347 = vpop.f32.mrf.mxu0
        %v1348 = vadd.f32 %v1123, %v1347
        %1349 = vmatmul.f32.gmra.mxu0 %v1089
        %v1350 = vpop.f32.mrf.mxu0
        %v1351 = vadd.f32 %v1128, %v1350
        %1352 = vmatmul.f32.gmra.mxu0 %v1090
        %v1353 = vpop.f32.mrf.mxu0
        %v1354 = vadd.f32 %v1133, %v1353
        %1355 = vmatmul.f32.gmra.mxu0 %v1091
        %v1356 = vpop.f32.mrf.mxu0
        %v1357 = vadd.f32 %v1138, %v1356
        %1358 = vmatmul.f32.gmra.mxu0 %v1092
        %v1359 = vpop.f32.mrf.mxu0
        %v1360 = vadd.f32 %v1143, %v1359
        %1361 = vmatmul.f32.gmra.mxu0 %v1093
        %v1362 = vpop.f32.mrf.mxu0
        %v1363 = vadd.f32 %v1148, %v1362
        %1364 = vmatmul.f32.gmra.mxu0 %v1094
        %v1365 = vpop.f32.mrf.mxu0
        %v1366 = vadd.f32 %v1153, %v1365
        %1367 = vmatmul.f32.gmra.mxu0 %v1095
        %v1368 = vpop.f32.mrf.mxu0
        %v1369 = vadd.f32 %v1158, %v1368
        %1370 = vmatmul.f32.gmra.mxu0 %v1096
        %v1371 = vpop.f32.mrf.mxu0
        %v1372 = vadd.f32 %v1163, %v1371
        %1373 = vmatmul.f32.gmra.mxu0 %v1097
        %v1374 = vpop.f32.mrf.mxu0
        %v1375 = vadd.f32 %v1168, %v1374
        %1376 = vmatmul.f32.gmra.mxu0 %v1098
        %v1377 = vpop.f32.mrf.mxu0
        %v1378 = vadd.f32 %v1173, %v1377
        %1379 = vmatmul.f32.gmra.mxu0 %v1099
        %v1380 = vpop.f32.mrf.mxu0
        %v1381 = vadd.f32 %v1178, %v1380
        %1382 = vmatmul.f32.gmra.mxu0 %v1100
        %v1383 = vpop.f32.mrf.mxu0
        %v1384 = vadd.f32 %v1183, %v1383
        %1385 = vmatmul.f32.gmra.mxu0 %v1101
        %v1386 = vpop.f32.mrf.mxu0
        %v1387 = vadd.f32 %v1188, %v1386
        %1388 = vmatmul.f32.gmra.mxu0 %v1102
        %v1389 = vpop.f32.mrf.mxu0
        %v1390 = vadd.f32 %v1193, %v1389
        %1391 = vmatmul.f32.gmra.mxu0 %v1103
        %v1392 = vpop.f32.mrf.mxu0
        %v1393 = vadd.f32 %v1198, %v1392
        %1394 = vdwg.mxu0
        %1395 = vmatpush.msra.mxu0 %v1087
        %1396 = vmatpush.msra.mxu0 %v1083
        %1397 = vmatpush.msra.mxu0 %v1079
        %1398 = vmatpush.msra.mxu0 %v1075
        %1399 = vmatpush.msra.mxu0 %v1071
        %1400 = vmatpush.msra.mxu0 %v1067
        %1401 = vmatpush.msra.mxu0 %v1063
        %1402 = vmatpush.msra.mxu0 %v1059
        %1403 = vmatpush.msra.mxu0 %v1055
        %1404 = vmatpush.msra.mxu0 %v1051
        %1405 = vmatpush.msra.mxu0 %v1047
        %1406 = vmatpush.msra.mxu0 %v1043
        %1407 = vmatpush.msra.mxu0 %v1039
        %1408 = vmatpush.msra.mxu0 %v1035
        %1409 = vmatpush.msra.mxu0 %v1031
        %1410 = vmatpush.msra.mxu0 %v1027
        %1411 = vmatmul.f32.gmra.mxu0 %v1088
        %v1412 = vpop.f32.mrf.mxu0
        %v1413 = vadd.f32 %v1123, %v1412
        %1414 = vmatmul.f32.gmra.mxu0 %v1089
        %v1415 = vpop.f32.mrf.mxu0
        %v1416 = vadd.f32 %v1128, %v1415
        %1417 = vmatmul.f32.gmra.mxu0 %v1090
        %v1418 = vpop.f32.mrf.mxu0
        %v1419 = vadd.f32 %v1133, %v1418
        %1420 = vmatmul.f32.gmra.mxu0 %v1091
        %v1421 = vpop.f32.mrf.mxu0
        %v1422 = vadd.f32 %v1138, %v1421
        %1423 = vmatmul.f32.gmra.mxu0 %v1092
        %v1424 = vpop.f32.mrf.mxu0
        %v1425 = vadd.f32 %v1143, %v1424
        %1426 = vmatmul.f32.gmra.mxu0 %v1093
        %v1427 = vpop.f32.mrf.mxu0
        %v1428 = vadd.f32 %v1148, %v1427
        %1429 = vmatmul.f32.gmra.mxu0 %v1094
        %v1430 = vpop.f32.mrf.mxu0
        %v1431 = vadd.f32 %v1153, %v1430
        %1432 = vmatmul.f32.gmra.mxu0 %v1095
        %v1433 = vpop.f32.mrf.mxu0
        %v1434 = vadd.f32 %v1158, %v1433
        %1435 = vmatmul.f32.gmra.mxu0 %v1096
        %v1436 = vpop.f32.mrf.mxu0
        %v1437 = vadd.f32 %v1163, %v1436
        %1438 = vmatmul.f32.gmra.mxu0 %v1097
        %v1439 = vpop.f32.mrf.mxu0
        %v1440 = vadd.f32 %v1168, %v1439
        %1441 = vmatmul.f32.gmra.mxu0 %v1098
        %v1442 = vpop.f32.mrf.mxu0
        %v1443 = vadd.f32 %v1173, %v1442
        %1444 = vmatmul.f32.gmra.mxu0 %v1099
        %v1445 = vpop.f32.mrf.mxu0
        %v1446 = vadd.f32 %v1178, %v1445
        %1447 = vmatmul.f32.gmra.mxu0 %v1100
        %v1448 = vpop.f32.mrf.mxu0
        %v1449 = vadd.f32 %v1183, %v1448
        %1450 = vmatmul.f32.gmra.mxu0 %v1101
        %v1451 = vpop.f32.mrf.mxu0
        %v1452 = vadd.f32 %v1188, %v1451
        %1453 = vmatmul.f32.gmra.mxu0 %v1102
        %v1454 = vpop.f32.mrf.mxu0
        %v1455 = vadd.f32 %v1193, %v1454
        %1456 = vmatmul.f32.gmra.mxu0 %v1103
        %v1457 = vpop.f32.mrf.mxu0
        %v1458 = vadd.f32 %v1198, %v1457
        %1459 = vdwg.mxu0
        %v1460 = vmax.f32 %v1218, 0.0
        %v1461 = vmax.f32 %v1283, 0.0
        %v1462 = vmax.f32 %v1348, 0.0
        %v1463 = vmax.f32 %v1413, 0.0
        %v1464 = vmax.f32 %v1221, 0.0
        %v1465 = vmax.f32 %v1286, 0.0
        %v1466 = vmax.f32 %v1351, 0.0
        %v1467 = vmax.f32 %v1416, 0.0
        %v1468 = vmax.f32 %v1224, 0.0
        %v1469 = vmax.f32 %v1289, 0.0
        %v1470 = vmax.f32 %v1354, 0.0
        %v1471 = vmax.f32 %v1419, 0.0
        %v1472 = vmax.f32 %v1227, 0.0
        %v1473 = vmax.f32 %v1292, 0.0
        %v1474 = vmax.f32 %v1357, 0.0
        %v1475 = vmax.f32 %v1422, 0.0
        %v1476 = vmax.f32 %v1230, 0.0
        %v1477 = vmax.f32 %v1295, 0.0
        %v1478 = vmax.f32 %v1360, 0.0
        %v1479 = vmax.f32 %v1425, 0.0
        %v1480 = vmax.f32 %v1233, 0.0
        %v1481 = vmax.f32 %v1298, 0.0
        %v1482 = vmax.f32 %v1363, 0.0
        %v1483 = vmax.f32 %v1428, 0.0
        %v1484 = vmax.f32 %v1236, 0.0
        %v1485 = vmax.f32 %v1301, 0.0
        %v1486 = vmax.f32 %v1366, 0.0
        %v1487 = vmax.f32 %v1431, 0.0
        %v1488 = vmax.f32 %v1239, 0.0
        %v1489 = vmax.f32 %v1304, 0.0
        %v1490 = vmax.f32 %v1369, 0.0
        %v1491 = vmax.f32 %v1434, 0.0
        %v1492 = vmax.f32 %v1242, 0.0
        %v1493 = vmax.f32 %v1307, 0.0
        %v1494 = vmax.f32 %v1372, 0.0
        %v1495 = vmax.f32 %v1437, 0.0
        %v1496 = vmax.f32 %v1245, 0.0
        %v1497 = vmax.f32 %v1310, 0.0
        %v1498 = vmax.f32 %v1375, 0.0
        %v1499 = vmax.f32 %v1440, 0.0
        %v1500 = vmax.f32 %v1248, 0.0
        %v1501 = vmax.f32 %v1313, 0.0
        %v1502 = vmax.f32 %v1378, 0.0
        %v1503 = vmax.f32 %v1443, 0.0
        %v1504 = vmax.f32 %v1251, 0.0
        %v1505 = vmax.f32 %v1316, 0.0
        %v1506 = vmax.f32 %v1381, 0.0
        %v1507 = vmax.f32 %v1446, 0.0
        %v1508 = vmax.f32 %v1254, 0.0
        %v1509 = vmax.f32 %v1319, 0.0
        %v1510 = vmax.f32 %v1384, 0.0
        %v1511 = vmax.f32 %v1449, 0.0
        %v1512 = vmax.f32 %v1257, 0.0
        %v1513 = vmax.f32 %v1322, 0.0
        %v1514 = vmax.f32 %v1387, 0.0
        %v1515 = vmax.f32 %v1452, 0.0
        %v1516 = vmax.f32 %v1260, 0.0
        %v1517 = vmax.f32 %v1325, 0.0
        %v1518 = vmax.f32 %v1390, 0.0
        %v1519 = vmax.f32 %v1455, 0.0
        %v1520 = vmax.f32 %v1263, 0.0
        %v1521 = vmax.f32 %v1328, 0.0
        %v1522 = vmax.f32 %v1393, 0.0
        %v1523 = vmax.f32 %v1458, 0.0
        %s1524 = scalar_lea.vmem %s3, 128
        %v1525 = vld [vmem:[%s1524] sm:$0xff]
        %v1526 = vld [vmem:[%s1524 + $0x8] sm:$0xff]
        %v1527 = vld [vmem:[%s1524 + $0x10] sm:$0xff]
        %v1528 = vld [vmem:[%s1524 + $0x18] sm:$0xff]
        %v1529 = vld [vmem:[%s1524 + $0x20] sm:$0xff]
        %v1530 = vld [vmem:[%s1524 + $0x28] sm:$0xff]
        %v1531 = vld [vmem:[%s1524 + $0x30] sm:$0xff]
        %v1532 = vld [vmem:[%s1524 + $0x38] sm:$0xff]
        %v1533 = vld [vmem:[%s1524 + $0x40] sm:$0xff]
        %v1534 = vld [vmem:[%s1524 + $0x48] sm:$0xff]
        %v1535 = vld [vmem:[%s1524 + $0x50] sm:$0xff]
        %v1536 = vld [vmem:[%s1524 + $0x58] sm:$0xff]
        %v1537 = vld [vmem:[%s1524 + $0x60] sm:$0xff]
        %v1538 = vld [vmem:[%s1524 + $0x68] sm:$0xff]
        %v1539 = vld [vmem:[%s1524 + $0x70] sm:$0xff]
        %v1540 = vld [vmem:[%s1524 + $0x78] sm:$0xff]
        %s1541 = scalar_lea.vmem %s4, 128
        %v1542 = vld [vmem:[%s1541] sm:$0xff]
        %v1543 = vld [vmem:[%s1541 + $0x8] sm:$0xff]
        %v1544 = vld [vmem:[%s1541 + $0x10] sm:$0xff]
        %v1545 = vld [vmem:[%s1541 + $0x18] sm:$0xff]
        %v1546 = vld [vmem:[%s1541 + $0x20] sm:$0xff]
        %v1547 = vld [vmem:[%s1541 + $0x28] sm:$0xff]
        %v1548 = vld [vmem:[%s1541 + $0x30] sm:$0xff]
        %v1549 = vld [vmem:[%s1541 + $0x38] sm:$0xff]
        %v1550 = vld [vmem:[%s1541 + $0x40] sm:$0xff]
        %v1551 = vld [vmem:[%s1541 + $0x48] sm:$0xff]
        %v1552 = vld [vmem:[%s1541 + $0x50] sm:$0xff]
        %v1553 = vld [vmem:[%s1541 + $0x58] sm:$0xff]
        %v1554 = vld [vmem:[%s1541 + $0x60] sm:$0xff]
        %v1555 = vld [vmem:[%s1541 + $0x68] sm:$0xff]
        %v1556 = vld [vmem:[%s1541 + $0x70] sm:$0xff]
        %v1557 = vld [vmem:[%s1541 + $0x78] sm:$0xff]
        %1559 = vset.pattern.permute.xlu0 0
        %1560 = vperm.xlu0 %1559, %v1542
        %v1561 = vpop.permute.xlu0 %1560
        %1564 = vset.pattern.permute.xlu0 0
        %1565 = vperm.xlu0 %1564, %v1543
        %v1566 = vpop.permute.xlu0 %1565
        %1569 = vset.pattern.permute.xlu0 0
        %1570 = vperm.xlu0 %1569, %v1544
        %v1571 = vpop.permute.xlu0 %1570
        %1574 = vset.pattern.permute.xlu0 0
        %1575 = vperm.xlu0 %1574, %v1545
        %v1576 = vpop.permute.xlu0 %1575
        %1579 = vset.pattern.permute.xlu0 0
        %1580 = vperm.xlu0 %1579, %v1546
        %v1581 = vpop.permute.xlu0 %1580
        %1584 = vset.pattern.permute.xlu0 0
        %1585 = vperm.xlu0 %1584, %v1547
        %v1586 = vpop.permute.xlu0 %1585
        %1589 = vset.pattern.permute.xlu0 0
        %1590 = vperm.xlu0 %1589, %v1548
        %v1591 = vpop.permute.xlu0 %1590
        %1594 = vset.pattern.permute.xlu0 0
        %1595 = vperm.xlu0 %1594, %v1549
        %v1596 = vpop.permute.xlu0 %1595
        %1599 = vset.pattern.permute.xlu0 0
        %1600 = vperm.xlu0 %1599, %v1550
        %v1601 = vpop.permute.xlu0 %1600
        %1604 = vset.pattern.permute.xlu0 0
        %1605 = vperm.xlu0 %1604, %v1551
        %v1606 = vpop.permute.xlu0 %1605
        %1609 = vset.pattern.permute.xlu0 0
        %1610 = vperm.xlu0 %1609, %v1552
        %v1611 = vpop.permute.xlu0 %1610
        %1614 = vset.pattern.permute.xlu0 0
        %1615 = vperm.xlu0 %1614, %v1553
        %v1616 = vpop.permute.xlu0 %1615
        %1619 = vset.pattern.permute.xlu0 0
        %1620 = vperm.xlu0 %1619, %v1554
        %v1621 = vpop.permute.xlu0 %1620
        %1624 = vset.pattern.permute.xlu0 0
        %1625 = vperm.xlu0 %1624, %v1555
        %v1626 = vpop.permute.xlu0 %1625
        %1629 = vset.pattern.permute.xlu0 0
        %1630 = vperm.xlu0 %1629, %v1556
        %v1631 = vpop.permute.xlu0 %1630
        %1634 = vset.pattern.permute.xlu0 0
        %1635 = vperm.xlu0 %1634, %v1557
        %v1636 = vpop.permute.xlu0 %1635
        %1638 = vmatpush.msra.mxu0 %v1520
        %1639 = vmatpush.msra.mxu0 %v1516
        %1640 = vmatpush.msra.mxu0 %v1512
        %1641 = vmatpush.msra.mxu0 %v1508
        %1642 = vmatpush.msra.mxu0 %v1504
        %1643 = vmatpush.msra.mxu0 %v1500
        %1644 = vmatpush.msra.mxu0 %v1496
        %1645 = vmatpush.msra.mxu0 %v1492
        %1646 = vmatpush.msra.mxu0 %v1488
        %1647 = vmatpush.msra.mxu0 %v1484
        %1648 = vmatpush.msra.mxu0 %v1480
        %1649 = vmatpush.msra.mxu0 %v1476
        %1650 = vmatpush.msra.mxu0 %v1472
        %1651 = vmatpush.msra.mxu0 %v1468
        %1652 = vmatpush.msra.mxu0 %v1464
        %1653 = vmatpush.msra.mxu0 %v1460
        %1654 = vmatmul.f32.gmra.mxu0 %v1525
        %v1655 = vpop.f32.mrf.mxu0
        %v1656 = vadd.f32 %v1561, %v1655
        %1657 = vmatmul.f32.gmra.mxu0 %v1526
        %v1658 = vpop.f32.mrf.mxu0
        %v1659 = vadd.f32 %v1566, %v1658
        %1660 = vmatmul.f32.gmra.mxu0 %v1527
        %v1661 = vpop.f32.mrf.mxu0
        %v1662 = vadd.f32 %v1571, %v1661
        %1663 = vmatmul.f32.gmra.mxu0 %v1528
        %v1664 = vpop.f32.mrf.mxu0
        %v1665 = vadd.f32 %v1576, %v1664
        %1666 = vmatmul.f32.gmra.mxu0 %v1529
        %v1667 = vpop.f32.mrf.mxu0
        %v1668 = vadd.f32 %v1581, %v1667
        %1669 = vmatmul.f32.gmra.mxu0 %v1530
        %v1670 = vpop.f32.mrf.mxu0
        %v1671 = vadd.f32 %v1586, %v1670
        %1672 = vmatmul.f32.gmra.mxu0 %v1531
        %v1673 = vpop.f32.mrf.mxu0
        %v1674 = vadd.f32 %v1591, %v1673
        %1675 = vmatmul.f32.gmra.mxu0 %v1532
        %v1676 = vpop.f32.mrf.mxu0
        %v1677 = vadd.f32 %v1596, %v1676
        %1678 = vmatmul.f32.gmra.mxu0 %v1533
        %v1679 = vpop.f32.mrf.mxu0
        %v1680 = vadd.f32 %v1601, %v1679
        %1681 = vmatmul.f32.gmra.mxu0 %v1534
        %v1682 = vpop.f32.mrf.mxu0
        %v1683 = vadd.f32 %v1606, %v1682
        %1684 = vmatmul.f32.gmra.mxu0 %v1535
        %v1685 = vpop.f32.mrf.mxu0
        %v1686 = vadd.f32 %v1611, %v1685
        %1687 = vmatmul.f32.gmra.mxu0 %v1536
        %v1688 = vpop.f32.mrf.mxu0
        %v1689 = vadd.f32 %v1616, %v1688
        %1690 = vmatmul.f32.gmra.mxu0 %v1537
        %v1691 = vpop.f32.mrf.mxu0
        %v1692 = vadd.f32 %v1621, %v1691
        %1693 = vmatmul.f32.gmra.mxu0 %v1538
        %v1694 = vpop.f32.mrf.mxu0
        %v1695 = vadd.f32 %v1626, %v1694
        %1696 = vmatmul.f32.gmra.mxu0 %v1539
        %v1697 = vpop.f32.mrf.mxu0
        %v1698 = vadd.f32 %v1631, %v1697
        %1699 = vmatmul.f32.gmra.mxu0 %v1540
        %v1700 = vpop.f32.mrf.mxu0
        %v1701 = vadd.f32 %v1636, %v1700
        %1702 = vdwg.mxu0
        %1703 = vmatpush.msra.mxu0 %v1521
        %1704 = vmatpush.msra.mxu0 %v1517
        %1705 = vmatpush.msra.mxu0 %v1513
        %1706 = vmatpush.msra.mxu0 %v1509
        %1707 = vmatpush.msra.mxu0 %v1505
        %1708 = vmatpush.msra.mxu0 %v1501
        %1709 = vmatpush.msra.mxu0 %v1497
        %1710 = vmatpush.msra.mxu0 %v1493
        %1711 = vmatpush.msra.mxu0 %v1489
        %1712 = vmatpush.msra.mxu0 %v1485
        %1713 = vmatpush.msra.mxu0 %v1481
        %1714 = vmatpush.msra.mxu0 %v1477
        %1715 = vmatpush.msra.mxu0 %v1473
        %1716 = vmatpush.msra.mxu0 %v1469
        %1717 = vmatpush.msra.mxu0 %v1465
        %1718 = vmatpush.msra.mxu0 %v1461
        %1719 = vmatmul.f32.gmra.mxu0 %v1525
        %v1720 = vpop.f32.mrf.mxu0
        %v1721 = vadd.f32 %v1561, %v1720
        %1722 = vmatmul.f32.gmra.mxu0 %v1526
        %v1723 = vpop.f32.mrf.mxu0
        %v1724 = vadd.f32 %v1566, %v1723
        %1725 = vmatmul.f32.gmra.mxu0 %v1527
        %v1726 = vpop.f32.mrf.mxu0
        %v1727 = vadd.f32 %v1571, %v1726
        %1728 = vmatmul.f32.gmra.mxu0 %v1528
        %v1729 = vpop.f32.mrf.mxu0
        %v1730 = vadd.f32 %v1576, %v1729
        %1731 = vmatmul.f32.gmra.mxu0 %v1529
        %v1732 = vpop.f32.mrf.mxu0
        %v1733 = vadd.f32 %v1581, %v1732
        %1734 = vmatmul.f32.gmra.mxu0 %v1530
        %v1735 = vpop.f32.mrf.mxu0
        %v1736 = vadd.f32 %v1586, %v1735
        %1737 = vmatmul.f32.gmra.mxu0 %v1531
        %v1738 = vpop.f32.mrf.mxu0
        %v1739 = vadd.f32 %v1591, %v1738
        %1740 = vmatmul.f32.gmra.mxu0 %v1532
        %v1741 = vpop.f32.mrf.mxu0
        %v1742 = vadd.f32 %v1596, %v1741
        %1743 = vmatmul.f32.gmra.mxu0 %v1533
        %v1744 = vpop.f32.mrf.mxu0
        %v1745 = vadd.f32 %v1601, %v1744
        %1746 = vmatmul.f32.gmra.mxu0 %v1534
        %v1747 = vpop.f32.mrf.mxu0
        %v1748 = vadd.f32 %v1606, %v1747
        %1749 = vmatmul.f32.gmra.mxu0 %v1535
        %v1750 = vpop.f32.mrf.mxu0
        %v1751 = vadd.f32 %v1611, %v1750
        %1752 = vmatmul.f32.gmra.mxu0 %v1536
        %v1753 = vpop.f32.mrf.mxu0
        %v1754 = vadd.f32 %v1616, %v1753
        %1755 = vmatmul.f32.gmra.mxu0 %v1537
        %v1756 = vpop.f32.mrf.mxu0
        %v1757 = vadd.f32 %v1621, %v1756
        %1758 = vmatmul.f32.gmra.mxu0 %v1538
        %v1759 = vpop.f32.mrf.mxu0
        %v1760 = vadd.f32 %v1626, %v1759
        %1761 = vmatmul.f32.gmra.mxu0 %v1539
        %v1762 = vpop.f32.mrf.mxu0
        %v1763 = vadd.f32 %v1631, %v1762
        %1764 = vmatmul.f32.gmra.mxu0 %v1540
        %v1765 = vpop.f32.mrf.mxu0
        %v1766 = vadd.f32 %v1636, %v1765
        %1767 = vdwg.mxu0
        %1768 = vmatpush.msra.mxu0 %v1522
        %1769 = vmatpush.msra.mxu0 %v1518
        %1770 = vmatpush.msra.mxu0 %v1514
        %1771 = vmatpush.msra.mxu0 %v1510
        %1772 = vmatpush.msra.mxu0 %v1506
        %1773 = vmatpush.msra.mxu0 %v1502
        %1774 = vmatpush.msra.mxu0 %v1498
        %1775 = vmatpush.msra.mxu0 %v1494
        %1776 = vmatpush.msra.mxu0 %v1490
        %1777 = vmatpush.msra.mxu0 %v1486
        %1778 = vmatpush.msra.mxu0 %v1482
        %1779 = vmatpush.msra.mxu0 %v1478
        %1780 = vmatpush.msra.mxu0 %v1474
        %1781 = vmatpush.msra.mxu0 %v1470
        %1782 = vmatpush.msra.mxu0 %v1466
        %1783 = vmatpush.msra.mxu0 %v1462
        %1784 = vmatmul.f32.gmra.mxu0 %v1525
        %v1785 = vpop.f32.mrf.mxu0
        %v1786 = vadd.f32 %v1561, %v1785
        %1787 = vmatmul.f32.gmra.mxu0 %v1526
        %v1788 = vpop.f32.mrf.mxu0
        %v1789 = vadd.f32 %v1566, %v1788
        %1790 = vmatmul.f32.gmra.mxu0 %v1527
        %v1791 = vpop.f32.mrf.mxu0
        %v1792 = vadd.f32 %v1571, %v1791
        %1793 = vmatmul.f32.gmra.mxu0 %v1528
        %v1794 = vpop.f32.mrf.mxu0
        %v1795 = vadd.f32 %v1576, %v1794
        %1796 = vmatmul.f32.gmra.mxu0 %v1529
        %v1797 = vpop.f32.mrf.mxu0
        %v1798 = vadd.f32 %v1581, %v1797
        %1799 = vmatmul.f32.gmra.mxu0 %v1530
        %v1800 = vpop.f32.mrf.mxu0
        %v1801 = vadd.f32 %v1586, %v1800
        %1802 = vmatmul.f32.gmra.mxu0 %v1531
        %v1803 = vpop.f32.mrf.mxu0
        %v1804 = vadd.f32 %v1591, %v1803
        %1805 = vmatmul.f32.gmra.mxu0 %v1532
        %v1806 = vpop.f32.mrf.mxu0
        %v1807 = vadd.f32 %v1596, %v1806
        %1808 = vmatmul.f32.gmra.mxu0 %v1533
        %v1809 = vpop.f32.mrf.mxu0
        %v1810 = vadd.f32 %v1601, %v1809
        %1811 = vmatmul.f32.gmra.mxu0 %v1534
        %v1812 = vpop.f32.mrf.mxu0
        %v1813 = vadd.f32 %v1606, %v1812
        %1814 = vmatmul.f32.gmra.mxu0 %v1535
        %v1815 = vpop.f32.mrf.mxu0
        %v1816 = vadd.f32 %v1611, %v1815
        %1817 = vmatmul.f32.gmra.mxu0 %v1536
        %v1818 = vpop.f32.mrf.mxu0
        %v1819 = vadd.f32 %v1616, %v1818
        %1820 = vmatmul.f32.gmra.mxu0 %v1537
        %v1821 = vpop.f32.mrf.mxu0
        %v1822 = vadd.f32 %v1621, %v1821
        %1823 = vmatmul.f32.gmra.mxu0 %v1538
        %v1824 = vpop.f32.mrf.mxu0
        %v1825 = vadd.f32 %v1626, %v1824
        %1826 = vmatmul.f32.gmra.mxu0 %v1539
        %v1827 = vpop.f32.mrf.mxu0
        %v1828 = vadd.f32 %v1631, %v1827
        %1829 = vmatmul.f32.gmra.mxu0 %v1540
        %v1830 = vpop.f32.mrf.mxu0
        %v1831 = vadd.f32 %v1636, %v1830
        %1832 = vdwg.mxu0
        %1833 = vmatpush.msra.mxu0 %v1523
        %1834 = vmatpush.msra.mxu0 %v1519
        %1835 = vmatpush.msra.mxu0 %v1515
        %1836 = vmatpush.msra.mxu0 %v1511
        %1837 = vmatpush.msra.mxu0 %v1507
        %1838 = vmatpush.msra.mxu0 %v1503
        %1839 = vmatpush.msra.mxu0 %v1499
        %1840 = vmatpush.msra.mxu0 %v1495
        %1841 = vmatpush.msra.mxu0 %v1491
        %1842 = vmatpush.msra.mxu0 %v1487
        %1843 = vmatpush.msra.mxu0 %v1483
        %1844 = vmatpush.msra.mxu0 %v1479
        %1845 = vmatpush.msra.mxu0 %v1475
        %1846 = vmatpush.msra.mxu0 %v1471
        %1847 = vmatpush.msra.mxu0 %v1467
        %1848 = vmatpush.msra.mxu0 %v1463
        %1849 = vmatmul.f32.gmra.mxu0 %v1525
        %v1850 = vpop.f32.mrf.mxu0
        %v1851 = vadd.f32 %v1561, %v1850
        %1852 = vmatmul.f32.gmra.mxu0 %v1526
        %v1853 = vpop.f32.mrf.mxu0
        %v1854 = vadd.f32 %v1566, %v1853
        %1855 = vmatmul.f32.gmra.mxu0 %v1527
        %v1856 = vpop.f32.mrf.mxu0
        %v1857 = vadd.f32 %v1571, %v1856
        %1858 = vmatmul.f32.gmra.mxu0 %v1528
        %v1859 = vpop.f32.mrf.mxu0
        %v1860 = vadd.f32 %v1576, %v1859
        %1861 = vmatmul.f32.gmra.mxu0 %v1529
        %v1862 = vpop.f32.mrf.mxu0
        %v1863 = vadd.f32 %v1581, %v1862
        %1864 = vmatmul.f32.gmra.mxu0 %v1530
        %v1865 = vpop.f32.mrf.mxu0
        %v1866 = vadd.f32 %v1586, %v1865
        %1867 = vmatmul.f32.gmra.mxu0 %v1531
        %v1868 = vpop.f32.mrf.mxu0
        %v1869 = vadd.f32 %v1591, %v1868
        %1870 = vmatmul.f32.gmra.mxu0 %v1532
        %v1871 = vpop.f32.mrf.mxu0
        %v1872 = vadd.f32 %v1596, %v1871
        %1873 = vmatmul.f32.gmra.mxu0 %v1533
        %v1874 = vpop.f32.mrf.mxu0
        %v1875 = vadd.f32 %v1601, %v1874
        %1876 = vmatmul.f32.gmra.mxu0 %v1534
        %v1877 = vpop.f32.mrf.mxu0
        %v1878 = vadd.f32 %v1606, %v1877
        %1879 = vmatmul.f32.gmra.mxu0 %v1535
        %v1880 = vpop.f32.mrf.mxu0
        %v1881 = vadd.f32 %v1611, %v1880
        %1882 = vmatmul.f32.gmra.mxu0 %v1536
        %v1883 = vpop.f32.mrf.mxu0
        %v1884 = vadd.f32 %v1616, %v1883
        %1885 = vmatmul.f32.gmra.mxu0 %v1537
        %v1886 = vpop.f32.mrf.mxu0
        %v1887 = vadd.f32 %v1621, %v1886
        %1888 = vmatmul.f32.gmra.mxu0 %v1538
        %v1889 = vpop.f32.mrf.mxu0
        %v1890 = vadd.f32 %v1626, %v1889
        %1891 = vmatmul.f32.gmra.mxu0 %v1539
        %v1892 = vpop.f32.mrf.mxu0
        %v1893 = vadd.f32 %v1631, %v1892
        %1894 = vmatmul.f32.gmra.mxu0 %v1540
        %v1895 = vpop.f32.mrf.mxu0
        %v1896 = vadd.f32 %v1636, %v1895
        %1897 = vdwg.mxu0
        %v1898 = vmax.f32 %v1656, 0.0
        %v1899 = vmax.f32 %v1721, 0.0
        %v1900 = vmax.f32 %v1786, 0.0
        %v1901 = vmax.f32 %v1851, 0.0
        %v1902 = vmax.f32 %v1659, 0.0
        %v1903 = vmax.f32 %v1724, 0.0
        %v1904 = vmax.f32 %v1789, 0.0
        %v1905 = vmax.f32 %v1854, 0.0
        %v1906 = vmax.f32 %v1662, 0.0
        %v1907 = vmax.f32 %v1727, 0.0
        %v1908 = vmax.f32 %v1792, 0.0
        %v1909 = vmax.f32 %v1857, 0.0
        %v1910 = vmax.f32 %v1665, 0.0
        %v1911 = vmax.f32 %v1730, 0.0
        %v1912 = vmax.f32 %v1795, 0.0
        %v1913 = vmax.f32 %v1860, 0.0
        %v1914 = vmax.f32 %v1668, 0.0
        %v1915 = vmax.f32 %v1733, 0.0
        %v1916 = vmax.f32 %v1798, 0.0
        %v1917 = vmax.f32 %v1863, 0.0
        %v1918 = vmax.f32 %v1671, 0.0
        %v1919 = vmax.f32 %v1736, 0.0
        %v1920 = vmax.f32 %v1801, 0.0
        %v1921 = vmax.f32 %v1866, 0.0
        %v1922 = vmax.f32 %v1674, 0.0
        %v1923 = vmax.f32 %v1739, 0.0
        %v1924 = vmax.f32 %v1804, 0.0
        %v1925 = vmax.f32 %v1869, 0.0
        %v1926 = vmax.f32 %v1677, 0.0
        %v1927 = vmax.f32 %v1742, 0.0
        %v1928 = vmax.f32 %v1807, 0.0
        %v1929 = vmax.f32 %v1872, 0.0
        %v1930 = vmax.f32 %v1680, 0.0
        %v1931 = vmax.f32 %v1745, 0.0
        %v1932 = vmax.f32 %v1810, 0.0
        %v1933 = vmax.f32 %v1875, 0.0
        %v1934 = vmax.f32 %v1683, 0.0
        %v1935 = vmax.f32 %v1748, 0.0
        %v1936 = vmax.f32 %v1813, 0.0
        %v1937 = vmax.f32 %v1878, 0.0
        %v1938 = vmax.f32 %v1686, 0.0
        %v1939 = vmax.f32 %v1751, 0.0
        %v1940 = vmax.f32 %v1816, 0.0
        %v1941 = vmax.f32 %v1881, 0.0
        %v1942 = vmax.f32 %v1689, 0.0
        %v1943 = vmax.f32 %v1754, 0.0
        %v1944 = vmax.f32 %v1819, 0.0
        %v1945 = vmax.f32 %v1884, 0.0
        %v1946 = vmax.f32 %v1692, 0.0
        %v1947 = vmax.f32 %v1757, 0.0
        %v1948 = vmax.f32 %v1822, 0.0
        %v1949 = vmax.f32 %v1887, 0.0
        %v1950 = vmax.f32 %v1695, 0.0
        %v1951 = vmax.f32 %v1760, 0.0
        %v1952 = vmax.f32 %v1825, 0.0
        %v1953 = vmax.f32 %v1890, 0.0
        %v1954 = vmax.f32 %v1698, 0.0
        %v1955 = vmax.f32 %v1763, 0.0
        %v1956 = vmax.f32 %v1828, 0.0
        %v1957 = vmax.f32 %v1893, 0.0
        %v1958 = vmax.f32 %v1701, 0.0
        %v1959 = vmax.f32 %v1766, 0.0
        %v1960 = vmax.f32 %v1831, 0.0
        %v1961 = vmax.f32 %v1896, 0.0
        %s1962 = scalar_lea.vmem %s3, 256
        %v1963 = vld [vmem:[%s1962] sm:$0xff]
        %v1964 = vld [vmem:[%s1962 + $0x8] sm:$0xff]
        %v1965 = vld [vmem:[%s1962 + $0x10] sm:$0xff]
        %v1966 = vld [vmem:[%s1962 + $0x18] sm:$0xff]
        %v1967 = vld [vmem:[%s1962 + $0x20] sm:$0xff]
        %v1968 = vld [vmem:[%s1962 + $0x28] sm:$0xff]
        %v1969 = vld [vmem:[%s1962 + $0x30] sm:$0xff]
        %v1970 = vld [vmem:[%s1962 + $0x38] sm:$0xff]
        %v1971 = vld [vmem:[%s1962 + $0x40] sm:$0xff]
        %v1972 = vld [vmem:[%s1962 + $0x48] sm:$0xff]
        %v1973 = vld [vmem:[%s1962 + $0x50] sm:$0xff]
        %v1974 = vld [vmem:[%s1962 + $0x58] sm:$0xff]
        %v1975 = vld [vmem:[%s1962 + $0x60] sm:$0xff]
        %v1976 = vld [vmem:[%s1962 + $0x68] sm:$0xff]
        %v1977 = vld [vmem:[%s1962 + $0x70] sm:$0xff]
        %v1978 = vld [vmem:[%s1962 + $0x78] sm:$0xff]
        %s1979 = scalar_lea.vmem %s4, 256
        %v1980 = vld [vmem:[%s1979] sm:$0xff]
        %v1981 = vld [vmem:[%s1979 + $0x8] sm:$0xff]
        %v1982 = vld [vmem:[%s1979 + $0x10] sm:$0xff]
        %v1983 = vld [vmem:[%s1979 + $0x18] sm:$0xff]
        %v1984 = vld [vmem:[%s1979 + $0x20] sm:$0xff]
        %v1985 = vld [vmem:[%s1979 + $0x28] sm:$0xff]
        %v1986 = vld [vmem:[%s1979 + $0x30] sm:$0xff]
        %v1987 = vld [vmem:[%s1979 + $0x38] sm:$0xff]
        %v1988 = vld [vmem:[%s1979 + $0x40] sm:$0xff]
        %v1989 = vld [vmem:[%s1979 + $0x48] sm:$0xff]
        %v1990 = vld [vmem:[%s1979 + $0x50] sm:$0xff]
        %v1991 = vld [vmem:[%s1979 + $0x58] sm:$0xff]
        %v1992 = vld [vmem:[%s1979 + $0x60] sm:$0xff]
        %v1993 = vld [vmem:[%s1979 + $0x68] sm:$0xff]
        %v1994 = vld [vmem:[%s1979 + $0x70] sm:$0xff]
        %v1995 = vld [vmem:[%s1979 + $0x78] sm:$0xff]
        %1997 = vset.pattern.permute.xlu0 0
        %1998 = vperm.xlu0 %1997, %v1980
        %v1999 = vpop.permute.xlu0 %1998
        %2002 = vset.pattern.permute.xlu0 0
        %2003 = vperm.xlu0 %2002, %v1981
        %v2004 = vpop.permute.xlu0 %2003
        %2007 = vset.pattern.permute.xlu0 0
        %2008 = vperm.xlu0 %2007, %v1982
        %v2009 = vpop.permute.xlu0 %2008
        %2012 = vset.pattern.permute.xlu0 0
        %2013 = vperm.xlu0 %2012, %v1983
        %v2014 = vpop.permute.xlu0 %2013
        %2017 = vset.pattern.permute.xlu0 0
        %2018 = vperm.xlu0 %2017, %v1984
        %v2019 = vpop.permute.xlu0 %2018
        %2022 = vset.pattern.permute.xlu0 0
        %2023 = vperm.xlu0 %2022, %v1985
        %v2024 = vpop.permute.xlu0 %2023
        %2027 = vset.pattern.permute.xlu0 0
        %2028 = vperm.xlu0 %2027, %v1986
        %v2029 = vpop.permute.xlu0 %2028
        %2032 = vset.pattern.permute.xlu0 0
        %2033 = vperm.xlu0 %2032, %v1987
        %v2034 = vpop.permute.xlu0 %2033
        %2037 = vset.pattern.permute.xlu0 0
        %2038 = vperm.xlu0 %2037, %v1988
        %v2039 = vpop.permute.xlu0 %2038
        %2042 = vset.pattern.permute.xlu0 0
        %2043 = vperm.xlu0 %2042, %v1989
        %v2044 = vpop.permute.xlu0 %2043
        %2047 = vset.pattern.permute.xlu0 0
        %2048 = vperm.xlu0 %2047, %v1990
        %v2049 = vpop.permute.xlu0 %2048
        %2052 = vset.pattern.permute.xlu0 0
        %2053 = vperm.xlu0 %2052, %v1991
        %v2054 = vpop.permute.xlu0 %2053
        %2057 = vset.pattern.permute.xlu0 0
        %2058 = vperm.xlu0 %2057, %v1992
        %v2059 = vpop.permute.xlu0 %2058
        %2062 = vset.pattern.permute.xlu0 0
        %2063 = vperm.xlu0 %2062, %v1993
        %v2064 = vpop.permute.xlu0 %2063
        %2067 = vset.pattern.permute.xlu0 0
        %2068 = vperm.xlu0 %2067, %v1994
        %v2069 = vpop.permute.xlu0 %2068
        %2072 = vset.pattern.permute.xlu0 0
        %2073 = vperm.xlu0 %2072, %v1995
        %v2074 = vpop.permute.xlu0 %2073
        %2076 = vmatpush.msra.mxu0 %v1958
        %2077 = vmatpush.msra.mxu0 %v1954
        %2078 = vmatpush.msra.mxu0 %v1950
        %2079 = vmatpush.msra.mxu0 %v1946
        %2080 = vmatpush.msra.mxu0 %v1942
        %2081 = vmatpush.msra.mxu0 %v1938
        %2082 = vmatpush.msra.mxu0 %v1934
        %2083 = vmatpush.msra.mxu0 %v1930
        %2084 = vmatpush.msra.mxu0 %v1926
        %2085 = vmatpush.msra.mxu0 %v1922
        %2086 = vmatpush.msra.mxu0 %v1918
        %2087 = vmatpush.msra.mxu0 %v1914
        %2088 = vmatpush.msra.mxu0 %v1910
        %2089 = vmatpush.msra.mxu0 %v1906
        %2090 = vmatpush.msra.mxu0 %v1902
        %2091 = vmatpush.msra.mxu0 %v1898
        %2092 = vmatmul.f32.gmra.mxu0 %v1963
        %v2093 = vpop.f32.mrf.mxu0
        %v2094 = vadd.f32 %v1999, %v2093
        %2095 = vmatmul.f32.gmra.mxu0 %v1964
        %v2096 = vpop.f32.mrf.mxu0
        %v2097 = vadd.f32 %v2004, %v2096
        %2098 = vmatmul.f32.gmra.mxu0 %v1965
        %v2099 = vpop.f32.mrf.mxu0
        %v2100 = vadd.f32 %v2009, %v2099
        %2101 = vmatmul.f32.gmra.mxu0 %v1966
        %v2102 = vpop.f32.mrf.mxu0
        %v2103 = vadd.f32 %v2014, %v2102
        %2104 = vmatmul.f32.gmra.mxu0 %v1967
        %v2105 = vpop.f32.mrf.mxu0
        %v2106 = vadd.f32 %v2019, %v2105
        %2107 = vmatmul.f32.gmra.mxu0 %v1968
        %v2108 = vpop.f32.mrf.mxu0
        %v2109 = vadd.f32 %v2024, %v2108
        %2110 = vmatmul.f32.gmra.mxu0 %v1969
        %v2111 = vpop.f32.mrf.mxu0
        %v2112 = vadd.f32 %v2029, %v2111
        %2113 = vmatmul.f32.gmra.mxu0 %v1970
        %v2114 = vpop.f32.mrf.mxu0
        %v2115 = vadd.f32 %v2034, %v2114
        %2116 = vmatmul.f32.gmra.mxu0 %v1971
        %v2117 = vpop.f32.mrf.mxu0
        %v2118 = vadd.f32 %v2039, %v2117
        %2119 = vmatmul.f32.gmra.mxu0 %v1972
        %v2120 = vpop.f32.mrf.mxu0
        %v2121 = vadd.f32 %v2044, %v2120
        %2122 = vmatmul.f32.gmra.mxu0 %v1973
        %v2123 = vpop.f32.mrf.mxu0
        %v2124 = vadd.f32 %v2049, %v2123
        %2125 = vmatmul.f32.gmra.mxu0 %v1974
        %v2126 = vpop.f32.mrf.mxu0
        %v2127 = vadd.f32 %v2054, %v2126
        %2128 = vmatmul.f32.gmra.mxu0 %v1975
        %v2129 = vpop.f32.mrf.mxu0
        %v2130 = vadd.f32 %v2059, %v2129
        %2131 = vmatmul.f32.gmra.mxu0 %v1976
        %v2132 = vpop.f32.mrf.mxu0
        %v2133 = vadd.f32 %v2064, %v2132
        %2134 = vmatmul.f32.gmra.mxu0 %v1977
        %v2135 = vpop.f32.mrf.mxu0
        %v2136 = vadd.f32 %v2069, %v2135
        %2137 = vmatmul.f32.gmra.mxu0 %v1978
        %v2138 = vpop.f32.mrf.mxu0
        %v2139 = vadd.f32 %v2074, %v2138
        %2140 = vdwg.mxu0
        %2141 = vmatpush.msra.mxu0 %v1959
        %2142 = vmatpush.msra.mxu0 %v1955
        %2143 = vmatpush.msra.mxu0 %v1951
        %2144 = vmatpush.msra.mxu0 %v1947
        %2145 = vmatpush.msra.mxu0 %v1943
        %2146 = vmatpush.msra.mxu0 %v1939
        %2147 = vmatpush.msra.mxu0 %v1935
        %2148 = vmatpush.msra.mxu0 %v1931
        %2149 = vmatpush.msra.mxu0 %v1927
        %2150 = vmatpush.msra.mxu0 %v1923
        %2151 = vmatpush.msra.mxu0 %v1919
        %2152 = vmatpush.msra.mxu0 %v1915
        %2153 = vmatpush.msra.mxu0 %v1911
        %2154 = vmatpush.msra.mxu0 %v1907
        %2155 = vmatpush.msra.mxu0 %v1903
        %2156 = vmatpush.msra.mxu0 %v1899
        %2157 = vmatmul.f32.gmra.mxu0 %v1963
        %v2158 = vpop.f32.mrf.mxu0
        %v2159 = vadd.f32 %v1999, %v2158
        %2160 = vmatmul.f32.gmra.mxu0 %v1964
        %v2161 = vpop.f32.mrf.mxu0
        %v2162 = vadd.f32 %v2004, %v2161
        %2163 = vmatmul.f32.gmra.mxu0 %v1965
        %v2164 = vpop.f32.mrf.mxu0
        %v2165 = vadd.f32 %v2009, %v2164
        %2166 = vmatmul.f32.gmra.mxu0 %v1966
        %v2167 = vpop.f32.mrf.mxu0
        %v2168 = vadd.f32 %v2014, %v2167
        %2169 = vmatmul.f32.gmra.mxu0 %v1967
        %v2170 = vpop.f32.mrf.mxu0
        %v2171 = vadd.f32 %v2019, %v2170
        %2172 = vmatmul.f32.gmra.mxu0 %v1968
        %v2173 = vpop.f32.mrf.mxu0
        %v2174 = vadd.f32 %v2024, %v2173
        %2175 = vmatmul.f32.gmra.mxu0 %v1969
        %v2176 = vpop.f32.mrf.mxu0
        %v2177 = vadd.f32 %v2029, %v2176
        %2178 = vmatmul.f32.gmra.mxu0 %v1970
        %v2179 = vpop.f32.mrf.mxu0
        %v2180 = vadd.f32 %v2034, %v2179
        %2181 = vmatmul.f32.gmra.mxu0 %v1971
        %v2182 = vpop.f32.mrf.mxu0
        %v2183 = vadd.f32 %v2039, %v2182
        %2184 = vmatmul.f32.gmra.mxu0 %v1972
        %v2185 = vpop.f32.mrf.mxu0
        %v2186 = vadd.f32 %v2044, %v2185
        %2187 = vmatmul.f32.gmra.mxu0 %v1973
        %v2188 = vpop.f32.mrf.mxu0
        %v2189 = vadd.f32 %v2049, %v2188
        %2190 = vmatmul.f32.gmra.mxu0 %v1974
        %v2191 = vpop.f32.mrf.mxu0
        %v2192 = vadd.f32 %v2054, %v2191
        %2193 = vmatmul.f32.gmra.mxu0 %v1975
        %v2194 = vpop.f32.mrf.mxu0
        %v2195 = vadd.f32 %v2059, %v2194
        %2196 = vmatmul.f32.gmra.mxu0 %v1976
        %v2197 = vpop.f32.mrf.mxu0
        %v2198 = vadd.f32 %v2064, %v2197
        %2199 = vmatmul.f32.gmra.mxu0 %v1977
        %v2200 = vpop.f32.mrf.mxu0
        %v2201 = vadd.f32 %v2069, %v2200
        %2202 = vmatmul.f32.gmra.mxu0 %v1978
        %v2203 = vpop.f32.mrf.mxu0
        %v2204 = vadd.f32 %v2074, %v2203
        %2205 = vdwg.mxu0
        %2206 = vmatpush.msra.mxu0 %v1960
        %2207 = vmatpush.msra.mxu0 %v1956
        %2208 = vmatpush.msra.mxu0 %v1952
        %2209 = vmatpush.msra.mxu0 %v1948
        %2210 = vmatpush.msra.mxu0 %v1944
        %2211 = vmatpush.msra.mxu0 %v1940
        %2212 = vmatpush.msra.mxu0 %v1936
        %2213 = vmatpush.msra.mxu0 %v1932
        %2214 = vmatpush.msra.mxu0 %v1928
        %2215 = vmatpush.msra.mxu0 %v1924
        %2216 = vmatpush.msra.mxu0 %v1920
        %2217 = vmatpush.msra.mxu0 %v1916
        %2218 = vmatpush.msra.mxu0 %v1912
        %2219 = vmatpush.msra.mxu0 %v1908
        %2220 = vmatpush.msra.mxu0 %v1904
        %2221 = vmatpush.msra.mxu0 %v1900
        %2222 = vmatmul.f32.gmra.mxu0 %v1963
        %v2223 = vpop.f32.mrf.mxu0
        %v2224 = vadd.f32 %v1999, %v2223
        %2225 = vmatmul.f32.gmra.mxu0 %v1964
        %v2226 = vpop.f32.mrf.mxu0
        %v2227 = vadd.f32 %v2004, %v2226
        %2228 = vmatmul.f32.gmra.mxu0 %v1965
        %v2229 = vpop.f32.mrf.mxu0
        %v2230 = vadd.f32 %v2009, %v2229
        %2231 = vmatmul.f32.gmra.mxu0 %v1966
        %v2232 = vpop.f32.mrf.mxu0
        %v2233 = vadd.f32 %v2014, %v2232
        %2234 = vmatmul.f32.gmra.mxu0 %v1967
        %v2235 = vpop.f32.mrf.mxu0
        %v2236 = vadd.f32 %v2019, %v2235
        %2237 = vmatmul.f32.gmra.mxu0 %v1968
        %v2238 = vpop.f32.mrf.mxu0
        %v2239 = vadd.f32 %v2024, %v2238
        %2240 = vmatmul.f32.gmra.mxu0 %v1969
        %v2241 = vpop.f32.mrf.mxu0
        %v2242 = vadd.f32 %v2029, %v2241
        %2243 = vmatmul.f32.gmra.mxu0 %v1970
        %v2244 = vpop.f32.mrf.mxu0
        %v2245 = vadd.f32 %v2034, %v2244
        %2246 = vmatmul.f32.gmra.mxu0 %v1971
        %v2247 = vpop.f32.mrf.mxu0
        %v2248 = vadd.f32 %v2039, %v2247
        %2249 = vmatmul.f32.gmra.mxu0 %v1972
        %v2250 = vpop.f32.mrf.mxu0
        %v2251 = vadd.f32 %v2044, %v2250
        %2252 = vmatmul.f32.gmra.mxu0 %v1973
        %v2253 = vpop.f32.mrf.mxu0
        %v2254 = vadd.f32 %v2049, %v2253
        %2255 = vmatmul.f32.gmra.mxu0 %v1974
        %v2256 = vpop.f32.mrf.mxu0
        %v2257 = vadd.f32 %v2054, %v2256
        %2258 = vmatmul.f32.gmra.mxu0 %v1975
        %v2259 = vpop.f32.mrf.mxu0
        %v2260 = vadd.f32 %v2059, %v2259
        %2261 = vmatmul.f32.gmra.mxu0 %v1976
        %v2262 = vpop.f32.mrf.mxu0
        %v2263 = vadd.f32 %v2064, %v2262
        %2264 = vmatmul.f32.gmra.mxu0 %v1977
        %v2265 = vpop.f32.mrf.mxu0
        %v2266 = vadd.f32 %v2069, %v2265
        %2267 = vmatmul.f32.gmra.mxu0 %v1978
        %v2268 = vpop.f32.mrf.mxu0
        %v2269 = vadd.f32 %v2074, %v2268
        %2270 = vdwg.mxu0
        %2271 = vmatpush.msra.mxu0 %v1961
        %2272 = vmatpush.msra.mxu0 %v1957
        %2273 = vmatpush.msra.mxu0 %v1953
        %2274 = vmatpush.msra.mxu0 %v1949
        %2275 = vmatpush.msra.mxu0 %v1945
        %2276 = vmatpush.msra.mxu0 %v1941
        %2277 = vmatpush.msra.mxu0 %v1937
        %2278 = vmatpush.msra.mxu0 %v1933
        %2279 = vmatpush.msra.mxu0 %v1929
        %2280 = vmatpush.msra.mxu0 %v1925
        %2281 = vmatpush.msra.mxu0 %v1921
        %2282 = vmatpush.msra.mxu0 %v1917
        %2283 = vmatpush.msra.mxu0 %v1913
        %2284 = vmatpush.msra.mxu0 %v1909
        %2285 = vmatpush.msra.mxu0 %v1905
        %2286 = vmatpush.msra.mxu0 %v1901
        %2287 = vmatmul.f32.gmra.mxu0 %v1963
        %v2288 = vpop.f32.mrf.mxu0
        %v2289 = vadd.f32 %v1999, %v2288
        %2290 = vmatmul.f32.gmra.mxu0 %v1964
        %v2291 = vpop.f32.mrf.mxu0
        %v2292 = vadd.f32 %v2004, %v2291
        %2293 = vmatmul.f32.gmra.mxu0 %v1965
        %v2294 = vpop.f32.mrf.mxu0
        %v2295 = vadd.f32 %v2009, %v2294
        %2296 = vmatmul.f32.gmra.mxu0 %v1966
        %v2297 = vpop.f32.mrf.mxu0
        %v2298 = vadd.f32 %v2014, %v2297
        %2299 = vmatmul.f32.gmra.mxu0 %v1967
        %v2300 = vpop.f32.mrf.mxu0
        %v2301 = vadd.f32 %v2019, %v2300
        %2302 = vmatmul.f32.gmra.mxu0 %v1968
        %v2303 = vpop.f32.mrf.mxu0
        %v2304 = vadd.f32 %v2024, %v2303
        %2305 = vmatmul.f32.gmra.mxu0 %v1969
        %v2306 = vpop.f32.mrf.mxu0
        %v2307 = vadd.f32 %v2029, %v2306
        %2308 = vmatmul.f32.gmra.mxu0 %v1970
        %v2309 = vpop.f32.mrf.mxu0
        %v2310 = vadd.f32 %v2034, %v2309
        %2311 = vmatmul.f32.gmra.mxu0 %v1971
        %v2312 = vpop.f32.mrf.mxu0
        %v2313 = vadd.f32 %v2039, %v2312
        %2314 = vmatmul.f32.gmra.mxu0 %v1972
        %v2315 = vpop.f32.mrf.mxu0
        %v2316 = vadd.f32 %v2044, %v2315
        %2317 = vmatmul.f32.gmra.mxu0 %v1973
        %v2318 = vpop.f32.mrf.mxu0
        %v2319 = vadd.f32 %v2049, %v2318
        %2320 = vmatmul.f32.gmra.mxu0 %v1974
        %v2321 = vpop.f32.mrf.mxu0
        %v2322 = vadd.f32 %v2054, %v2321
        %2323 = vmatmul.f32.gmra.mxu0 %v1975
        %v2324 = vpop.f32.mrf.mxu0
        %v2325 = vadd.f32 %v2059, %v2324
        %2326 = vmatmul.f32.gmra.mxu0 %v1976
        %v2327 = vpop.f32.mrf.mxu0
        %v2328 = vadd.f32 %v2064, %v2327
        %2329 = vmatmul.f32.gmra.mxu0 %v1977
        %v2330 = vpop.f32.mrf.mxu0
        %v2331 = vadd.f32 %v2069, %v2330
        %2332 = vmatmul.f32.gmra.mxu0 %v1978
        %v2333 = vpop.f32.mrf.mxu0
        %v2334 = vadd.f32 %v2074, %v2333
        %2335 = vdwg.mxu0
        %v2336 = vmax.f32 %v2094, 0.0
        %v2337 = vmax.f32 %v2159, 0.0
        %v2338 = vmax.f32 %v2224, 0.0
        %v2339 = vmax.f32 %v2289, 0.0
        %v2340 = vmax.f32 %v2097, 0.0
        %v2341 = vmax.f32 %v2162, 0.0
        %v2342 = vmax.f32 %v2227, 0.0
        %v2343 = vmax.f32 %v2292, 0.0
        %v2344 = vmax.f32 %v2100, 0.0
        %v2345 = vmax.f32 %v2165, 0.0
        %v2346 = vmax.f32 %v2230, 0.0
        %v2347 = vmax.f32 %v2295, 0.0
        %v2348 = vmax.f32 %v2103, 0.0
        %v2349 = vmax.f32 %v2168, 0.0
        %v2350 = vmax.f32 %v2233, 0.0
        %v2351 = vmax.f32 %v2298, 0.0
        %v2352 = vmax.f32 %v2106, 0.0
        %v2353 = vmax.f32 %v2171, 0.0
        %v2354 = vmax.f32 %v2236, 0.0
        %v2355 = vmax.f32 %v2301, 0.0
        %v2356 = vmax.f32 %v2109, 0.0
        %v2357 = vmax.f32 %v2174, 0.0
        %v2358 = vmax.f32 %v2239, 0.0
        %v2359 = vmax.f32 %v2304, 0.0
        %v2360 = vmax.f32 %v2112, 0.0
        %v2361 = vmax.f32 %v2177, 0.0
        %v2362 = vmax.f32 %v2242, 0.0
        %v2363 = vmax.f32 %v2307, 0.0
        %v2364 = vmax.f32 %v2115, 0.0
        %v2365 = vmax.f32 %v2180, 0.0
        %v2366 = vmax.f32 %v2245, 0.0
        %v2367 = vmax.f32 %v2310, 0.0
        %v2368 = vmax.f32 %v2118, 0.0
        %v2369 = vmax.f32 %v2183, 0.0
        %v2370 = vmax.f32 %v2248, 0.0
        %v2371 = vmax.f32 %v2313, 0.0
        %v2372 = vmax.f32 %v2121, 0.0
        %v2373 = vmax.f32 %v2186, 0.0
        %v2374 = vmax.f32 %v2251, 0.0
        %v2375 = vmax.f32 %v2316, 0.0
        %v2376 = vmax.f32 %v2124, 0.0
        %v2377 = vmax.f32 %v2189, 0.0
        %v2378 = vmax.f32 %v2254, 0.0
        %v2379 = vmax.f32 %v2319, 0.0
        %v2380 = vmax.f32 %v2127, 0.0
        %v2381 = vmax.f32 %v2192, 0.0
        %v2382 = vmax.f32 %v2257, 0.0
        %v2383 = vmax.f32 %v2322, 0.0
        %v2384 = vmax.f32 %v2130, 0.0
        %v2385 = vmax.f32 %v2195, 0.0
        %v2386 = vmax.f32 %v2260, 0.0
        %v2387 = vmax.f32 %v2325, 0.0
        %v2388 = vmax.f32 %v2133, 0.0
        %v2389 = vmax.f32 %v2198, 0.0
        %v2390 = vmax.f32 %v2263, 0.0
        %v2391 = vmax.f32 %v2328, 0.0
        %v2392 = vmax.f32 %v2136, 0.0
        %v2393 = vmax.f32 %v2201, 0.0
        %v2394 = vmax.f32 %v2266, 0.0
        %v2395 = vmax.f32 %v2331, 0.0
        %v2396 = vmax.f32 %v2139, 0.0
        %v2397 = vmax.f32 %v2204, 0.0
        %v2398 = vmax.f32 %v2269, 0.0
        %v2399 = vmax.f32 %v2334, 0.0
        %s2400 = scalar_lea.vmem %s3, 384
        %v2401 = vld [vmem:[%s2400] sm:$0xff]
        %v2402 = vld [vmem:[%s2400 + $0x8] sm:$0xff]
        %v2403 = vld [vmem:[%s2400 + $0x10] sm:$0xff]
        %v2404 = vld [vmem:[%s2400 + $0x18] sm:$0xff]
        %v2405 = vld [vmem:[%s2400 + $0x20] sm:$0xff]
        %v2406 = vld [vmem:[%s2400 + $0x28] sm:$0xff]
        %v2407 = vld [vmem:[%s2400 + $0x30] sm:$0xff]
        %v2408 = vld [vmem:[%s2400 + $0x38] sm:$0xff]
        %v2409 = vld [vmem:[%s2400 + $0x40] sm:$0xff]
        %v2410 = vld [vmem:[%s2400 + $0x48] sm:$0xff]
        %v2411 = vld [vmem:[%s2400 + $0x50] sm:$0xff]
        %v2412 = vld [vmem:[%s2400 + $0x58] sm:$0xff]
        %v2413 = vld [vmem:[%s2400 + $0x60] sm:$0xff]
        %v2414 = vld [vmem:[%s2400 + $0x68] sm:$0xff]
        %v2415 = vld [vmem:[%s2400 + $0x70] sm:$0xff]
        %v2416 = vld [vmem:[%s2400 + $0x78] sm:$0xff]
        %s2417 = scalar_lea.vmem %s4, 384
        %v2418 = vld [vmem:[%s2417] sm:$0xff]
        %v2419 = vld [vmem:[%s2417 + $0x8] sm:$0xff]
        %v2420 = vld [vmem:[%s2417 + $0x10] sm:$0xff]
        %v2421 = vld [vmem:[%s2417 + $0x18] sm:$0xff]
        %v2422 = vld [vmem:[%s2417 + $0x20] sm:$0xff]
        %v2423 = vld [vmem:[%s2417 + $0x28] sm:$0xff]
        %v2424 = vld [vmem:[%s2417 + $0x30] sm:$0xff]
        %v2425 = vld [vmem:[%s2417 + $0x38] sm:$0xff]
        %v2426 = vld [vmem:[%s2417 + $0x40] sm:$0xff]
        %v2427 = vld [vmem:[%s2417 + $0x48] sm:$0xff]
        %v2428 = vld [vmem:[%s2417 + $0x50] sm:$0xff]
        %v2429 = vld [vmem:[%s2417 + $0x58] sm:$0xff]
        %v2430 = vld [vmem:[%s2417 + $0x60] sm:$0xff]
        %v2431 = vld [vmem:[%s2417 + $0x68] sm:$0xff]
        %v2432 = vld [vmem:[%s2417 + $0x70] sm:$0xff]
        %v2433 = vld [vmem:[%s2417 + $0x78] sm:$0xff]
        %2435 = vset.pattern.permute.xlu0 0
        %2436 = vperm.xlu0 %2435, %v2418
        %v2437 = vpop.permute.xlu0 %2436
        %2440 = vset.pattern.permute.xlu0 0
        %2441 = vperm.xlu0 %2440, %v2419
        %v2442 = vpop.permute.xlu0 %2441
        %2445 = vset.pattern.permute.xlu0 0
        %2446 = vperm.xlu0 %2445, %v2420
        %v2447 = vpop.permute.xlu0 %2446
        %2450 = vset.pattern.permute.xlu0 0
        %2451 = vperm.xlu0 %2450, %v2421
        %v2452 = vpop.permute.xlu0 %2451
        %2455 = vset.pattern.permute.xlu0 0
        %2456 = vperm.xlu0 %2455, %v2422
        %v2457 = vpop.permute.xlu0 %2456
        %2460 = vset.pattern.permute.xlu0 0
        %2461 = vperm.xlu0 %2460, %v2423
        %v2462 = vpop.permute.xlu0 %2461
        %2465 = vset.pattern.permute.xlu0 0
        %2466 = vperm.xlu0 %2465, %v2424
        %v2467 = vpop.permute.xlu0 %2466
        %2470 = vset.pattern.permute.xlu0 0
        %2471 = vperm.xlu0 %2470, %v2425
        %v2472 = vpop.permute.xlu0 %2471
        %2475 = vset.pattern.permute.xlu0 0
        %2476 = vperm.xlu0 %2475, %v2426
        %v2477 = vpop.permute.xlu0 %2476
        %2480 = vset.pattern.permute.xlu0 0
        %2481 = vperm.xlu0 %2480, %v2427
        %v2482 = vpop.permute.xlu0 %2481
        %2485 = vset.pattern.permute.xlu0 0
        %2486 = vperm.xlu0 %2485, %v2428
        %v2487 = vpop.permute.xlu0 %2486
        %2490 = vset.pattern.permute.xlu0 0
        %2491 = vperm.xlu0 %2490, %v2429
        %v2492 = vpop.permute.xlu0 %2491
        %2495 = vset.pattern.permute.xlu0 0
        %2496 = vperm.xlu0 %2495, %v2430
        %v2497 = vpop.permute.xlu0 %2496
        %2500 = vset.pattern.permute.xlu0 0
        %2501 = vperm.xlu0 %2500, %v2431
        %v2502 = vpop.permute.xlu0 %2501
        %2505 = vset.pattern.permute.xlu0 0
        %2506 = vperm.xlu0 %2505, %v2432
        %v2507 = vpop.permute.xlu0 %2506
        %2510 = vset.pattern.permute.xlu0 0
        %2511 = vperm.xlu0 %2510, %v2433
        %v2512 = vpop.permute.xlu0 %2511
        %2514 = vmatpush.msra.mxu0 %v2396
        %2515 = vmatpush.msra.mxu0 %v2392
        %2516 = vmatpush.msra.mxu0 %v2388
        %2517 = vmatpush.msra.mxu0 %v2384
        %2518 = vmatpush.msra.mxu0 %v2380
        %2519 = vmatpush.msra.mxu0 %v2376
        %2520 = vmatpush.msra.mxu0 %v2372
        %2521 = vmatpush.msra.mxu0 %v2368
        %2522 = vmatpush.msra.mxu0 %v2364
        %2523 = vmatpush.msra.mxu0 %v2360
        %2524 = vmatpush.msra.mxu0 %v2356
        %2525 = vmatpush.msra.mxu0 %v2352
        %2526 = vmatpush.msra.mxu0 %v2348
        %2527 = vmatpush.msra.mxu0 %v2344
        %2528 = vmatpush.msra.mxu0 %v2340
        %2529 = vmatpush.msra.mxu0 %v2336
        %2530 = vmatmul.f32.gmra.mxu0 %v2401
        %v2531 = vpop.f32.mrf.mxu0
        %v2532 = vadd.f32 %v2437, %v2531
        %2533 = vmatmul.f32.gmra.mxu0 %v2402
        %v2534 = vpop.f32.mrf.mxu0
        %v2535 = vadd.f32 %v2442, %v2534
        %2536 = vmatmul.f32.gmra.mxu0 %v2403
        %v2537 = vpop.f32.mrf.mxu0
        %v2538 = vadd.f32 %v2447, %v2537
        %2539 = vmatmul.f32.gmra.mxu0 %v2404
        %v2540 = vpop.f32.mrf.mxu0
        %v2541 = vadd.f32 %v2452, %v2540
        %2542 = vmatmul.f32.gmra.mxu0 %v2405
        %v2543 = vpop.f32.mrf.mxu0
        %v2544 = vadd.f32 %v2457, %v2543
        %2545 = vmatmul.f32.gmra.mxu0 %v2406
        %v2546 = vpop.f32.mrf.mxu0
        %v2547 = vadd.f32 %v2462, %v2546
        %2548 = vmatmul.f32.gmra.mxu0 %v2407
        %v2549 = vpop.f32.mrf.mxu0
        %v2550 = vadd.f32 %v2467, %v2549
        %2551 = vmatmul.f32.gmra.mxu0 %v2408
        %v2552 = vpop.f32.mrf.mxu0
        %v2553 = vadd.f32 %v2472, %v2552
        %2554 = vmatmul.f32.gmra.mxu0 %v2409
        %v2555 = vpop.f32.mrf.mxu0
        %v2556 = vadd.f32 %v2477, %v2555
        %2557 = vmatmul.f32.gmra.mxu0 %v2410
        %v2558 = vpop.f32.mrf.mxu0
        %v2559 = vadd.f32 %v2482, %v2558
        %2560 = vmatmul.f32.gmra.mxu0 %v2411
        %v2561 = vpop.f32.mrf.mxu0
        %v2562 = vadd.f32 %v2487, %v2561
        %2563 = vmatmul.f32.gmra.mxu0 %v2412
        %v2564 = vpop.f32.mrf.mxu0
        %v2565 = vadd.f32 %v2492, %v2564
        %2566 = vmatmul.f32.gmra.mxu0 %v2413
        %v2567 = vpop.f32.mrf.mxu0
        %v2568 = vadd.f32 %v2497, %v2567
        %2569 = vmatmul.f32.gmra.mxu0 %v2414
        %v2570 = vpop.f32.mrf.mxu0
        %v2571 = vadd.f32 %v2502, %v2570
        %2572 = vmatmul.f32.gmra.mxu0 %v2415
        %v2573 = vpop.f32.mrf.mxu0
        %v2574 = vadd.f32 %v2507, %v2573
        %2575 = vmatmul.f32.gmra.mxu0 %v2416
        %v2576 = vpop.f32.mrf.mxu0
        %v2577 = vadd.f32 %v2512, %v2576
        %2578 = vdwg.mxu0
        %2579 = vmatpush.msra.mxu0 %v2397
        %2580 = vmatpush.msra.mxu0 %v2393
        %2581 = vmatpush.msra.mxu0 %v2389
        %2582 = vmatpush.msra.mxu0 %v2385
        %2583 = vmatpush.msra.mxu0 %v2381
        %2584 = vmatpush.msra.mxu0 %v2377
        %2585 = vmatpush.msra.mxu0 %v2373
        %2586 = vmatpush.msra.mxu0 %v2369
        %2587 = vmatpush.msra.mxu0 %v2365
        %2588 = vmatpush.msra.mxu0 %v2361
        %2589 = vmatpush.msra.mxu0 %v2357
        %2590 = vmatpush.msra.mxu0 %v2353
        %2591 = vmatpush.msra.mxu0 %v2349
        %2592 = vmatpush.msra.mxu0 %v2345
        %2593 = vmatpush.msra.mxu0 %v2341
        %2594 = vmatpush.msra.mxu0 %v2337
        %2595 = vmatmul.f32.gmra.mxu0 %v2401
        %v2596 = vpop.f32.mrf.mxu0
        %v2597 = vadd.f32 %v2437, %v2596
        %2598 = vmatmul.f32.gmra.mxu0 %v2402
        %v2599 = vpop.f32.mrf.mxu0
        %v2600 = vadd.f32 %v2442, %v2599
        %2601 = vmatmul.f32.gmra.mxu0 %v2403
        %v2602 = vpop.f32.mrf.mxu0
        %v2603 = vadd.f32 %v2447, %v2602
        %2604 = vmatmul.f32.gmra.mxu0 %v2404
        %v2605 = vpop.f32.mrf.mxu0
        %v2606 = vadd.f32 %v2452, %v2605
        %2607 = vmatmul.f32.gmra.mxu0 %v2405
        %v2608 = vpop.f32.mrf.mxu0
        %v2609 = vadd.f32 %v2457, %v2608
        %2610 = vmatmul.f32.gmra.mxu0 %v2406
        %v2611 = vpop.f32.mrf.mxu0
        %v2612 = vadd.f32 %v2462, %v2611
        %2613 = vmatmul.f32.gmra.mxu0 %v2407
        %v2614 = vpop.f32.mrf.mxu0
        %v2615 = vadd.f32 %v2467, %v2614
        %2616 = vmatmul.f32.gmra.mxu0 %v2408
        %v2617 = vpop.f32.mrf.mxu0
        %v2618 = vadd.f32 %v2472, %v2617
        %2619 = vmatmul.f32.gmra.mxu0 %v2409
        %v2620 = vpop.f32.mrf.mxu0
        %v2621 = vadd.f32 %v2477, %v2620
        %2622 = vmatmul.f32.gmra.mxu0 %v2410
        %v2623 = vpop.f32.mrf.mxu0
        %v2624 = vadd.f32 %v2482, %v2623
        %2625 = vmatmul.f32.gmra.mxu0 %v2411
        %v2626 = vpop.f32.mrf.mxu0
        %v2627 = vadd.f32 %v2487, %v2626
        %2628 = vmatmul.f32.gmra.mxu0 %v2412
        %v2629 = vpop.f32.mrf.mxu0
        %v2630 = vadd.f32 %v2492, %v2629
        %2631 = vmatmul.f32.gmra.mxu0 %v2413
        %v2632 = vpop.f32.mrf.mxu0
        %v2633 = vadd.f32 %v2497, %v2632
        %2634 = vmatmul.f32.gmra.mxu0 %v2414
        %v2635 = vpop.f32.mrf.mxu0
        %v2636 = vadd.f32 %v2502, %v2635
        %2637 = vmatmul.f32.gmra.mxu0 %v2415
        %v2638 = vpop.f32.mrf.mxu0
        %v2639 = vadd.f32 %v2507, %v2638
        %2640 = vmatmul.f32.gmra.mxu0 %v2416
        %v2641 = vpop.f32.mrf.mxu0
        %v2642 = vadd.f32 %v2512, %v2641
        %2643 = vdwg.mxu0
        %2644 = vmatpush.msra.mxu0 %v2398
        %2645 = vmatpush.msra.mxu0 %v2394
        %2646 = vmatpush.msra.mxu0 %v2390
        %2647 = vmatpush.msra.mxu0 %v2386
        %2648 = vmatpush.msra.mxu0 %v2382
        %2649 = vmatpush.msra.mxu0 %v2378
        %2650 = vmatpush.msra.mxu0 %v2374
        %2651 = vmatpush.msra.mxu0 %v2370
        %2652 = vmatpush.msra.mxu0 %v2366
        %2653 = vmatpush.msra.mxu0 %v2362
        %2654 = vmatpush.msra.mxu0 %v2358
        %2655 = vmatpush.msra.mxu0 %v2354
        %2656 = vmatpush.msra.mxu0 %v2350
        %2657 = vmatpush.msra.mxu0 %v2346
        %2658 = vmatpush.msra.mxu0 %v2342
        %2659 = vmatpush.msra.mxu0 %v2338
        %2660 = vmatmul.f32.gmra.mxu0 %v2401
        %v2661 = vpop.f32.mrf.mxu0
        %v2662 = vadd.f32 %v2437, %v2661
        %2663 = vmatmul.f32.gmra.mxu0 %v2402
        %v2664 = vpop.f32.mrf.mxu0
        %v2665 = vadd.f32 %v2442, %v2664
        %2666 = vmatmul.f32.gmra.mxu0 %v2403
        %v2667 = vpop.f32.mrf.mxu0
        %v2668 = vadd.f32 %v2447, %v2667
        %2669 = vmatmul.f32.gmra.mxu0 %v2404
        %v2670 = vpop.f32.mrf.mxu0
        %v2671 = vadd.f32 %v2452, %v2670
        %2672 = vmatmul.f32.gmra.mxu0 %v2405
        %v2673 = vpop.f32.mrf.mxu0
        %v2674 = vadd.f32 %v2457, %v2673
        %2675 = vmatmul.f32.gmra.mxu0 %v2406
        %v2676 = vpop.f32.mrf.mxu0
        %v2677 = vadd.f32 %v2462, %v2676
        %2678 = vmatmul.f32.gmra.mxu0 %v2407
        %v2679 = vpop.f32.mrf.mxu0
        %v2680 = vadd.f32 %v2467, %v2679
        %2681 = vmatmul.f32.gmra.mxu0 %v2408
        %v2682 = vpop.f32.mrf.mxu0
        %v2683 = vadd.f32 %v2472, %v2682
        %2684 = vmatmul.f32.gmra.mxu0 %v2409
        %v2685 = vpop.f32.mrf.mxu0
        %v2686 = vadd.f32 %v2477, %v2685
        %2687 = vmatmul.f32.gmra.mxu0 %v2410
        %v2688 = vpop.f32.mrf.mxu0
        %v2689 = vadd.f32 %v2482, %v2688
        %2690 = vmatmul.f32.gmra.mxu0 %v2411
        %v2691 = vpop.f32.mrf.mxu0
        %v2692 = vadd.f32 %v2487, %v2691
        %2693 = vmatmul.f32.gmra.mxu0 %v2412
        %v2694 = vpop.f32.mrf.mxu0
        %v2695 = vadd.f32 %v2492, %v2694
        %2696 = vmatmul.f32.gmra.mxu0 %v2413
        %v2697 = vpop.f32.mrf.mxu0
        %v2698 = vadd.f32 %v2497, %v2697
        %2699 = vmatmul.f32.gmra.mxu0 %v2414
        %v2700 = vpop.f32.mrf.mxu0
        %v2701 = vadd.f32 %v2502, %v2700
        %2702 = vmatmul.f32.gmra.mxu0 %v2415
        %v2703 = vpop.f32.mrf.mxu0
        %v2704 = vadd.f32 %v2507, %v2703
        %2705 = vmatmul.f32.gmra.mxu0 %v2416
        %v2706 = vpop.f32.mrf.mxu0
        %v2707 = vadd.f32 %v2512, %v2706
        %2708 = vdwg.mxu0
        %2709 = vmatpush.msra.mxu0 %v2399
        %2710 = vmatpush.msra.mxu0 %v2395
        %2711 = vmatpush.msra.mxu0 %v2391
        %2712 = vmatpush.msra.mxu0 %v2387
        %2713 = vmatpush.msra.mxu0 %v2383
        %2714 = vmatpush.msra.mxu0 %v2379
        %2715 = vmatpush.msra.mxu0 %v2375
        %2716 = vmatpush.msra.mxu0 %v2371
        %2717 = vmatpush.msra.mxu0 %v2367
        %2718 = vmatpush.msra.mxu0 %v2363
        %2719 = vmatpush.msra.mxu0 %v2359
        %2720 = vmatpush.msra.mxu0 %v2355
        %2721 = vmatpush.msra.mxu0 %v2351
        %2722 = vmatpush.msra.mxu0 %v2347
        %2723 = vmatpush.msra.mxu0 %v2343
        %2724 = vmatpush.msra.mxu0 %v2339
        %2725 = vmatmul.f32.gmra.mxu0 %v2401
        %v2726 = vpop.f32.mrf.mxu0
        %v2727 = vadd.f32 %v2437, %v2726
        %2728 = vmatmul.f32.gmra.mxu0 %v2402
        %v2729 = vpop.f32.mrf.mxu0
        %v2730 = vadd.f32 %v2442, %v2729
        %2731 = vmatmul.f32.gmra.mxu0 %v2403
        %v2732 = vpop.f32.mrf.mxu0
        %v2733 = vadd.f32 %v2447, %v2732
        %2734 = vmatmul.f32.gmra.mxu0 %v2404
        %v2735 = vpop.f32.mrf.mxu0
        %v2736 = vadd.f32 %v2452, %v2735
        %2737 = vmatmul.f32.gmra.mxu0 %v2405
        %v2738 = vpop.f32.mrf.mxu0
        %v2739 = vadd.f32 %v2457, %v2738
        %2740 = vmatmul.f32.gmra.mxu0 %v2406
        %v2741 = vpop.f32.mrf.mxu0
        %v2742 = vadd.f32 %v2462, %v2741
        %2743 = vmatmul.f32.gmra.mxu0 %v2407
        %v2744 = vpop.f32.mrf.mxu0
        %v2745 = vadd.f32 %v2467, %v2744
        %2746 = vmatmul.f32.gmra.mxu0 %v2408
        %v2747 = vpop.f32.mrf.mxu0
        %v2748 = vadd.f32 %v2472, %v2747
        %2749 = vmatmul.f32.gmra.mxu0 %v2409
        %v2750 = vpop.f32.mrf.mxu0
        %v2751 = vadd.f32 %v2477, %v2750
        %2752 = vmatmul.f32.gmra.mxu0 %v2410
        %v2753 = vpop.f32.mrf.mxu0
        %v2754 = vadd.f32 %v2482, %v2753
        %2755 = vmatmul.f32.gmra.mxu0 %v2411
        %v2756 = vpop.f32.mrf.mxu0
        %v2757 = vadd.f32 %v2487, %v2756
        %2758 = vmatmul.f32.gmra.mxu0 %v2412
        %v2759 = vpop.f32.mrf.mxu0
        %v2760 = vadd.f32 %v2492, %v2759
        %2761 = vmatmul.f32.gmra.mxu0 %v2413
        %v2762 = vpop.f32.mrf.mxu0
        %v2763 = vadd.f32 %v2497, %v2762
        %2764 = vmatmul.f32.gmra.mxu0 %v2414
        %v2765 = vpop.f32.mrf.mxu0
        %v2766 = vadd.f32 %v2502, %v2765
        %2767 = vmatmul.f32.gmra.mxu0 %v2415
        %v2768 = vpop.f32.mrf.mxu0
        %v2769 = vadd.f32 %v2507, %v2768
        %2770 = vmatmul.f32.gmra.mxu0 %v2416
        %v2771 = vpop.f32.mrf.mxu0
        %v2772 = vadd.f32 %v2512, %v2771
        %2773 = vdwg.mxu0
        %v2774 = vmax.f32 %v2532, 0.0
        %v2775 = vmax.f32 %v2597, 0.0
        %v2776 = vmax.f32 %v2662, 0.0
        %v2777 = vmax.f32 %v2727, 0.0
        %v2778 = vmax.f32 %v2535, 0.0
        %v2779 = vmax.f32 %v2600, 0.0
        %v2780 = vmax.f32 %v2665, 0.0
        %v2781 = vmax.f32 %v2730, 0.0
        %v2782 = vmax.f32 %v2538, 0.0
        %v2783 = vmax.f32 %v2603, 0.0
        %v2784 = vmax.f32 %v2668, 0.0
        %v2785 = vmax.f32 %v2733, 0.0
        %v2786 = vmax.f32 %v2541, 0.0
        %v2787 = vmax.f32 %v2606, 0.0
        %v2788 = vmax.f32 %v2671, 0.0
        %v2789 = vmax.f32 %v2736, 0.0
        %v2790 = vmax.f32 %v2544, 0.0
        %v2791 = vmax.f32 %v2609, 0.0
        %v2792 = vmax.f32 %v2674, 0.0
        %v2793 = vmax.f32 %v2739, 0.0
        %v2794 = vmax.f32 %v2547, 0.0
        %v2795 = vmax.f32 %v2612, 0.0
        %v2796 = vmax.f32 %v2677, 0.0
        %v2797 = vmax.f32 %v2742, 0.0
        %v2798 = vmax.f32 %v2550, 0.0
        %v2799 = vmax.f32 %v2615, 0.0
        %v2800 = vmax.f32 %v2680, 0.0
        %v2801 = vmax.f32 %v2745, 0.0
        %v2802 = vmax.f32 %v2553, 0.0
        %v2803 = vmax.f32 %v2618, 0.0
        %v2804 = vmax.f32 %v2683, 0.0
        %v2805 = vmax.f32 %v2748, 0.0
        %v2806 = vmax.f32 %v2556, 0.0
        %v2807 = vmax.f32 %v2621, 0.0
        %v2808 = vmax.f32 %v2686, 0.0
        %v2809 = vmax.f32 %v2751, 0.0
        %v2810 = vmax.f32 %v2559, 0.0
        %v2811 = vmax.f32 %v2624, 0.0
        %v2812 = vmax.f32 %v2689, 0.0
        %v2813 = vmax.f32 %v2754, 0.0
        %v2814 = vmax.f32 %v2562, 0.0
        %v2815 = vmax.f32 %v2627, 0.0
        %v2816 = vmax.f32 %v2692, 0.0
        %v2817 = vmax.f32 %v2757, 0.0
        %v2818 = vmax.f32 %v2565, 0.0
        %v2819 = vmax.f32 %v2630, 0.0
        %v2820 = vmax.f32 %v2695, 0.0
        %v2821 = vmax.f32 %v2760, 0.0
        %v2822 = vmax.f32 %v2568, 0.0
        %v2823 = vmax.f32 %v2633, 0.0
        %v2824 = vmax.f32 %v2698, 0.0
        %v2825 = vmax.f32 %v2763, 0.0
        %v2826 = vmax.f32 %v2571, 0.0
        %v2827 = vmax.f32 %v2636, 0.0
        %v2828 = vmax.f32 %v2701, 0.0
        %v2829 = vmax.f32 %v2766, 0.0
        %v2830 = vmax.f32 %v2574, 0.0
        %v2831 = vmax.f32 %v2639, 0.0
        %v2832 = vmax.f32 %v2704, 0.0
        %v2833 = vmax.f32 %v2769, 0.0
        %v2834 = vmax.f32 %v2577, 0.0
        %v2835 = vmax.f32 %v2642, 0.0
        %v2836 = vmax.f32 %v2707, 0.0
        %v2837 = vmax.f32 %v2772, 0.0
        %s2838 = scalar_lea.vmem %s3, 512
        %v2839 = vld [vmem:[%s2838] sm:$0xff]
        %v2840 = vld [vmem:[%s2838 + $0x8] sm:$0xff]
        %v2841 = vld [vmem:[%s2838 + $0x10] sm:$0xff]
        %v2842 = vld [vmem:[%s2838 + $0x18] sm:$0xff]
        %v2843 = vld [vmem:[%s2838 + $0x20] sm:$0xff]
        %v2844 = vld [vmem:[%s2838 + $0x28] sm:$0xff]
        %v2845 = vld [vmem:[%s2838 + $0x30] sm:$0xff]
        %v2846 = vld [vmem:[%s2838 + $0x38] sm:$0xff]
        %v2847 = vld [vmem:[%s2838 + $0x40] sm:$0xff]
        %v2848 = vld [vmem:[%s2838 + $0x48] sm:$0xff]
        %v2849 = vld [vmem:[%s2838 + $0x50] sm:$0xff]
        %v2850 = vld [vmem:[%s2838 + $0x58] sm:$0xff]
        %v2851 = vld [vmem:[%s2838 + $0x60] sm:$0xff]
        %v2852 = vld [vmem:[%s2838 + $0x68] sm:$0xff]
        %v2853 = vld [vmem:[%s2838 + $0x70] sm:$0xff]
        %v2854 = vld [vmem:[%s2838 + $0x78] sm:$0xff]
        %s2855 = scalar_lea.vmem %s4, 512
        %v2856 = vld [vmem:[%s2855] sm:$0xff]
        %v2857 = vld [vmem:[%s2855 + $0x8] sm:$0xff]
        %v2858 = vld [vmem:[%s2855 + $0x10] sm:$0xff]
        %v2859 = vld [vmem:[%s2855 + $0x18] sm:$0xff]
        %v2860 = vld [vmem:[%s2855 + $0x20] sm:$0xff]
        %v2861 = vld [vmem:[%s2855 + $0x28] sm:$0xff]
        %v2862 = vld [vmem:[%s2855 + $0x30] sm:$0xff]
        %v2863 = vld [vmem:[%s2855 + $0x38] sm:$0xff]
        %v2864 = vld [vmem:[%s2855 + $0x40] sm:$0xff]
        %v2865 = vld [vmem:[%s2855 + $0x48] sm:$0xff]
        %v2866 = vld [vmem:[%s2855 + $0x50] sm:$0xff]
        %v2867 = vld [vmem:[%s2855 + $0x58] sm:$0xff]
        %v2868 = vld [vmem:[%s2855 + $0x60] sm:$0xff]
        %v2869 = vld [vmem:[%s2855 + $0x68] sm:$0xff]
        %v2870 = vld [vmem:[%s2855 + $0x70] sm:$0xff]
        %v2871 = vld [vmem:[%s2855 + $0x78] sm:$0xff]
        %2873 = vset.pattern.permute.xlu0 0
        %2874 = vperm.xlu0 %2873, %v2856
        %v2875 = vpop.permute.xlu0 %2874
        %2878 = vset.pattern.permute.xlu0 0
        %2879 = vperm.xlu0 %2878, %v2857
        %v2880 = vpop.permute.xlu0 %2879
        %2883 = vset.pattern.permute.xlu0 0
        %2884 = vperm.xlu0 %2883, %v2858
        %v2885 = vpop.permute.xlu0 %2884
        %2888 = vset.pattern.permute.xlu0 0
        %2889 = vperm.xlu0 %2888, %v2859
        %v2890 = vpop.permute.xlu0 %2889
        %2893 = vset.pattern.permute.xlu0 0
        %2894 = vperm.xlu0 %2893, %v2860
        %v2895 = vpop.permute.xlu0 %2894
        %2898 = vset.pattern.permute.xlu0 0
        %2899 = vperm.xlu0 %2898, %v2861
        %v2900 = vpop.permute.xlu0 %2899
        %2903 = vset.pattern.permute.xlu0 0
        %2904 = vperm.xlu0 %2903, %v2862
        %v2905 = vpop.permute.xlu0 %2904
        %2908 = vset.pattern.permute.xlu0 0
        %2909 = vperm.xlu0 %2908, %v2863
        %v2910 = vpop.permute.xlu0 %2909
        %2913 = vset.pattern.permute.xlu0 0
        %2914 = vperm.xlu0 %2913, %v2864
        %v2915 = vpop.permute.xlu0 %2914
        %2918 = vset.pattern.permute.xlu0 0
        %2919 = vperm.xlu0 %2918, %v2865
        %v2920 = vpop.permute.xlu0 %2919
        %2923 = vset.pattern.permute.xlu0 0
        %2924 = vperm.xlu0 %2923, %v2866
        %v2925 = vpop.permute.xlu0 %2924
        %2928 = vset.pattern.permute.xlu0 0
        %2929 = vperm.xlu0 %2928, %v2867
        %v2930 = vpop.permute.xlu0 %2929
        %2933 = vset.pattern.permute.xlu0 0
        %2934 = vperm.xlu0 %2933, %v2868
        %v2935 = vpop.permute.xlu0 %2934
        %2938 = vset.pattern.permute.xlu0 0
        %2939 = vperm.xlu0 %2938, %v2869
        %v2940 = vpop.permute.xlu0 %2939
        %2943 = vset.pattern.permute.xlu0 0
        %2944 = vperm.xlu0 %2943, %v2870
        %v2945 = vpop.permute.xlu0 %2944
        %2948 = vset.pattern.permute.xlu0 0
        %2949 = vperm.xlu0 %2948, %v2871
        %v2950 = vpop.permute.xlu0 %2949
        %2952 = vmatpush.msra.mxu0 %v2834
        %2953 = vmatpush.msra.mxu0 %v2830
        %2954 = vmatpush.msra.mxu0 %v2826
        %2955 = vmatpush.msra.mxu0 %v2822
        %2956 = vmatpush.msra.mxu0 %v2818
        %2957 = vmatpush.msra.mxu0 %v2814
        %2958 = vmatpush.msra.mxu0 %v2810
        %2959 = vmatpush.msra.mxu0 %v2806
        %2960 = vmatpush.msra.mxu0 %v2802
        %2961 = vmatpush.msra.mxu0 %v2798
        %2962 = vmatpush.msra.mxu0 %v2794
        %2963 = vmatpush.msra.mxu0 %v2790
        %2964 = vmatpush.msra.mxu0 %v2786
        %2965 = vmatpush.msra.mxu0 %v2782
        %2966 = vmatpush.msra.mxu0 %v2778
        %2967 = vmatpush.msra.mxu0 %v2774
        %2968 = vmatmul.f32.gmra.mxu0 %v2839
        %v2969 = vpop.f32.mrf.mxu0
        %v2970 = vadd.f32 %v2875, %v2969
        %2971 = vmatmul.f32.gmra.mxu0 %v2840
        %v2972 = vpop.f32.mrf.mxu0
        %v2973 = vadd.f32 %v2880, %v2972
        %2974 = vmatmul.f32.gmra.mxu0 %v2841
        %v2975 = vpop.f32.mrf.mxu0
        %v2976 = vadd.f32 %v2885, %v2975
        %2977 = vmatmul.f32.gmra.mxu0 %v2842
        %v2978 = vpop.f32.mrf.mxu0
        %v2979 = vadd.f32 %v2890, %v2978
        %2980 = vmatmul.f32.gmra.mxu0 %v2843
        %v2981 = vpop.f32.mrf.mxu0
        %v2982 = vadd.f32 %v2895, %v2981
        %2983 = vmatmul.f32.gmra.mxu0 %v2844
        %v2984 = vpop.f32.mrf.mxu0
        %v2985 = vadd.f32 %v2900, %v2984
        %2986 = vmatmul.f32.gmra.mxu0 %v2845
        %v2987 = vpop.f32.mrf.mxu0
        %v2988 = vadd.f32 %v2905, %v2987
        %2989 = vmatmul.f32.gmra.mxu0 %v2846
        %v2990 = vpop.f32.mrf.mxu0
        %v2991 = vadd.f32 %v2910, %v2990
        %2992 = vmatmul.f32.gmra.mxu0 %v2847
        %v2993 = vpop.f32.mrf.mxu0
        %v2994 = vadd.f32 %v2915, %v2993
        %2995 = vmatmul.f32.gmra.mxu0 %v2848
        %v2996 = vpop.f32.mrf.mxu0
        %v2997 = vadd.f32 %v2920, %v2996
        %2998 = vmatmul.f32.gmra.mxu0 %v2849
        %v2999 = vpop.f32.mrf.mxu0
        %v3000 = vadd.f32 %v2925, %v2999
        %3001 = vmatmul.f32.gmra.mxu0 %v2850
        %v3002 = vpop.f32.mrf.mxu0
        %v3003 = vadd.f32 %v2930, %v3002
        %3004 = vmatmul.f32.gmra.mxu0 %v2851
        %v3005 = vpop.f32.mrf.mxu0
        %v3006 = vadd.f32 %v2935, %v3005
        %3007 = vmatmul.f32.gmra.mxu0 %v2852
        %v3008 = vpop.f32.mrf.mxu0
        %v3009 = vadd.f32 %v2940, %v3008
        %3010 = vmatmul.f32.gmra.mxu0 %v2853
        %v3011 = vpop.f32.mrf.mxu0
        %v3012 = vadd.f32 %v2945, %v3011
        %3013 = vmatmul.f32.gmra.mxu0 %v2854
        %v3014 = vpop.f32.mrf.mxu0
        %v3015 = vadd.f32 %v2950, %v3014
        %3016 = vdwg.mxu0
        %3017 = vmatpush.msra.mxu0 %v2835
        %3018 = vmatpush.msra.mxu0 %v2831
        %3019 = vmatpush.msra.mxu0 %v2827
        %3020 = vmatpush.msra.mxu0 %v2823
        %3021 = vmatpush.msra.mxu0 %v2819
        %3022 = vmatpush.msra.mxu0 %v2815
        %3023 = vmatpush.msra.mxu0 %v2811
        %3024 = vmatpush.msra.mxu0 %v2807
        %3025 = vmatpush.msra.mxu0 %v2803
        %3026 = vmatpush.msra.mxu0 %v2799
        %3027 = vmatpush.msra.mxu0 %v2795
        %3028 = vmatpush.msra.mxu0 %v2791
        %3029 = vmatpush.msra.mxu0 %v2787
        %3030 = vmatpush.msra.mxu0 %v2783
        %3031 = vmatpush.msra.mxu0 %v2779
        %3032 = vmatpush.msra.mxu0 %v2775
        %3033 = vmatmul.f32.gmra.mxu0 %v2839
        %v3034 = vpop.f32.mrf.mxu0
        %v3035 = vadd.f32 %v2875, %v3034
        %3036 = vmatmul.f32.gmra.mxu0 %v2840
        %v3037 = vpop.f32.mrf.mxu0
        %v3038 = vadd.f32 %v2880, %v3037
        %3039 = vmatmul.f32.gmra.mxu0 %v2841
        %v3040 = vpop.f32.mrf.mxu0
        %v3041 = vadd.f32 %v2885, %v3040
        %3042 = vmatmul.f32.gmra.mxu0 %v2842
        %v3043 = vpop.f32.mrf.mxu0
        %v3044 = vadd.f32 %v2890, %v3043
        %3045 = vmatmul.f32.gmra.mxu0 %v2843
        %v3046 = vpop.f32.mrf.mxu0
        %v3047 = vadd.f32 %v2895, %v3046
        %3048 = vmatmul.f32.gmra.mxu0 %v2844
        %v3049 = vpop.f32.mrf.mxu0
        %v3050 = vadd.f32 %v2900, %v3049
        %3051 = vmatmul.f32.gmra.mxu0 %v2845
        %v3052 = vpop.f32.mrf.mxu0
        %v3053 = vadd.f32 %v2905, %v3052
        %3054 = vmatmul.f32.gmra.mxu0 %v2846
        %v3055 = vpop.f32.mrf.mxu0
        %v3056 = vadd.f32 %v2910, %v3055
        %3057 = vmatmul.f32.gmra.mxu0 %v2847
        %v3058 = vpop.f32.mrf.mxu0
        %v3059 = vadd.f32 %v2915, %v3058
        %3060 = vmatmul.f32.gmra.mxu0 %v2848
        %v3061 = vpop.f32.mrf.mxu0
        %v3062 = vadd.f32 %v2920, %v3061
        %3063 = vmatmul.f32.gmra.mxu0 %v2849
        %v3064 = vpop.f32.mrf.mxu0
        %v3065 = vadd.f32 %v2925, %v3064
        %3066 = vmatmul.f32.gmra.mxu0 %v2850
        %v3067 = vpop.f32.mrf.mxu0
        %v3068 = vadd.f32 %v2930, %v3067
        %3069 = vmatmul.f32.gmra.mxu0 %v2851
        %v3070 = vpop.f32.mrf.mxu0
        %v3071 = vadd.f32 %v2935, %v3070
        %3072 = vmatmul.f32.gmra.mxu0 %v2852
        %v3073 = vpop.f32.mrf.mxu0
        %v3074 = vadd.f32 %v2940, %v3073
        %3075 = vmatmul.f32.gmra.mxu0 %v2853
        %v3076 = vpop.f32.mrf.mxu0
        %v3077 = vadd.f32 %v2945, %v3076
        %3078 = vmatmul.f32.gmra.mxu0 %v2854
        %v3079 = vpop.f32.mrf.mxu0
        %v3080 = vadd.f32 %v2950, %v3079
        %3081 = vdwg.mxu0
        %3082 = vmatpush.msra.mxu0 %v2836
        %3083 = vmatpush.msra.mxu0 %v2832
        %3084 = vmatpush.msra.mxu0 %v2828
        %3085 = vmatpush.msra.mxu0 %v2824
        %3086 = vmatpush.msra.mxu0 %v2820
        %3087 = vmatpush.msra.mxu0 %v2816
        %3088 = vmatpush.msra.mxu0 %v2812
        %3089 = vmatpush.msra.mxu0 %v2808
        %3090 = vmatpush.msra.mxu0 %v2804
        %3091 = vmatpush.msra.mxu0 %v2800
        %3092 = vmatpush.msra.mxu0 %v2796
        %3093 = vmatpush.msra.mxu0 %v2792
        %3094 = vmatpush.msra.mxu0 %v2788
        %3095 = vmatpush.msra.mxu0 %v2784
        %3096 = vmatpush.msra.mxu0 %v2780
        %3097 = vmatpush.msra.mxu0 %v2776
        %3098 = vmatmul.f32.gmra.mxu0 %v2839
        %v3099 = vpop.f32.mrf.mxu0
        %v3100 = vadd.f32 %v2875, %v3099
        %3101 = vmatmul.f32.gmra.mxu0 %v2840
        %v3102 = vpop.f32.mrf.mxu0
        %v3103 = vadd.f32 %v2880, %v3102
        %3104 = vmatmul.f32.gmra.mxu0 %v2841
        %v3105 = vpop.f32.mrf.mxu0
        %v3106 = vadd.f32 %v2885, %v3105
        %3107 = vmatmul.f32.gmra.mxu0 %v2842
        %v3108 = vpop.f32.mrf.mxu0
        %v3109 = vadd.f32 %v2890, %v3108
        %3110 = vmatmul.f32.gmra.mxu0 %v2843
        %v3111 = vpop.f32.mrf.mxu0
        %v3112 = vadd.f32 %v2895, %v3111
        %3113 = vmatmul.f32.gmra.mxu0 %v2844
        %v3114 = vpop.f32.mrf.mxu0
        %v3115 = vadd.f32 %v2900, %v3114
        %3116 = vmatmul.f32.gmra.mxu0 %v2845
        %v3117 = vpop.f32.mrf.mxu0
        %v3118 = vadd.f32 %v2905, %v3117
        %3119 = vmatmul.f32.gmra.mxu0 %v2846
        %v3120 = vpop.f32.mrf.mxu0
        %v3121 = vadd.f32 %v2910, %v3120
        %3122 = vmatmul.f32.gmra.mxu0 %v2847
        %v3123 = vpop.f32.mrf.mxu0
        %v3124 = vadd.f32 %v2915, %v3123
        %3125 = vmatmul.f32.gmra.mxu0 %v2848
        %v3126 = vpop.f32.mrf.mxu0
        %v3127 = vadd.f32 %v2920, %v3126
        %3128 = vmatmul.f32.gmra.mxu0 %v2849
        %v3129 = vpop.f32.mrf.mxu0
        %v3130 = vadd.f32 %v2925, %v3129
        %3131 = vmatmul.f32.gmra.mxu0 %v2850
        %v3132 = vpop.f32.mrf.mxu0
        %v3133 = vadd.f32 %v2930, %v3132
        %3134 = vmatmul.f32.gmra.mxu0 %v2851
        %v3135 = vpop.f32.mrf.mxu0
        %v3136 = vadd.f32 %v2935, %v3135
        %3137 = vmatmul.f32.gmra.mxu0 %v2852
        %v3138 = vpop.f32.mrf.mxu0
        %v3139 = vadd.f32 %v2940, %v3138
        %3140 = vmatmul.f32.gmra.mxu0 %v2853
        %v3141 = vpop.f32.mrf.mxu0
        %v3142 = vadd.f32 %v2945, %v3141
        %3143 = vmatmul.f32.gmra.mxu0 %v2854
        %v3144 = vpop.f32.mrf.mxu0
        %v3145 = vadd.f32 %v2950, %v3144
        %3146 = vdwg.mxu0
        %3147 = vmatpush.msra.mxu0 %v2837
        %3148 = vmatpush.msra.mxu0 %v2833
        %3149 = vmatpush.msra.mxu0 %v2829
        %3150 = vmatpush.msra.mxu0 %v2825
        %3151 = vmatpush.msra.mxu0 %v2821
        %3152 = vmatpush.msra.mxu0 %v2817
        %3153 = vmatpush.msra.mxu0 %v2813
        %3154 = vmatpush.msra.mxu0 %v2809
        %3155 = vmatpush.msra.mxu0 %v2805
        %3156 = vmatpush.msra.mxu0 %v2801
        %3157 = vmatpush.msra.mxu0 %v2797
        %3158 = vmatpush.msra.mxu0 %v2793
        %3159 = vmatpush.msra.mxu0 %v2789
        %3160 = vmatpush.msra.mxu0 %v2785
        %3161 = vmatpush.msra.mxu0 %v2781
        %3162 = vmatpush.msra.mxu0 %v2777
        %3163 = vmatmul.f32.gmra.mxu0 %v2839
        %v3164 = vpop.f32.mrf.mxu0
        %v3165 = vadd.f32 %v2875, %v3164
        %3166 = vmatmul.f32.gmra.mxu0 %v2840
        %v3167 = vpop.f32.mrf.mxu0
        %v3168 = vadd.f32 %v2880, %v3167
        %3169 = vmatmul.f32.gmra.mxu0 %v2841
        %v3170 = vpop.f32.mrf.mxu0
        %v3171 = vadd.f32 %v2885, %v3170
        %3172 = vmatmul.f32.gmra.mxu0 %v2842
        %v3173 = vpop.f32.mrf.mxu0
        %v3174 = vadd.f32 %v2890, %v3173
        %3175 = vmatmul.f32.gmra.mxu0 %v2843
        %v3176 = vpop.f32.mrf.mxu0
        %v3177 = vadd.f32 %v2895, %v3176
        %3178 = vmatmul.f32.gmra.mxu0 %v2844
        %v3179 = vpop.f32.mrf.mxu0
        %v3180 = vadd.f32 %v2900, %v3179
        %3181 = vmatmul.f32.gmra.mxu0 %v2845
        %v3182 = vpop.f32.mrf.mxu0
        %v3183 = vadd.f32 %v2905, %v3182
        %3184 = vmatmul.f32.gmra.mxu0 %v2846
        %v3185 = vpop.f32.mrf.mxu0
        %v3186 = vadd.f32 %v2910, %v3185
        %3187 = vmatmul.f32.gmra.mxu0 %v2847
        %v3188 = vpop.f32.mrf.mxu0
        %v3189 = vadd.f32 %v2915, %v3188
        %3190 = vmatmul.f32.gmra.mxu0 %v2848
        %v3191 = vpop.f32.mrf.mxu0
        %v3192 = vadd.f32 %v2920, %v3191
        %3193 = vmatmul.f32.gmra.mxu0 %v2849
        %v3194 = vpop.f32.mrf.mxu0
        %v3195 = vadd.f32 %v2925, %v3194
        %3196 = vmatmul.f32.gmra.mxu0 %v2850
        %v3197 = vpop.f32.mrf.mxu0
        %v3198 = vadd.f32 %v2930, %v3197
        %3199 = vmatmul.f32.gmra.mxu0 %v2851
        %v3200 = vpop.f32.mrf.mxu0
        %v3201 = vadd.f32 %v2935, %v3200
        %3202 = vmatmul.f32.gmra.mxu0 %v2852
        %v3203 = vpop.f32.mrf.mxu0
        %v3204 = vadd.f32 %v2940, %v3203
        %3205 = vmatmul.f32.gmra.mxu0 %v2853
        %v3206 = vpop.f32.mrf.mxu0
        %v3207 = vadd.f32 %v2945, %v3206
        %3208 = vmatmul.f32.gmra.mxu0 %v2854
        %v3209 = vpop.f32.mrf.mxu0
        %v3210 = vadd.f32 %v2950, %v3209
        %3211 = vdwg.mxu0
        %v3212 = vmax.f32 %v2970, 0.0
        %v3213 = vmax.f32 %v3035, 0.0
        %v3214 = vmax.f32 %v3100, 0.0
        %v3215 = vmax.f32 %v3165, 0.0
        %v3216 = vmax.f32 %v2973, 0.0
        %v3217 = vmax.f32 %v3038, 0.0
        %v3218 = vmax.f32 %v3103, 0.0
        %v3219 = vmax.f32 %v3168, 0.0
        %v3220 = vmax.f32 %v2976, 0.0
        %v3221 = vmax.f32 %v3041, 0.0
        %v3222 = vmax.f32 %v3106, 0.0
        %v3223 = vmax.f32 %v3171, 0.0
        %v3224 = vmax.f32 %v2979, 0.0
        %v3225 = vmax.f32 %v3044, 0.0
        %v3226 = vmax.f32 %v3109, 0.0
        %v3227 = vmax.f32 %v3174, 0.0
        %v3228 = vmax.f32 %v2982, 0.0
        %v3229 = vmax.f32 %v3047, 0.0
        %v3230 = vmax.f32 %v3112, 0.0
        %v3231 = vmax.f32 %v3177, 0.0
        %v3232 = vmax.f32 %v2985, 0.0
        %v3233 = vmax.f32 %v3050, 0.0
        %v3234 = vmax.f32 %v3115, 0.0
        %v3235 = vmax.f32 %v3180, 0.0
        %v3236 = vmax.f32 %v2988, 0.0
        %v3237 = vmax.f32 %v3053, 0.0
        %v3238 = vmax.f32 %v3118, 0.0
        %v3239 = vmax.f32 %v3183, 0.0
        %v3240 = vmax.f32 %v2991, 0.0
        %v3241 = vmax.f32 %v3056, 0.0
        %v3242 = vmax.f32 %v3121, 0.0
        %v3243 = vmax.f32 %v3186, 0.0
        %v3244 = vmax.f32 %v2994, 0.0
        %v3245 = vmax.f32 %v3059, 0.0
        %v3246 = vmax.f32 %v3124, 0.0
        %v3247 = vmax.f32 %v3189, 0.0
        %v3248 = vmax.f32 %v2997, 0.0
        %v3249 = vmax.f32 %v3062, 0.0
        %v3250 = vmax.f32 %v3127, 0.0
        %v3251 = vmax.f32 %v3192, 0.0
        %v3252 = vmax.f32 %v3000, 0.0
        %v3253 = vmax.f32 %v3065, 0.0
        %v3254 = vmax.f32 %v3130, 0.0
        %v3255 = vmax.f32 %v3195, 0.0
        %v3256 = vmax.f32 %v3003, 0.0
        %v3257 = vmax.f32 %v3068, 0.0
        %v3258 = vmax.f32 %v3133, 0.0
        %v3259 = vmax.f32 %v3198, 0.0
        %v3260 = vmax.f32 %v3006, 0.0
        %v3261 = vmax.f32 %v3071, 0.0
        %v3262 = vmax.f32 %v3136, 0.0
        %v3263 = vmax.f32 %v3201, 0.0
        %v3264 = vmax.f32 %v3009, 0.0
        %v3265 = vmax.f32 %v3074, 0.0
        %v3266 = vmax.f32 %v3139, 0.0
        %v3267 = vmax.f32 %v3204, 0.0
        %v3268 = vmax.f32 %v3012, 0.0
        %v3269 = vmax.f32 %v3077, 0.0
        %v3270 = vmax.f32 %v3142, 0.0
        %v3271 = vmax.f32 %v3207, 0.0
        %v3272 = vmax.f32 %v3015, 0.0
        %v3273 = vmax.f32 %v3080, 0.0
        %v3274 = vmax.f32 %v3145, 0.0
        %v3275 = vmax.f32 %v3210, 0.0
        %s3276 = scalar_lea.vmem %s3, 640
        %v3277 = vld [vmem:[%s3276] sm:$0xff]
        %v3278 = vld [vmem:[%s3276 + $0x8] sm:$0xff]
        %v3279 = vld [vmem:[%s3276 + $0x10] sm:$0xff]
        %v3280 = vld [vmem:[%s3276 + $0x18] sm:$0xff]
        %v3281 = vld [vmem:[%s3276 + $0x20] sm:$0xff]
        %v3282 = vld [vmem:[%s3276 + $0x28] sm:$0xff]
        %v3283 = vld [vmem:[%s3276 + $0x30] sm:$0xff]
        %v3284 = vld [vmem:[%s3276 + $0x38] sm:$0xff]
        %v3285 = vld [vmem:[%s3276 + $0x40] sm:$0xff]
        %v3286 = vld [vmem:[%s3276 + $0x48] sm:$0xff]
        %v3287 = vld [vmem:[%s3276 + $0x50] sm:$0xff]
        %v3288 = vld [vmem:[%s3276 + $0x58] sm:$0xff]
        %v3289 = vld [vmem:[%s3276 + $0x60] sm:$0xff]
        %v3290 = vld [vmem:[%s3276 + $0x68] sm:$0xff]
        %v3291 = vld [vmem:[%s3276 + $0x70] sm:$0xff]
        %v3292 = vld [vmem:[%s3276 + $0x78] sm:$0xff]
        %s3293 = scalar_lea.vmem %s4, 640
        %v3294 = vld [vmem:[%s3293] sm:$0xff]
        %v3295 = vld [vmem:[%s3293 + $0x8] sm:$0xff]
        %v3296 = vld [vmem:[%s3293 + $0x10] sm:$0xff]
        %v3297 = vld [vmem:[%s3293 + $0x18] sm:$0xff]
        %v3298 = vld [vmem:[%s3293 + $0x20] sm:$0xff]
        %v3299 = vld [vmem:[%s3293 + $0x28] sm:$0xff]
        %v3300 = vld [vmem:[%s3293 + $0x30] sm:$0xff]
        %v3301 = vld [vmem:[%s3293 + $0x38] sm:$0xff]
        %v3302 = vld [vmem:[%s3293 + $0x40] sm:$0xff]
        %v3303 = vld [vmem:[%s3293 + $0x48] sm:$0xff]
        %v3304 = vld [vmem:[%s3293 + $0x50] sm:$0xff]
        %v3305 = vld [vmem:[%s3293 + $0x58] sm:$0xff]
        %v3306 = vld [vmem:[%s3293 + $0x60] sm:$0xff]
        %v3307 = vld [vmem:[%s3293 + $0x68] sm:$0xff]
        %v3308 = vld [vmem:[%s3293 + $0x70] sm:$0xff]
        %v3309 = vld [vmem:[%s3293 + $0x78] sm:$0xff]
        %3311 = vset.pattern.permute.xlu0 0
        %3312 = vperm.xlu0 %3311, %v3294
        %v3313 = vpop.permute.xlu0 %3312
        %3316 = vset.pattern.permute.xlu0 0
        %3317 = vperm.xlu0 %3316, %v3295
        %v3318 = vpop.permute.xlu0 %3317
        %3321 = vset.pattern.permute.xlu0 0
        %3322 = vperm.xlu0 %3321, %v3296
        %v3323 = vpop.permute.xlu0 %3322
        %3326 = vset.pattern.permute.xlu0 0
        %3327 = vperm.xlu0 %3326, %v3297
        %v3328 = vpop.permute.xlu0 %3327
        %3331 = vset.pattern.permute.xlu0 0
        %3332 = vperm.xlu0 %3331, %v3298
        %v3333 = vpop.permute.xlu0 %3332
        %3336 = vset.pattern.permute.xlu0 0
        %3337 = vperm.xlu0 %3336, %v3299
        %v3338 = vpop.permute.xlu0 %3337
        %3341 = vset.pattern.permute.xlu0 0
        %3342 = vperm.xlu0 %3341, %v3300
        %v3343 = vpop.permute.xlu0 %3342
        %3346 = vset.pattern.permute.xlu0 0
        %3347 = vperm.xlu0 %3346, %v3301
        %v3348 = vpop.permute.xlu0 %3347
        %3351 = vset.pattern.permute.xlu0 0
        %3352 = vperm.xlu0 %3351, %v3302
        %v3353 = vpop.permute.xlu0 %3352
        %3356 = vset.pattern.permute.xlu0 0
        %3357 = vperm.xlu0 %3356, %v3303
        %v3358 = vpop.permute.xlu0 %3357
        %3361 = vset.pattern.permute.xlu0 0
        %3362 = vperm.xlu0 %3361, %v3304
        %v3363 = vpop.permute.xlu0 %3362
        %3366 = vset.pattern.permute.xlu0 0
        %3367 = vperm.xlu0 %3366, %v3305
        %v3368 = vpop.permute.xlu0 %3367
        %3371 = vset.pattern.permute.xlu0 0
        %3372 = vperm.xlu0 %3371, %v3306
        %v3373 = vpop.permute.xlu0 %3372
        %3376 = vset.pattern.permute.xlu0 0
        %3377 = vperm.xlu0 %3376, %v3307
        %v3378 = vpop.permute.xlu0 %3377
        %3381 = vset.pattern.permute.xlu0 0
        %3382 = vperm.xlu0 %3381, %v3308
        %v3383 = vpop.permute.xlu0 %3382
        %3386 = vset.pattern.permute.xlu0 0
        %3387 = vperm.xlu0 %3386, %v3309
        %v3388 = vpop.permute.xlu0 %3387
        %3390 = vmatpush.msra.mxu0 %v3272
        %3391 = vmatpush.msra.mxu0 %v3268
        %3392 = vmatpush.msra.mxu0 %v3264
        %3393 = vmatpush.msra.mxu0 %v3260
        %3394 = vmatpush.msra.mxu0 %v3256
        %3395 = vmatpush.msra.mxu0 %v3252
        %3396 = vmatpush.msra.mxu0 %v3248
        %3397 = vmatpush.msra.mxu0 %v3244
        %3398 = vmatpush.msra.mxu0 %v3240
        %3399 = vmatpush.msra.mxu0 %v3236
        %3400 = vmatpush.msra.mxu0 %v3232
        %3401 = vmatpush.msra.mxu0 %v3228
        %3402 = vmatpush.msra.mxu0 %v3224
        %3403 = vmatpush.msra.mxu0 %v3220
        %3404 = vmatpush.msra.mxu0 %v3216
        %3405 = vmatpush.msra.mxu0 %v3212
        %3406 = vmatmul.f32.gmra.mxu0 %v3277
        %v3407 = vpop.f32.mrf.mxu0
        %v3408 = vadd.f32 %v3313, %v3407
        %3409 = vmatmul.f32.gmra.mxu0 %v3278
        %v3410 = vpop.f32.mrf.mxu0
        %v3411 = vadd.f32 %v3318, %v3410
        %3412 = vmatmul.f32.gmra.mxu0 %v3279
        %v3413 = vpop.f32.mrf.mxu0
        %v3414 = vadd.f32 %v3323, %v3413
        %3415 = vmatmul.f32.gmra.mxu0 %v3280
        %v3416 = vpop.f32.mrf.mxu0
        %v3417 = vadd.f32 %v3328, %v3416
        %3418 = vmatmul.f32.gmra.mxu0 %v3281
        %v3419 = vpop.f32.mrf.mxu0
        %v3420 = vadd.f32 %v3333, %v3419
        %3421 = vmatmul.f32.gmra.mxu0 %v3282
        %v3422 = vpop.f32.mrf.mxu0
        %v3423 = vadd.f32 %v3338, %v3422
        %3424 = vmatmul.f32.gmra.mxu0 %v3283
        %v3425 = vpop.f32.mrf.mxu0
        %v3426 = vadd.f32 %v3343, %v3425
        %3427 = vmatmul.f32.gmra.mxu0 %v3284
        %v3428 = vpop.f32.mrf.mxu0
        %v3429 = vadd.f32 %v3348, %v3428
        %3430 = vmatmul.f32.gmra.mxu0 %v3285
        %v3431 = vpop.f32.mrf.mxu0
        %v3432 = vadd.f32 %v3353, %v3431
        %3433 = vmatmul.f32.gmra.mxu0 %v3286
        %v3434 = vpop.f32.mrf.mxu0
        %v3435 = vadd.f32 %v3358, %v3434
        %3436 = vmatmul.f32.gmra.mxu0 %v3287
        %v3437 = vpop.f32.mrf.mxu0
        %v3438 = vadd.f32 %v3363, %v3437
        %3439 = vmatmul.f32.gmra.mxu0 %v3288
        %v3440 = vpop.f32.mrf.mxu0
        %v3441 = vadd.f32 %v3368, %v3440
        %3442 = vmatmul.f32.gmra.mxu0 %v3289
        %v3443 = vpop.f32.mrf.mxu0
        %v3444 = vadd.f32 %v3373, %v3443
        %3445 = vmatmul.f32.gmra.mxu0 %v3290
        %v3446 = vpop.f32.mrf.mxu0
        %v3447 = vadd.f32 %v3378, %v3446
        %3448 = vmatmul.f32.gmra.mxu0 %v3291
        %v3449 = vpop.f32.mrf.mxu0
        %v3450 = vadd.f32 %v3383, %v3449
        %3451 = vmatmul.f32.gmra.mxu0 %v3292
        %v3452 = vpop.f32.mrf.mxu0
        %v3453 = vadd.f32 %v3388, %v3452
        %3454 = vdwg.mxu0
        %3455 = vmatpush.msra.mxu0 %v3273
        %3456 = vmatpush.msra.mxu0 %v3269
        %3457 = vmatpush.msra.mxu0 %v3265
        %3458 = vmatpush.msra.mxu0 %v3261
        %3459 = vmatpush.msra.mxu0 %v3257
        %3460 = vmatpush.msra.mxu0 %v3253
        %3461 = vmatpush.msra.mxu0 %v3249
        %3462 = vmatpush.msra.mxu0 %v3245
        %3463 = vmatpush.msra.mxu0 %v3241
        %3464 = vmatpush.msra.mxu0 %v3237
        %3465 = vmatpush.msra.mxu0 %v3233
        %3466 = vmatpush.msra.mxu0 %v3229
        %3467 = vmatpush.msra.mxu0 %v3225
        %3468 = vmatpush.msra.mxu0 %v3221
        %3469 = vmatpush.msra.mxu0 %v3217
        %3470 = vmatpush.msra.mxu0 %v3213
        %3471 = vmatmul.f32.gmra.mxu0 %v3277
        %v3472 = vpop.f32.mrf.mxu0
        %v3473 = vadd.f32 %v3313, %v3472
        %3474 = vmatmul.f32.gmra.mxu0 %v3278
        %v3475 = vpop.f32.mrf.mxu0
        %v3476 = vadd.f32 %v3318, %v3475
        %3477 = vmatmul.f32.gmra.mxu0 %v3279
        %v3478 = vpop.f32.mrf.mxu0
        %v3479 = vadd.f32 %v3323, %v3478
        %3480 = vmatmul.f32.gmra.mxu0 %v3280
        %v3481 = vpop.f32.mrf.mxu0
        %v3482 = vadd.f32 %v3328, %v3481
        %3483 = vmatmul.f32.gmra.mxu0 %v3281
        %v3484 = vpop.f32.mrf.mxu0
        %v3485 = vadd.f32 %v3333, %v3484
        %3486 = vmatmul.f32.gmra.mxu0 %v3282
        %v3487 = vpop.f32.mrf.mxu0
        %v3488 = vadd.f32 %v3338, %v3487
        %3489 = vmatmul.f32.gmra.mxu0 %v3283
        %v3490 = vpop.f32.mrf.mxu0
        %v3491 = vadd.f32 %v3343, %v3490
        %3492 = vmatmul.f32.gmra.mxu0 %v3284
        %v3493 = vpop.f32.mrf.mxu0
        %v3494 = vadd.f32 %v3348, %v3493
        %3495 = vmatmul.f32.gmra.mxu0 %v3285
        %v3496 = vpop.f32.mrf.mxu0
        %v3497 = vadd.f32 %v3353, %v3496
        %3498 = vmatmul.f32.gmra.mxu0 %v3286
        %v3499 = vpop.f32.mrf.mxu0
        %v3500 = vadd.f32 %v3358, %v3499
        %3501 = vmatmul.f32.gmra.mxu0 %v3287
        %v3502 = vpop.f32.mrf.mxu0
        %v3503 = vadd.f32 %v3363, %v3502
        %3504 = vmatmul.f32.gmra.mxu0 %v3288
        %v3505 = vpop.f32.mrf.mxu0
        %v3506 = vadd.f32 %v3368, %v3505
        %3507 = vmatmul.f32.gmra.mxu0 %v3289
        %v3508 = vpop.f32.mrf.mxu0
        %v3509 = vadd.f32 %v3373, %v3508
        %3510 = vmatmul.f32.gmra.mxu0 %v3290
        %v3511 = vpop.f32.mrf.mxu0
        %v3512 = vadd.f32 %v3378, %v3511
        %3513 = vmatmul.f32.gmra.mxu0 %v3291
        %v3514 = vpop.f32.mrf.mxu0
        %v3515 = vadd.f32 %v3383, %v3514
        %3516 = vmatmul.f32.gmra.mxu0 %v3292
        %v3517 = vpop.f32.mrf.mxu0
        %v3518 = vadd.f32 %v3388, %v3517
        %3519 = vdwg.mxu0
        %3520 = vmatpush.msra.mxu0 %v3274
        %3521 = vmatpush.msra.mxu0 %v3270
        %3522 = vmatpush.msra.mxu0 %v3266
        %3523 = vmatpush.msra.mxu0 %v3262
        %3524 = vmatpush.msra.mxu0 %v3258
        %3525 = vmatpush.msra.mxu0 %v3254
        %3526 = vmatpush.msra.mxu0 %v3250
        %3527 = vmatpush.msra.mxu0 %v3246
        %3528 = vmatpush.msra.mxu0 %v3242
        %3529 = vmatpush.msra.mxu0 %v3238
        %3530 = vmatpush.msra.mxu0 %v3234
        %3531 = vmatpush.msra.mxu0 %v3230
        %3532 = vmatpush.msra.mxu0 %v3226
        %3533 = vmatpush.msra.mxu0 %v3222
        %3534 = vmatpush.msra.mxu0 %v3218
        %3535 = vmatpush.msra.mxu0 %v3214
        %3536 = vmatmul.f32.gmra.mxu0 %v3277
        %v3537 = vpop.f32.mrf.mxu0
        %v3538 = vadd.f32 %v3313, %v3537
        %3539 = vmatmul.f32.gmra.mxu0 %v3278
        %v3540 = vpop.f32.mrf.mxu0
        %v3541 = vadd.f32 %v3318, %v3540
        %3542 = vmatmul.f32.gmra.mxu0 %v3279
        %v3543 = vpop.f32.mrf.mxu0
        %v3544 = vadd.f32 %v3323, %v3543
        %3545 = vmatmul.f32.gmra.mxu0 %v3280
        %v3546 = vpop.f32.mrf.mxu0
        %v3547 = vadd.f32 %v3328, %v3546
        %3548 = vmatmul.f32.gmra.mxu0 %v3281
        %v3549 = vpop.f32.mrf.mxu0
        %v3550 = vadd.f32 %v3333, %v3549
        %3551 = vmatmul.f32.gmra.mxu0 %v3282
        %v3552 = vpop.f32.mrf.mxu0
        %v3553 = vadd.f32 %v3338, %v3552
        %3554 = vmatmul.f32.gmra.mxu0 %v3283
        %v3555 = vpop.f32.mrf.mxu0
        %v3556 = vadd.f32 %v3343, %v3555
        %3557 = vmatmul.f32.gmra.mxu0 %v3284
        %v3558 = vpop.f32.mrf.mxu0
        %v3559 = vadd.f32 %v3348, %v3558
        %3560 = vmatmul.f32.gmra.mxu0 %v3285
        %v3561 = vpop.f32.mrf.mxu0
        %v3562 = vadd.f32 %v3353, %v3561
        %3563 = vmatmul.f32.gmra.mxu0 %v3286
        %v3564 = vpop.f32.mrf.mxu0
        %v3565 = vadd.f32 %v3358, %v3564
        %3566 = vmatmul.f32.gmra.mxu0 %v3287
        %v3567 = vpop.f32.mrf.mxu0
        %v3568 = vadd.f32 %v3363, %v3567
        %3569 = vmatmul.f32.gmra.mxu0 %v3288
        %v3570 = vpop.f32.mrf.mxu0
        %v3571 = vadd.f32 %v3368, %v3570
        %3572 = vmatmul.f32.gmra.mxu0 %v3289
        %v3573 = vpop.f32.mrf.mxu0
        %v3574 = vadd.f32 %v3373, %v3573
        %3575 = vmatmul.f32.gmra.mxu0 %v3290
        %v3576 = vpop.f32.mrf.mxu0
        %v3577 = vadd.f32 %v3378, %v3576
        %3578 = vmatmul.f32.gmra.mxu0 %v3291
        %v3579 = vpop.f32.mrf.mxu0
        %v3580 = vadd.f32 %v3383, %v3579
        %3581 = vmatmul.f32.gmra.mxu0 %v3292
        %v3582 = vpop.f32.mrf.mxu0
        %v3583 = vadd.f32 %v3388, %v3582
        %3584 = vdwg.mxu0
        %3585 = vmatpush.msra.mxu0 %v3275
        %3586 = vmatpush.msra.mxu0 %v3271
        %3587 = vmatpush.msra.mxu0 %v3267
        %3588 = vmatpush.msra.mxu0 %v3263
        %3589 = vmatpush.msra.mxu0 %v3259
        %3590 = vmatpush.msra.mxu0 %v3255
        %3591 = vmatpush.msra.mxu0 %v3251
        %3592 = vmatpush.msra.mxu0 %v3247
        %3593 = vmatpush.msra.mxu0 %v3243
        %3594 = vmatpush.msra.mxu0 %v3239
        %3595 = vmatpush.msra.mxu0 %v3235
        %3596 = vmatpush.msra.mxu0 %v3231
        %3597 = vmatpush.msra.mxu0 %v3227
        %3598 = vmatpush.msra.mxu0 %v3223
        %3599 = vmatpush.msra.mxu0 %v3219
        %3600 = vmatpush.msra.mxu0 %v3215
        %3601 = vmatmul.f32.gmra.mxu0 %v3277
        %v3602 = vpop.f32.mrf.mxu0
        %v3603 = vadd.f32 %v3313, %v3602
        %3604 = vmatmul.f32.gmra.mxu0 %v3278
        %v3605 = vpop.f32.mrf.mxu0
        %v3606 = vadd.f32 %v3318, %v3605
        %3607 = vmatmul.f32.gmra.mxu0 %v3279
        %v3608 = vpop.f32.mrf.mxu0
        %v3609 = vadd.f32 %v3323, %v3608
        %3610 = vmatmul.f32.gmra.mxu0 %v3280
        %v3611 = vpop.f32.mrf.mxu0
        %v3612 = vadd.f32 %v3328, %v3611
        %3613 = vmatmul.f32.gmra.mxu0 %v3281
        %v3614 = vpop.f32.mrf.mxu0
        %v3615 = vadd.f32 %v3333, %v3614
        %3616 = vmatmul.f32.gmra.mxu0 %v3282
        %v3617 = vpop.f32.mrf.mxu0
        %v3618 = vadd.f32 %v3338, %v3617
        %3619 = vmatmul.f32.gmra.mxu0 %v3283
        %v3620 = vpop.f32.mrf.mxu0
        %v3621 = vadd.f32 %v3343, %v3620
        %3622 = vmatmul.f32.gmra.mxu0 %v3284
        %v3623 = vpop.f32.mrf.mxu0
        %v3624 = vadd.f32 %v3348, %v3623
        %3625 = vmatmul.f32.gmra.mxu0 %v3285
        %v3626 = vpop.f32.mrf.mxu0
        %v3627 = vadd.f32 %v3353, %v3626
        %3628 = vmatmul.f32.gmra.mxu0 %v3286
        %v3629 = vpop.f32.mrf.mxu0
        %v3630 = vadd.f32 %v3358, %v3629
        %3631 = vmatmul.f32.gmra.mxu0 %v3287
        %v3632 = vpop.f32.mrf.mxu0
        %v3633 = vadd.f32 %v3363, %v3632
        %3634 = vmatmul.f32.gmra.mxu0 %v3288
        %v3635 = vpop.f32.mrf.mxu0
        %v3636 = vadd.f32 %v3368, %v3635
        %3637 = vmatmul.f32.gmra.mxu0 %v3289
        %v3638 = vpop.f32.mrf.mxu0
        %v3639 = vadd.f32 %v3373, %v3638
        %3640 = vmatmul.f32.gmra.mxu0 %v3290
        %v3641 = vpop.f32.mrf.mxu0
        %v3642 = vadd.f32 %v3378, %v3641
        %3643 = vmatmul.f32.gmra.mxu0 %v3291
        %v3644 = vpop.f32.mrf.mxu0
        %v3645 = vadd.f32 %v3383, %v3644
        %3646 = vmatmul.f32.gmra.mxu0 %v3292
        %v3647 = vpop.f32.mrf.mxu0
        %v3648 = vadd.f32 %v3388, %v3647
        %3649 = vdwg.mxu0
        %v3650 = vmax.f32 %v3408, 0.0
        %v3651 = vmax.f32 %v3473, 0.0
        %v3652 = vmax.f32 %v3538, 0.0
        %v3653 = vmax.f32 %v3603, 0.0
        %v3654 = vmax.f32 %v3411, 0.0
        %v3655 = vmax.f32 %v3476, 0.0
        %v3656 = vmax.f32 %v3541, 0.0
        %v3657 = vmax.f32 %v3606, 0.0
        %v3658 = vmax.f32 %v3414, 0.0
        %v3659 = vmax.f32 %v3479, 0.0
        %v3660 = vmax.f32 %v3544, 0.0
        %v3661 = vmax.f32 %v3609, 0.0
        %v3662 = vmax.f32 %v3417, 0.0
        %v3663 = vmax.f32 %v3482, 0.0
        %v3664 = vmax.f32 %v3547, 0.0
        %v3665 = vmax.f32 %v3612, 0.0
        %v3666 = vmax.f32 %v3420, 0.0
        %v3667 = vmax.f32 %v3485, 0.0
        %v3668 = vmax.f32 %v3550, 0.0
        %v3669 = vmax.f32 %v3615, 0.0
        %v3670 = vmax.f32 %v3423, 0.0
        %v3671 = vmax.f32 %v3488, 0.0
        %v3672 = vmax.f32 %v3553, 0.0
        %v3673 = vmax.f32 %v3618, 0.0
        %v3674 = vmax.f32 %v3426, 0.0
        %v3675 = vmax.f32 %v3491, 0.0
        %v3676 = vmax.f32 %v3556, 0.0
        %v3677 = vmax.f32 %v3621, 0.0
        %v3678 = vmax.f32 %v3429, 0.0
        %v3679 = vmax.f32 %v3494, 0.0
        %v3680 = vmax.f32 %v3559, 0.0
        %v3681 = vmax.f32 %v3624, 0.0
        %v3682 = vmax.f32 %v3432, 0.0
        %v3683 = vmax.f32 %v3497, 0.0
        %v3684 = vmax.f32 %v3562, 0.0
        %v3685 = vmax.f32 %v3627, 0.0
        %v3686 = vmax.f32 %v3435, 0.0
        %v3687 = vmax.f32 %v3500, 0.0
        %v3688 = vmax.f32 %v3565, 0.0
        %v3689 = vmax.f32 %v3630, 0.0
        %v3690 = vmax.f32 %v3438, 0.0
        %v3691 = vmax.f32 %v3503, 0.0
        %v3692 = vmax.f32 %v3568, 0.0
        %v3693 = vmax.f32 %v3633, 0.0
        %v3694 = vmax.f32 %v3441, 0.0
        %v3695 = vmax.f32 %v3506, 0.0
        %v3696 = vmax.f32 %v3571, 0.0
        %v3697 = vmax.f32 %v3636, 0.0
        %v3698 = vmax.f32 %v3444, 0.0
        %v3699 = vmax.f32 %v3509, 0.0
        %v3700 = vmax.f32 %v3574, 0.0
        %v3701 = vmax.f32 %v3639, 0.0
        %v3702 = vmax.f32 %v3447, 0.0
        %v3703 = vmax.f32 %v3512, 0.0
        %v3704 = vmax.f32 %v3577, 0.0
        %v3705 = vmax.f32 %v3642, 0.0
        %v3706 = vmax.f32 %v3450, 0.0
        %v3707 = vmax.f32 %v3515, 0.0
        %v3708 = vmax.f32 %v3580, 0.0
        %v3709 = vmax.f32 %v3645, 0.0
        %v3710 = vmax.f32 %v3453, 0.0
        %v3711 = vmax.f32 %v3518, 0.0
        %v3712 = vmax.f32 %v3583, 0.0
        %v3713 = vmax.f32 %v3648, 0.0
        %s3714 = scalar_lea.vmem %s3, 768
        %v3715 = vld [vmem:[%s3714] sm:$0xff]
        %v3716 = vld [vmem:[%s3714 + $0x8] sm:$0xff]
        %v3717 = vld [vmem:[%s3714 + $0x10] sm:$0xff]
        %v3718 = vld [vmem:[%s3714 + $0x18] sm:$0xff]
        %v3719 = vld [vmem:[%s3714 + $0x20] sm:$0xff]
        %v3720 = vld [vmem:[%s3714 + $0x28] sm:$0xff]
        %v3721 = vld [vmem:[%s3714 + $0x30] sm:$0xff]
        %v3722 = vld [vmem:[%s3714 + $0x38] sm:$0xff]
        %v3723 = vld [vmem:[%s3714 + $0x40] sm:$0xff]
        %v3724 = vld [vmem:[%s3714 + $0x48] sm:$0xff]
        %v3725 = vld [vmem:[%s3714 + $0x50] sm:$0xff]
        %v3726 = vld [vmem:[%s3714 + $0x58] sm:$0xff]
        %v3727 = vld [vmem:[%s3714 + $0x60] sm:$0xff]
        %v3728 = vld [vmem:[%s3714 + $0x68] sm:$0xff]
        %v3729 = vld [vmem:[%s3714 + $0x70] sm:$0xff]
        %v3730 = vld [vmem:[%s3714 + $0x78] sm:$0xff]
        %s3731 = scalar_lea.vmem %s4, 768
        %v3732 = vld [vmem:[%s3731] sm:$0xff]
        %v3733 = vld [vmem:[%s3731 + $0x8] sm:$0xff]
        %v3734 = vld [vmem:[%s3731 + $0x10] sm:$0xff]
        %v3735 = vld [vmem:[%s3731 + $0x18] sm:$0xff]
        %v3736 = vld [vmem:[%s3731 + $0x20] sm:$0xff]
        %v3737 = vld [vmem:[%s3731 + $0x28] sm:$0xff]
        %v3738 = vld [vmem:[%s3731 + $0x30] sm:$0xff]
        %v3739 = vld [vmem:[%s3731 + $0x38] sm:$0xff]
        %v3740 = vld [vmem:[%s3731 + $0x40] sm:$0xff]
        %v3741 = vld [vmem:[%s3731 + $0x48] sm:$0xff]
        %v3742 = vld [vmem:[%s3731 + $0x50] sm:$0xff]
        %v3743 = vld [vmem:[%s3731 + $0x58] sm:$0xff]
        %v3744 = vld [vmem:[%s3731 + $0x60] sm:$0xff]
        %v3745 = vld [vmem:[%s3731 + $0x68] sm:$0xff]
        %v3746 = vld [vmem:[%s3731 + $0x70] sm:$0xff]
        %v3747 = vld [vmem:[%s3731 + $0x78] sm:$0xff]
        %3749 = vset.pattern.permute.xlu0 0
        %3750 = vperm.xlu0 %3749, %v3732
        %v3751 = vpop.permute.xlu0 %3750
        %3754 = vset.pattern.permute.xlu0 0
        %3755 = vperm.xlu0 %3754, %v3733
        %v3756 = vpop.permute.xlu0 %3755
        %3759 = vset.pattern.permute.xlu0 0
        %3760 = vperm.xlu0 %3759, %v3734
        %v3761 = vpop.permute.xlu0 %3760
        %3764 = vset.pattern.permute.xlu0 0
        %3765 = vperm.xlu0 %3764, %v3735
        %v3766 = vpop.permute.xlu0 %3765
        %3769 = vset.pattern.permute.xlu0 0
        %3770 = vperm.xlu0 %3769, %v3736
        %v3771 = vpop.permute.xlu0 %3770
        %3774 = vset.pattern.permute.xlu0 0
        %3775 = vperm.xlu0 %3774, %v3737
        %v3776 = vpop.permute.xlu0 %3775
        %3779 = vset.pattern.permute.xlu0 0
        %3780 = vperm.xlu0 %3779, %v3738
        %v3781 = vpop.permute.xlu0 %3780
        %3784 = vset.pattern.permute.xlu0 0
        %3785 = vperm.xlu0 %3784, %v3739
        %v3786 = vpop.permute.xlu0 %3785
        %3789 = vset.pattern.permute.xlu0 0
        %3790 = vperm.xlu0 %3789, %v3740
        %v3791 = vpop.permute.xlu0 %3790
        %3794 = vset.pattern.permute.xlu0 0
        %3795 = vperm.xlu0 %3794, %v3741
        %v3796 = vpop.permute.xlu0 %3795
        %3799 = vset.pattern.permute.xlu0 0
        %3800 = vperm.xlu0 %3799, %v3742
        %v3801 = vpop.permute.xlu0 %3800
        %3804 = vset.pattern.permute.xlu0 0
        %3805 = vperm.xlu0 %3804, %v3743
        %v3806 = vpop.permute.xlu0 %3805
        %3809 = vset.pattern.permute.xlu0 0
        %3810 = vperm.xlu0 %3809, %v3744
        %v3811 = vpop.permute.xlu0 %3810
        %3814 = vset.pattern.permute.xlu0 0
        %3815 = vperm.xlu0 %3814, %v3745
        %v3816 = vpop.permute.xlu0 %3815
        %3819 = vset.pattern.permute.xlu0 0
        %3820 = vperm.xlu0 %3819, %v3746
        %v3821 = vpop.permute.xlu0 %3820
        %3824 = vset.pattern.permute.xlu0 0
        %3825 = vperm.xlu0 %3824, %v3747
        %v3826 = vpop.permute.xlu0 %3825
        %3828 = vmatpush.msra.mxu0 %v3710
        %3829 = vmatpush.msra.mxu0 %v3706
        %3830 = vmatpush.msra.mxu0 %v3702
        %3831 = vmatpush.msra.mxu0 %v3698
        %3832 = vmatpush.msra.mxu0 %v3694
        %3833 = vmatpush.msra.mxu0 %v3690
        %3834 = vmatpush.msra.mxu0 %v3686
        %3835 = vmatpush.msra.mxu0 %v3682
        %3836 = vmatpush.msra.mxu0 %v3678
        %3837 = vmatpush.msra.mxu0 %v3674
        %3838 = vmatpush.msra.mxu0 %v3670
        %3839 = vmatpush.msra.mxu0 %v3666
        %3840 = vmatpush.msra.mxu0 %v3662
        %3841 = vmatpush.msra.mxu0 %v3658
        %3842 = vmatpush.msra.mxu0 %v3654
        %3843 = vmatpush.msra.mxu0 %v3650
        %3844 = vmatmul.f32.gmra.mxu0 %v3715
        %v3845 = vpop.f32.mrf.mxu0
        %v3846 = vadd.f32 %v3751, %v3845
        %3847 = vmatmul.f32.gmra.mxu0 %v3716
        %v3848 = vpop.f32.mrf.mxu0
        %v3849 = vadd.f32 %v3756, %v3848
        %3850 = vmatmul.f32.gmra.mxu0 %v3717
        %v3851 = vpop.f32.mrf.mxu0
        %v3852 = vadd.f32 %v3761, %v3851
        %3853 = vmatmul.f32.gmra.mxu0 %v3718
        %v3854 = vpop.f32.mrf.mxu0
        %v3855 = vadd.f32 %v3766, %v3854
        %3856 = vmatmul.f32.gmra.mxu0 %v3719
        %v3857 = vpop.f32.mrf.mxu0
        %v3858 = vadd.f32 %v3771, %v3857
        %3859 = vmatmul.f32.gmra.mxu0 %v3720
        %v3860 = vpop.f32.mrf.mxu0
        %v3861 = vadd.f32 %v3776, %v3860
        %3862 = vmatmul.f32.gmra.mxu0 %v3721
        %v3863 = vpop.f32.mrf.mxu0
        %v3864 = vadd.f32 %v3781, %v3863
        %3865 = vmatmul.f32.gmra.mxu0 %v3722
        %v3866 = vpop.f32.mrf.mxu0
        %v3867 = vadd.f32 %v3786, %v3866
        %3868 = vmatmul.f32.gmra.mxu0 %v3723
        %v3869 = vpop.f32.mrf.mxu0
        %v3870 = vadd.f32 %v3791, %v3869
        %3871 = vmatmul.f32.gmra.mxu0 %v3724
        %v3872 = vpop.f32.mrf.mxu0
        %v3873 = vadd.f32 %v3796, %v3872
        %3874 = vmatmul.f32.gmra.mxu0 %v3725
        %v3875 = vpop.f32.mrf.mxu0
        %v3876 = vadd.f32 %v3801, %v3875
        %3877 = vmatmul.f32.gmra.mxu0 %v3726
        %v3878 = vpop.f32.mrf.mxu0
        %v3879 = vadd.f32 %v3806, %v3878
        %3880 = vmatmul.f32.gmra.mxu0 %v3727
        %v3881 = vpop.f32.mrf.mxu0
        %v3882 = vadd.f32 %v3811, %v3881
        %3883 = vmatmul.f32.gmra.mxu0 %v3728
        %v3884 = vpop.f32.mrf.mxu0
        %v3885 = vadd.f32 %v3816, %v3884
        %3886 = vmatmul.f32.gmra.mxu0 %v3729
        %v3887 = vpop.f32.mrf.mxu0
        %v3888 = vadd.f32 %v3821, %v3887
        %3889 = vmatmul.f32.gmra.mxu0 %v3730
        %v3890 = vpop.f32.mrf.mxu0
        %v3891 = vadd.f32 %v3826, %v3890
        %3892 = vdwg.mxu0
        %3893 = vmatpush.msra.mxu0 %v3711
        %3894 = vmatpush.msra.mxu0 %v3707
        %3895 = vmatpush.msra.mxu0 %v3703
        %3896 = vmatpush.msra.mxu0 %v3699
        %3897 = vmatpush.msra.mxu0 %v3695
        %3898 = vmatpush.msra.mxu0 %v3691
        %3899 = vmatpush.msra.mxu0 %v3687
        %3900 = vmatpush.msra.mxu0 %v3683
        %3901 = vmatpush.msra.mxu0 %v3679
        %3902 = vmatpush.msra.mxu0 %v3675
        %3903 = vmatpush.msra.mxu0 %v3671
        %3904 = vmatpush.msra.mxu0 %v3667
        %3905 = vmatpush.msra.mxu0 %v3663
        %3906 = vmatpush.msra.mxu0 %v3659
        %3907 = vmatpush.msra.mxu0 %v3655
        %3908 = vmatpush.msra.mxu0 %v3651
        %3909 = vmatmul.f32.gmra.mxu0 %v3715
        %v3910 = vpop.f32.mrf.mxu0
        %v3911 = vadd.f32 %v3751, %v3910
        %3912 = vmatmul.f32.gmra.mxu0 %v3716
        %v3913 = vpop.f32.mrf.mxu0
        %v3914 = vadd.f32 %v3756, %v3913
        %3915 = vmatmul.f32.gmra.mxu0 %v3717
        %v3916 = vpop.f32.mrf.mxu0
        %v3917 = vadd.f32 %v3761, %v3916
        %3918 = vmatmul.f32.gmra.mxu0 %v3718
        %v3919 = vpop.f32.mrf.mxu0
        %v3920 = vadd.f32 %v3766, %v3919
        %3921 = vmatmul.f32.gmra.mxu0 %v3719
        %v3922 = vpop.f32.mrf.mxu0
        %v3923 = vadd.f32 %v3771, %v3922
        %3924 = vmatmul.f32.gmra.mxu0 %v3720
        %v3925 = vpop.f32.mrf.mxu0
        %v3926 = vadd.f32 %v3776, %v3925
        %3927 = vmatmul.f32.gmra.mxu0 %v3721
        %v3928 = vpop.f32.mrf.mxu0
        %v3929 = vadd.f32 %v3781, %v3928
        %3930 = vmatmul.f32.gmra.mxu0 %v3722
        %v3931 = vpop.f32.mrf.mxu0
        %v3932 = vadd.f32 %v3786, %v3931
        %3933 = vmatmul.f32.gmra.mxu0 %v3723
        %v3934 = vpop.f32.mrf.mxu0
        %v3935 = vadd.f32 %v3791, %v3934
        %3936 = vmatmul.f32.gmra.mxu0 %v3724
        %v3937 = vpop.f32.mrf.mxu0
        %v3938 = vadd.f32 %v3796, %v3937
        %3939 = vmatmul.f32.gmra.mxu0 %v3725
        %v3940 = vpop.f32.mrf.mxu0
        %v3941 = vadd.f32 %v3801, %v3940
        %3942 = vmatmul.f32.gmra.mxu0 %v3726
        %v3943 = vpop.f32.mrf.mxu0
        %v3944 = vadd.f32 %v3806, %v3943
        %3945 = vmatmul.f32.gmra.mxu0 %v3727
        %v3946 = vpop.f32.mrf.mxu0
        %v3947 = vadd.f32 %v3811, %v3946
        %3948 = vmatmul.f32.gmra.mxu0 %v3728
        %v3949 = vpop.f32.mrf.mxu0
        %v3950 = vadd.f32 %v3816, %v3949
        %3951 = vmatmul.f32.gmra.mxu0 %v3729
        %v3952 = vpop.f32.mrf.mxu0
        %v3953 = vadd.f32 %v3821, %v3952
        %3954 = vmatmul.f32.gmra.mxu0 %v3730
        %v3955 = vpop.f32.mrf.mxu0
        %v3956 = vadd.f32 %v3826, %v3955
        %3957 = vdwg.mxu0
        %3958 = vmatpush.msra.mxu0 %v3712
        %3959 = vmatpush.msra.mxu0 %v3708
        %3960 = vmatpush.msra.mxu0 %v3704
        %3961 = vmatpush.msra.mxu0 %v3700
        %3962 = vmatpush.msra.mxu0 %v3696
        %3963 = vmatpush.msra.mxu0 %v3692
        %3964 = vmatpush.msra.mxu0 %v3688
        %3965 = vmatpush.msra.mxu0 %v3684
        %3966 = vmatpush.msra.mxu0 %v3680
        %3967 = vmatpush.msra.mxu0 %v3676
        %3968 = vmatpush.msra.mxu0 %v3672
        %3969 = vmatpush.msra.mxu0 %v3668
        %3970 = vmatpush.msra.mxu0 %v3664
        %3971 = vmatpush.msra.mxu0 %v3660
        %3972 = vmatpush.msra.mxu0 %v3656
        %3973 = vmatpush.msra.mxu0 %v3652
        %3974 = vmatmul.f32.gmra.mxu0 %v3715
        %v3975 = vpop.f32.mrf.mxu0
        %v3976 = vadd.f32 %v3751, %v3975
        %3977 = vmatmul.f32.gmra.mxu0 %v3716
        %v3978 = vpop.f32.mrf.mxu0
        %v3979 = vadd.f32 %v3756, %v3978
        %3980 = vmatmul.f32.gmra.mxu0 %v3717
        %v3981 = vpop.f32.mrf.mxu0
        %v3982 = vadd.f32 %v3761, %v3981
        %3983 = vmatmul.f32.gmra.mxu0 %v3718
        %v3984 = vpop.f32.mrf.mxu0
        %v3985 = vadd.f32 %v3766, %v3984
        %3986 = vmatmul.f32.gmra.mxu0 %v3719
        %v3987 = vpop.f32.mrf.mxu0
        %v3988 = vadd.f32 %v3771, %v3987
        %3989 = vmatmul.f32.gmra.mxu0 %v3720
        %v3990 = vpop.f32.mrf.mxu0
        %v3991 = vadd.f32 %v3776, %v3990
        %3992 = vmatmul.f32.gmra.mxu0 %v3721
        %v3993 = vpop.f32.mrf.mxu0
        %v3994 = vadd.f32 %v3781, %v3993
        %3995 = vmatmul.f32.gmra.mxu0 %v3722
        %v3996 = vpop.f32.mrf.mxu0
        %v3997 = vadd.f32 %v3786, %v3996
        %3998 = vmatmul.f32.gmra.mxu0 %v3723
        %v3999 = vpop.f32.mrf.mxu0
        %v4000 = vadd.f32 %v3791, %v3999
        %4001 = vmatmul.f32.gmra.mxu0 %v3724
        %v4002 = vpop.f32.mrf.mxu0
        %v4003 = vadd.f32 %v3796, %v4002
        %4004 = vmatmul.f32.gmra.mxu0 %v3725
        %v4005 = vpop.f32.mrf.mxu0
        %v4006 = vadd.f32 %v3801, %v4005
        %4007 = vmatmul.f32.gmra.mxu0 %v3726
        %v4008 = vpop.f32.mrf.mxu0
        %v4009 = vadd.f32 %v3806, %v4008
        %4010 = vmatmul.f32.gmra.mxu0 %v3727
        %v4011 = vpop.f32.mrf.mxu0
        %v4012 = vadd.f32 %v3811, %v4011
        %4013 = vmatmul.f32.gmra.mxu0 %v3728
        %v4014 = vpop.f32.mrf.mxu0
        %v4015 = vadd.f32 %v3816, %v4014
        %4016 = vmatmul.f32.gmra.mxu0 %v3729
        %v4017 = vpop.f32.mrf.mxu0
        %v4018 = vadd.f32 %v3821, %v4017
        %4019 = vmatmul.f32.gmra.mxu0 %v3730
        %v4020 = vpop.f32.mrf.mxu0
        %v4021 = vadd.f32 %v3826, %v4020
        %4022 = vdwg.mxu0
        %4023 = vmatpush.msra.mxu0 %v3713
        %4024 = vmatpush.msra.mxu0 %v3709
        %4025 = vmatpush.msra.mxu0 %v3705
        %4026 = vmatpush.msra.mxu0 %v3701
        %4027 = vmatpush.msra.mxu0 %v3697
        %4028 = vmatpush.msra.mxu0 %v3693
        %4029 = vmatpush.msra.mxu0 %v3689
        %4030 = vmatpush.msra.mxu0 %v3685
        %4031 = vmatpush.msra.mxu0 %v3681
        %4032 = vmatpush.msra.mxu0 %v3677
        %4033 = vmatpush.msra.mxu0 %v3673
        %4034 = vmatpush.msra.mxu0 %v3669
        %4035 = vmatpush.msra.mxu0 %v3665
        %4036 = vmatpush.msra.mxu0 %v3661
        %4037 = vmatpush.msra.mxu0 %v3657
        %4038 = vmatpush.msra.mxu0 %v3653
        %4039 = vmatmul.f32.gmra.mxu0 %v3715
        %v4040 = vpop.f32.mrf.mxu0
        %v4041 = vadd.f32 %v3751, %v4040
        %4042 = vmatmul.f32.gmra.mxu0 %v3716
        %v4043 = vpop.f32.mrf.mxu0
        %v4044 = vadd.f32 %v3756, %v4043
        %4045 = vmatmul.f32.gmra.mxu0 %v3717
        %v4046 = vpop.f32.mrf.mxu0
        %v4047 = vadd.f32 %v3761, %v4046
        %4048 = vmatmul.f32.gmra.mxu0 %v3718
        %v4049 = vpop.f32.mrf.mxu0
        %v4050 = vadd.f32 %v3766, %v4049
        %4051 = vmatmul.f32.gmra.mxu0 %v3719
        %v4052 = vpop.f32.mrf.mxu0
        %v4053 = vadd.f32 %v3771, %v4052
        %4054 = vmatmul.f32.gmra.mxu0 %v3720
        %v4055 = vpop.f32.mrf.mxu0
        %v4056 = vadd.f32 %v3776, %v4055
        %4057 = vmatmul.f32.gmra.mxu0 %v3721
        %v4058 = vpop.f32.mrf.mxu0
        %v4059 = vadd.f32 %v3781, %v4058
        %4060 = vmatmul.f32.gmra.mxu0 %v3722
        %v4061 = vpop.f32.mrf.mxu0
        %v4062 = vadd.f32 %v3786, %v4061
        %4063 = vmatmul.f32.gmra.mxu0 %v3723
        %v4064 = vpop.f32.mrf.mxu0
        %v4065 = vadd.f32 %v3791, %v4064
        %4066 = vmatmul.f32.gmra.mxu0 %v3724
        %v4067 = vpop.f32.mrf.mxu0
        %v4068 = vadd.f32 %v3796, %v4067
        %4069 = vmatmul.f32.gmra.mxu0 %v3725
        %v4070 = vpop.f32.mrf.mxu0
        %v4071 = vadd.f32 %v3801, %v4070
        %4072 = vmatmul.f32.gmra.mxu0 %v3726
        %v4073 = vpop.f32.mrf.mxu0
        %v4074 = vadd.f32 %v3806, %v4073
        %4075 = vmatmul.f32.gmra.mxu0 %v3727
        %v4076 = vpop.f32.mrf.mxu0
        %v4077 = vadd.f32 %v3811, %v4076
        %4078 = vmatmul.f32.gmra.mxu0 %v3728
        %v4079 = vpop.f32.mrf.mxu0
        %v4080 = vadd.f32 %v3816, %v4079
        %4081 = vmatmul.f32.gmra.mxu0 %v3729
        %v4082 = vpop.f32.mrf.mxu0
        %v4083 = vadd.f32 %v3821, %v4082
        %4084 = vmatmul.f32.gmra.mxu0 %v3730
        %v4085 = vpop.f32.mrf.mxu0
        %v4086 = vadd.f32 %v3826, %v4085
        %4087 = vdwg.mxu0
        %v4088 = vmax.f32 %v3846, 0.0
        %v4089 = vmax.f32 %v3911, 0.0
        %v4090 = vmax.f32 %v3976, 0.0
        %v4091 = vmax.f32 %v4041, 0.0
        %v4092 = vmax.f32 %v3849, 0.0
        %v4093 = vmax.f32 %v3914, 0.0
        %v4094 = vmax.f32 %v3979, 0.0
        %v4095 = vmax.f32 %v4044, 0.0
        %v4096 = vmax.f32 %v3852, 0.0
        %v4097 = vmax.f32 %v3917, 0.0
        %v4098 = vmax.f32 %v3982, 0.0
        %v4099 = vmax.f32 %v4047, 0.0
        %v4100 = vmax.f32 %v3855, 0.0
        %v4101 = vmax.f32 %v3920, 0.0
        %v4102 = vmax.f32 %v3985, 0.0
        %v4103 = vmax.f32 %v4050, 0.0
        %v4104 = vmax.f32 %v3858, 0.0
        %v4105 = vmax.f32 %v3923, 0.0
        %v4106 = vmax.f32 %v3988, 0.0
        %v4107 = vmax.f32 %v4053, 0.0
        %v4108 = vmax.f32 %v3861, 0.0
        %v4109 = vmax.f32 %v3926, 0.0
        %v4110 = vmax.f32 %v3991, 0.0
        %v4111 = vmax.f32 %v4056, 0.0
        %v4112 = vmax.f32 %v3864, 0.0
        %v4113 = vmax.f32 %v3929, 0.0
        %v4114 = vmax.f32 %v3994, 0.0
        %v4115 = vmax.f32 %v4059, 0.0
        %v4116 = vmax.f32 %v3867, 0.0
        %v4117 = vmax.f32 %v3932, 0.0
        %v4118 = vmax.f32 %v3997, 0.0
        %v4119 = vmax.f32 %v4062, 0.0
        %v4120 = vmax.f32 %v3870, 0.0
        %v4121 = vmax.f32 %v3935, 0.0
        %v4122 = vmax.f32 %v4000, 0.0
        %v4123 = vmax.f32 %v4065, 0.0
        %v4124 = vmax.f32 %v3873, 0.0
        %v4125 = vmax.f32 %v3938, 0.0
        %v4126 = vmax.f32 %v4003, 0.0
        %v4127 = vmax.f32 %v4068, 0.0
        %v4128 = vmax.f32 %v3876, 0.0
        %v4129 = vmax.f32 %v3941, 0.0
        %v4130 = vmax.f32 %v4006, 0.0
        %v4131 = vmax.f32 %v4071, 0.0
        %v4132 = vmax.f32 %v3879, 0.0
        %v4133 = vmax.f32 %v3944, 0.0
        %v4134 = vmax.f32 %v4009, 0.0
        %v4135 = vmax.f32 %v4074, 0.0
        %v4136 = vmax.f32 %v3882, 0.0
        %v4137 = vmax.f32 %v3947, 0.0
        %v4138 = vmax.f32 %v4012, 0.0
        %v4139 = vmax.f32 %v4077, 0.0
        %v4140 = vmax.f32 %v3885, 0.0
        %v4141 = vmax.f32 %v3950, 0.0
        %v4142 = vmax.f32 %v4015, 0.0
        %v4143 = vmax.f32 %v4080, 0.0
        %v4144 = vmax.f32 %v3888, 0.0
        %v4145 = vmax.f32 %v3953, 0.0
        %v4146 = vmax.f32 %v4018, 0.0
        %v4147 = vmax.f32 %v4083, 0.0
        %v4148 = vmax.f32 %v3891, 0.0
        %v4149 = vmax.f32 %v3956, 0.0
        %v4150 = vmax.f32 %v4021, 0.0
        %v4151 = vmax.f32 %v4086, 0.0
        %v4152 = vld [vmem:[%s5] sm:$0x7]
        %v4153 = vld [vmem:[%s6] sm:$0x7]
        %4155 = vset.pattern.permute.xlu0 0
        %4156 = vperm.xlu0 %4155, %v4153
        %v4157 = vpop.permute.xlu0 %4156
        %4159 = vmatpush.msra.mxu0 %v4148
        %4160 = vmatpush.msra.mxu0 %v4144
        %4161 = vmatpush.msra.mxu0 %v4140
        %4162 = vmatpush.msra.mxu0 %v4136
        %4163 = vmatpush.msra.mxu0 %v4132
        %4164 = vmatpush.msra.mxu0 %v4128
        %4165 = vmatpush.msra.mxu0 %v4124
        %4166 = vmatpush.msra.mxu0 %v4120
        %4167 = vmatpush.msra.mxu0 %v4116
        %4168 = vmatpush.msra.mxu0 %v4112
        %4169 = vmatpush.msra.mxu0 %v4108
        %4170 = vmatpush.msra.mxu0 %v4104
        %4171 = vmatpush.msra.mxu0 %v4100
        %4172 = vmatpush.msra.mxu0 %v4096
        %4173 = vmatpush.msra.mxu0 %v4092
        %4174 = vmatpush.msra.mxu0 %v4088
        %4175 = vmatmul.f32.gmra.mxu0 %v4152
        %v4176 = vpop.f32.mrf.mxu0
        %v4177 = vadd.f32 %v4157, %v4176
        %4178 = vdwg.mxu0
        %4179 = vmatpush.msra.mxu0 %v4149
        %4180 = vmatpush.msra.mxu0 %v4145
        %4181 = vmatpush.msra.mxu0 %v4141
        %4182 = vmatpush.msra.mxu0 %v4137
        %4183 = vmatpush.msra.mxu0 %v4133
        %4184 = vmatpush.msra.mxu0 %v4129
        %4185 = vmatpush.msra.mxu0 %v4125
        %4186 = vmatpush.msra.mxu0 %v4121
        %4187 = vmatpush.msra.mxu0 %v4117
        %4188 = vmatpush.msra.mxu0 %v4113
        %4189 = vmatpush.msra.mxu0 %v4109
        %4190 = vmatpush.msra.mxu0 %v4105
        %4191 = vmatpush.msra.mxu0 %v4101
        %4192 = vmatpush.msra.mxu0 %v4097
        %4193 = vmatpush.msra.mxu0 %v4093
        %4194 = vmatpush.msra.mxu0 %v4089
        %4195 = vmatmul.f32.gmra.mxu0 %v4152
        %v4196 = vpop.f32.mrf.mxu0
        %v4197 = vadd.f32 %v4157, %v4196
        %4198 = vdwg.mxu0
        %4199 = vmatpush.msra.mxu0 %v4150
        %4200 = vmatpush.msra.mxu0 %v4146
        %4201 = vmatpush.msra.mxu0 %v4142
        %4202 = vmatpush.msra.mxu0 %v4138
        %4203 = vmatpush.msra.mxu0 %v4134
        %4204 = vmatpush.msra.mxu0 %v4130
        %4205 = vmatpush.msra.mxu0 %v4126
        %4206 = vmatpush.msra.mxu0 %v4122
        %4207 = vmatpush.msra.mxu0 %v4118
        %4208 = vmatpush.msra.mxu0 %v4114
        %4209 = vmatpush.msra.mxu0 %v4110
        %4210 = vmatpush.msra.mxu0 %v4106
        %4211 = vmatpush.msra.mxu0 %v4102
        %4212 = vmatpush.msra.mxu0 %v4098
        %4213 = vmatpush.msra.mxu0 %v4094
        %4214 = vmatpush.msra.mxu0 %v4090
        %4215 = vmatmul.f32.gmra.mxu0 %v4152
        %v4216 = vpop.f32.mrf.mxu0
        %v4217 = vadd.f32 %v4157, %v4216
        %4218 = vdwg.mxu0
        %4219 = vmatpush.msra.mxu0 %v4151
        %4220 = vmatpush.msra.mxu0 %v4147
        %4221 = vmatpush.msra.mxu0 %v4143
        %4222 = vmatpush.msra.mxu0 %v4139
        %4223 = vmatpush.msra.mxu0 %v4135
        %4224 = vmatpush.msra.mxu0 %v4131
        %4225 = vmatpush.msra.mxu0 %v4127
        %4226 = vmatpush.msra.mxu0 %v4123
        %4227 = vmatpush.msra.mxu0 %v4119
        %4228 = vmatpush.msra.mxu0 %v4115
        %4229 = vmatpush.msra.mxu0 %v4111
        %4230 = vmatpush.msra.mxu0 %v4107
        %4231 = vmatpush.msra.mxu0 %v4103
        %4232 = vmatpush.msra.mxu0 %v4099
        %4233 = vmatpush.msra.mxu0 %v4095
        %4234 = vmatpush.msra.mxu0 %v4091
        %4235 = vmatmul.f32.gmra.mxu0 %v4152
        %v4236 = vpop.f32.mrf.mxu0
        %v4237 = vadd.f32 %v4157, %v4236
        %4238 = vdwg.mxu0
        %v4243 = vrot.slane %v4197, 4
        %v4244 = vrot.slane %v4237, 4
        %vm4245 = vcmask 1043456
        %v4246 = vsel %vm4245, %v4177, %v4243
        %v4247 = vsel %vm4245, %v4217, %v4244
        %4250 = vst [vmem:[%s272] sm:$0x77] %v4246
        %4251 = vst [vmem:[%s272 + $0x8] sm:$0x77] %v4247
        %s4252 = sand.u32 %s181, 1
        %s4253 = scalar_lea.sflag [#allocation3], %s4252
        %s4254 = sand.u32 %s181, 1
        %s4255 = smul.addr %s4254, 16
        %s4256 = scalar_lea.vmem [#allocation2], %s4255
        // Predicated region
        $region49: #{tpu_custom_call.1} parent=47 // pred_check
          %p4257 = pneg %p191
        $region50: #{tpu_custom_call.1} parent=47 // pred_check_branch
          %4259 = sbr.rel (%p4257) target = $region52
        $region51: #{tpu_custom_call.1} parent=47 // pred_region
          %s4260 = smul.u32 4, %s21
          %4262 = vsyncadd %s4253, 0
          %s4263 = smul.addr %s4260, 4
          %s4264 = scalar_lea.hbm %s7, %s4263
          %s4266 = sshll.u32 %s4256, 4
          %s4267 = int_to_ptr.vmem [resolvable:$true] %s4266
          %s4268 = sshll.u32 %s4264, 4
          %s4269 = int_to_ptr.hbm [resolvable:$true] %s4268
          %4271 = dma.vmem_to_hbm [thread:$0]  %s4267, 256, %s4269, %s4253
        $region52: #{tpu_custom_call.1} parent=47 // pred_fallthru
          _
      $region48: #{tpu_custom_call.1} parent=5 // pred_fallthru
        _
      %p4272 = scmp.le.s32.totalorder 2, %s16
      // Predicated region
      $region53: #{tpu_custom_call.1} parent=5 // pred_check
        %p4273 = pneg %p4272
      $region54: #{tpu_custom_call.1} parent=5 // pred_check_branch
        %4275 = sbr.rel (%p4273) target = $region56
      $region55: #{tpu_custom_call.1} parent=5 // pred_region
        %s4276 = ssub.s32 %s16, 2
        // Predicated region
        $region57: #{tpu_custom_call.1} parent=55 // pred_check
          %p4277 = pneg %p197
        $region58: #{tpu_custom_call.1} parent=55 // pred_check_branch
          %4279 = sbr.rel (%p4277) target = $region60
        $region59: #{tpu_custom_call.1} parent=55 // pred_region
          %s4280 = sand.u32 %s182, 1
          %s4281 = scalar_lea.sflag [#allocation3], %s4280
          %s4282 = sand.u32 %s182, 1
          %s4283 = smul.addr %s4282, 16
          %s4284 = scalar_lea.vmem [#allocation2], %s4283
          %4286 = dma.done %s4281, 256
        $region60: #{tpu_custom_call.1} parent=55 // pred_fallthru
          _
      $region56: #{tpu_custom_call.1} parent=5 // pred_fallthru
        _
    $region6: #{tpu_custom_call.1} parent=1 // loop_footer
      %s20 = sadd.s32 1, %s16
    $region7: #{tpu_custom_call.1} parent=1 // loop_footer_branch
      %15 = sbr.rel target = $region3
    $region8: #{tpu_custom_call.1} parent=1 // loop_exit
      _
    %4287 = vsyncpa [#allocation3], 1
    %s4288 = scalar_lea.sflag [#allocation3], 1
    %4289 = vsyncpa %s4288, 1

</llo_original>
